<compile_context>
chip_gen: v7x
topology: tpu7x:2x2x1
jax: 0.10.0
libtpu: 0.0.40
codegen_flags: <defaults>
</compile_context>

<pallas_src>
import jax
import jax.numpy as jnp
from jax import lax
from jax.experimental import pallas as pl
from jax.experimental.pallas import tpu as pltpu

N_STEPS = 16          # fixed RK4 steps over the unit interval [0, 1]
CURV = 0.1            # curvature coefficient from the reference metric
CHUNK = 256           # lane chunk kept register-resident across the RK4 chain
MAX_BLOCK_N = 8192    # samples per grid step (multiple of CHUNK)


def _round_up(a, b):
    return ((a + b - 1) // b) * b


def _manifold_kernel(x_ref, g_ref, state_ref):
    """x_ref: (8, bn) f32 rows=[t,x,y,z,vt,vx,vy,vz], cols=samples (lanes).
    g_ref: (4, bn) metric diagonal.  state_ref: (8, bn) final geodesic state."""
    bn = x_ref.shape[1]
    n_chunks = bn // CHUNK          # static (bn is a multiple of CHUNK)
    dt = 1.0 / N_STEPS

    # Hoisted constants (built from iota — no captured host arrays), reused by
    # every chunk / RK4 stage.
    row8 = lax.broadcasted_iota(jnp.int32, (8, CHUNK), 0)
    top_half = row8 < 4                                           # position rows
    # sign of the metric, aligned with the *rolled* state [v; p] (row 4 = t).
    sign_rolled = jnp.where(row8 == 4, jnp.float32(-1.0), jnp.float32(1.0))
    row4 = lax.broadcasted_iota(jnp.int32, (4, CHUNK), 0)
    sign_pos = jnp.where(row4 == 0, jnp.float32(-1.0), jnp.float32(1.0))

    def rhs(s):
        # s = [p; v] packed on 8 sublanes.  Only nonzero Christoffel symbols of
        # g = diag(sign_i + 0.1 q_i^2) are Gamma^i_{ii} = 0.1 q_i / f_i, so
        #   dp/dt = v,   dv^i/dt = -0.1 p_i v_i^2 / f_i.
        sr = pltpu.roll(s, shift=4, axis=0)        # [v; p]      (XLU slot)
        cpn = jnp.float32(-CURV) * sr              # rows 4-7: -0.1 p
        f = sign_rolled - cpn * sr                 # rows 4-7: f(p)
        r = pl.reciprocal(f, approx=True)          # EUP slot
        r = r * (2.0 - f * r)                      # one Newton-Raphson step
        acc = cpn * (s * s) * r                    # rows 4-7: -0.1 p v^2 / f(p)
        return jnp.where(top_half, sr, acc)        # [v ; dv/dt]

    @pl.loop(0, n_chunks)
    def _(c):
        off = pl.multiple_of(c * CHUNK, CHUNK)
        s0 = x_ref[:, pl.ds(off, CHUNK)]           # (8, CHUNK) chunk load

        # Metric diagonal at the initial position (one contiguous store; the
        # zero off-diagonals are assembled in the wrapper).
        pos = s0[0:4, :]
        g_ref[:, pl.ds(off, CHUNK)] = sign_pos + CURV * pos * pos

        def rk4_step(_, s):
            k1 = rhs(s)
            k2 = rhs(s + (0.5 * dt) * k1)
            k3 = rhs(s + (0.5 * dt) * k2)
            k4 = rhs(s + dt * k3)
            return s + (dt / 6.0) * (k1 + 2.0 * k2 + 2.0 * k3 + k4)

        s_fin = lax.fori_loop(0, N_STEPS, rk4_step, s0, unroll=True)
        state_ref[:, pl.ds(off, CHUNK)] = s_fin


def manifold_forward(x, max_block_n=MAX_BLOCK_N):
    """x: (N, 8) -> (metric (N, 4, 4) f32, final geodesic state (N, 8) f32)."""
    n = x.shape[0]
    n_ch = _round_up(max(n, 1), CHUNK)
    # Aim for >= 2 "parallel" grid steps when there is enough data (v7x has two
    # TensorCores); cap the tile so large batches still pipeline over the grid.
    bn = max(CHUNK, min(max_block_n, _round_up(pl.cdiv(n_ch, 2), CHUNK)))
    n_pad = _round_up(n_ch, bn)

    # Lane-dense (features, samples) layout; zero padding -> f = ±1 (safe).
    xt = jnp.transpose(x.astype(jnp.float32))       # (8, n)
    xt = jnp.pad(xt, ((0, 0), (0, n_pad - n)))      # (8, n_pad)

    g_diag_t, state_t = pl.pallas_call(
        _manifold_kernel,
        out_shape=(
            jax.ShapeDtypeStruct((4, n_pad), jnp.float32),
            jax.ShapeDtypeStruct((8, n_pad), jnp.float32),
        ),
        grid=(n_pad // bn,),
        in_specs=[pl.BlockSpec((8, bn), lambda i: (0, i))],
        out_specs=(
            pl.BlockSpec((4, bn), lambda i: (0, i)),
            pl.BlockSpec((8, bn), lambda i: (0, i)),
        ),
        compiler_params=pltpu.CompilerParams(
            dimension_semantics=("parallel",),
            vmem_limit_bytes=16 * 1024 * 1024),
    )(xt)

    g_diag = g_diag_t[:, :n].T                                    # (n, 4)
    metric = g_diag[:, :, None] * jnp.eye(4, dtype=jnp.float32)[None]
    state = state_t[:, :n].T                                      # (n, 8)
    return metric, state


def _reference(x):
    """Pure-JAX reference (exact divide, same fixed-step RK4)."""
    x = x.astype(jnp.float32)
    pos, vel = x[:, :4], x[:, 4:]
    sign = jnp.array([-1.0, 1.0, 1.0, 1.0], jnp.float32)
    g_diag = sign[None, :] + CURV * pos * pos
    metric = g_diag[:, :, None] * jnp.eye(4, dtype=jnp.float32)[None]

    def rhs(p, v):
        f = sign[None, :] + CURV * p * p
        return v, -(CURV * p * v * v) / f

    dt = 1.0 / N_STEPS
    p, v = pos, vel
    for _ in range(N_STEPS):
        k1p, k1v = rhs(p, v)
        k2p, k2v = rhs(p + 0.5 * dt * k1p, v + 0.5 * dt * k1v)
        k3p, k3v = rhs(p + 0.5 * dt * k2p, v + 0.5 * dt * k2v)
        k4p, k4v = rhs(p + dt * k3p, v + dt * k3v)
        p = p + (dt / 6.0) * (k1p + 2.0 * k2p + 2.0 * k3p + k4p)
        v = v + (dt / 6.0) * (k1v + 2.0 * k2v + 2.0 * k3v + k4v)
    return metric, jnp.concatenate([p, v], axis=1)


if __name__ == "__main__":
    key = jax.random.PRNGKey(0)
    # batch of 8 samples, each row = 4 positions + 4 velocities
    x = jax.random.normal(key, (8, 8), dtype=jnp.float32)

    metric, final_state = manifold_forward(x)
    jax.block_until_ready((metric, final_state))

    assert metric.shape == (8, 4, 4)
    assert final_state.shape == (8, 8)
    assert bool(jnp.all(jnp.isfinite(metric)))
    assert bool(jnp.all(jnp.isfinite(final_state)))

    ref_metric, ref_state = _reference(x)
    assert bool(jnp.allclose(metric, ref_metric, atol=1e-5, rtol=1e-5))
    # approx reciprocal + one Newton-Raphson step vs exact divide
    assert bool(jnp.allclose(final_state, ref_state, atol=1e-4, rtol=1e-3))

    print("KERNEL_OK")
</pallas_src>

<mosaic_0001>
module attributes {stable_mosaic.version = 11 : i64} {
  func.func @_manifold_kernel(%arg0: i32, %arg1: memref<8x256xf32, #tpu.memory_space<vmem>>, %arg2: memref<4x256xf32, #tpu.memory_space<vmem>>, %arg3: memref<8x256xf32, #tpu.memory_space<vmem>>) attributes {dimension_semantics = [#tpu.dimension_semantics<parallel>], iteration_bounds = array<i64: 1>, scalar_prefetch = 0 : i64, scratch_operands = 0 : i64, tpu.core_type = #tpu.core_type<tc>, window_params = [{transform_indices = @transform_0, window_bounds = array<i64: 8, 256>}, {transform_indices = @transform_1, window_bounds = array<i64: 4, 256>}, {transform_indices = @transform_2, window_bounds = array<i64: 8, 256>}]} {
    %0 = tpu.iota {dimensions = array<i32: 0>} : vector<8x256xi32>
    %c4_i32 = arith.constant 4 : i32
    %1 = vector.broadcast %c4_i32 : i32 to vector<8x256xi32>
    %2 = arith.cmpi slt, %0, %1 : vector<8x256xi32>
    %c4_i32_0 = arith.constant 4 : i32
    %3 = vector.broadcast %c4_i32_0 : i32 to vector<8x256xi32>
    %4 = arith.cmpi eq, %0, %3 : vector<8x256xi32>
    %cst = arith.constant -1.000000e+00 : f32
    %cst_1 = arith.constant 1.000000e+00 : f32
    %5 = vector.broadcast %cst : f32 to vector<8x256xf32>
    %6 = vector.broadcast %cst_1 : f32 to vector<8x256xf32>
    %7 = arith.select %4, %5, %6 : vector<8x256xi1>, vector<8x256xf32>
    %8 = tpu.iota {dimensions = array<i32: 0>} : vector<4x256xi32>
    %c0_i32 = arith.constant 0 : i32
    %9 = vector.broadcast %c0_i32 : i32 to vector<4x256xi32>
    %10 = arith.cmpi eq, %8, %9 : vector<4x256xi32>
    %cst_2 = arith.constant -1.000000e+00 : f32
    %cst_3 = arith.constant 1.000000e+00 : f32
    %11 = vector.broadcast %cst_2 : f32 to vector<4x256xf32>
    %12 = vector.broadcast %cst_3 : f32 to vector<4x256xf32>
    %13 = arith.select %10, %11, %12 : vector<4x256xi1>, vector<4x256xf32>
    %c0_i32_4 = arith.constant 0 : i32
    %c1_i32 = arith.constant 1 : i32
    %14 = arith.muli %c0_i32_4, %c1_i32 : i32
    %c0_i32_5 = arith.constant 0 : i32
    %15 = arith.addi %c0_i32_5, %14 : i32
    %c256_i32 = arith.constant 256 : i32
    %16 = arith.muli %15, %c256_i32 : i32
    %17 = tpu.assume_multiple %16, 256 : i32
    %c0 = arith.constant 0 : index
    %18 = arith.index_cast %17 : i32 to index
    %19 = vector.load %arg1[%c0, %18] : memref<8x256xf32, #tpu.memory_space<vmem>>, vector<8x256xf32>
    %20 = vector.extract_strided_slice %19 {offsets = [0, 0], sizes = [4, 256], strides = [1, 1]} : vector<8x256xf32> to vector<4x256xf32>
    %cst_6 = arith.constant 1.000000e-01 : f32
    %21 = vector.broadcast %cst_6 : f32 to vector<4x256xf32>
    %22 = arith.mulf %21, %20 : vector<4x256xf32>
    %23 = arith.mulf %22, %20 : vector<4x256xf32>
    %24 = arith.addf %13, %23 : vector<4x256xf32>
    %c0_7 = arith.constant 0 : index
    %25 = arith.index_cast %17 : i32 to index
    %26 = vector.load %arg2[%c0_7, %25] : memref<4x256xf32, #tpu.memory_space<vmem>>, vector<4x256xf32>
    tpu.vector_store %arg2[%c0_7, %25], %24 {strides = array<i32>} : memref<4x256xf32, #tpu.memory_space<vmem>>, vector<4x256xf32>,
    %c0_i32_8 = arith.constant 0 : i32
    %c4_i32_9 = arith.constant 4 : i32
    %27 = tpu.dynamic_rotate %19 by %c4_i32_9 dim 0 : vector<8x256xf32>, i32 -> vector<8x256xf32>
    %cst_10 = arith.constant -1.000000e-01 : f32
    %28 = vector.broadcast %cst_10 : f32 to vector<8x256xf32>
    %29 = arith.mulf %28, %27 : vector<8x256xf32>
    %30 = arith.mulf %29, %27 : vector<8x256xf32>
    %31 = arith.subf %7, %30 : vector<8x256xf32>
    %32 = tpu.reciprocal %31 {approx = true} : vector<8x256xf32> -> vector<8x256xf32>
    %33 = arith.mulf %31, %32 : vector<8x256xf32>
    %cst_11 = arith.constant 2.000000e+00 : f32
    %34 = vector.broadcast %cst_11 : f32 to vector<8x256xf32>
    %35 = arith.subf %34, %33 : vector<8x256xf32>
    %36 = arith.mulf %32, %35 : vector<8x256xf32>
    %37 = arith.mulf %19, %19 : vector<8x256xf32>
    %38 = arith.mulf %29, %37 : vector<8x256xf32>
    %39 = arith.mulf %38, %36 : vector<8x256xf32>
    %40 = arith.select %2, %27, %39 : vector<8x256xi1>, vector<8x256xf32>
    %cst_12 = arith.constant 3.125000e-02 : f32
    %41 = vector.broadcast %cst_12 : f32 to vector<8x256xf32>
    %42 = arith.mulf %41, %40 : vector<8x256xf32>
    %43 = arith.addf %19, %42 : vector<8x256xf32>
    %c4_i32_13 = arith.constant 4 : i32
    %44 = tpu.dynamic_rotate %43 by %c4_i32_13 dim 0 : vector<8x256xf32>, i32 -> vector<8x256xf32>
    %cst_14 = arith.constant -1.000000e-01 : f32
    %45 = vector.broadcast %cst_14 : f32 to vector<8x256xf32>
    %46 = arith.mulf %45, %44 : vector<8x256xf32>
    %47 = arith.mulf %46, %44 : vector<8x256xf32>
    %48 = arith.subf %7, %47 : vector<8x256xf32>
    %49 = tpu.reciprocal %48 {approx = true} : vector<8x256xf32> -> vector<8x256xf32>
    %50 = arith.mulf %48, %49 : vector<8x256xf32>
    %cst_15 = arith.constant 2.000000e+00 : f32
    %51 = vector.broadcast %cst_15 : f32 to vector<8x256xf32>
    %52 = arith.subf %51, %50 : vector<8x256xf32>
    %53 = arith.mulf %49, %52 : vector<8x256xf32>
    %54 = arith.mulf %43, %43 : vector<8x256xf32>
    %55 = arith.mulf %46, %54 : vector<8x256xf32>
    %56 = arith.mulf %55, %53 : vector<8x256xf32>
    %57 = arith.select %2, %44, %56 : vector<8x256xi1>, vector<8x256xf32>
    %cst_16 = arith.constant 3.125000e-02 : f32
    %58 = vector.broadcast %cst_16 : f32 to vector<8x256xf32>
    %59 = arith.mulf %58, %57 : vector<8x256xf32>
    %60 = arith.addf %19, %59 : vector<8x256xf32>
    %c4_i32_17 = arith.constant 4 : i32
    %61 = tpu.dynamic_rotate %60 by %c4_i32_17 dim 0 : vector<8x256xf32>, i32 -> vector<8x256xf32>
    %cst_18 = arith.constant -1.000000e-01 : f32
    %62 = vector.broadcast %cst_18 : f32 to vector<8x256xf32>
    %63 = arith.mulf %62, %61 : vector<8x256xf32>
    %64 = arith.mulf %63, %61 : vector<8x256xf32>
    %65 = arith.subf %7, %64 : vector<8x256xf32>
    %66 = tpu.reciprocal %65 {approx = true} : vector<8x256xf32> -> vector<8x256xf32>
    %67 = arith.mulf %65, %66 : vector<8x256xf32>
    %cst_19 = arith.constant 2.000000e+00 : f32
    %68 = vector.broadcast %cst_19 : f32 to vector<8x256xf32>
    %69 = arith.subf %68, %67 : vector<8x256xf32>
    %70 = arith.mulf %66, %69 : vector<8x256xf32>
    %71 = arith.mulf %60, %60 : vector<8x256xf32>
    %72 = arith.mulf %63, %71 : vector<8x256xf32>
    %73 = arith.mulf %72, %70 : vector<8x256xf32>
    %74 = arith.select %2, %61, %73 : vector<8x256xi1>, vector<8x256xf32>
    %cst_20 = arith.constant 6.250000e-02 : f32
    %75 = vector.broadcast %cst_20 : f32 to vector<8x256xf32>
    %76 = arith.mulf %75, %74 : vector<8x256xf32>
    %77 = arith.addf %19, %76 : vector<8x256xf32>
    %c4_i32_21 = arith.constant 4 : i32
    %78 = tpu.dynamic_rotate %77 by %c4_i32_21 dim 0 : vector<8x256xf32>, i32 -> vector<8x256xf32>
    %cst_22 = arith.constant -1.000000e-01 : f32
    %79 = vector.broadcast %cst_22 : f32 to vector<8x256xf32>
    %80 = arith.mulf %79, %78 : vector<8x256xf32>
    %81 = arith.mulf %80, %78 : vector<8x256xf32>
    %82 = arith.subf %7, %81 : vector<8x256xf32>
    %83 = tpu.reciprocal %82 {approx = true} : vector<8x256xf32> -> vector<8x256xf32>
    %84 = arith.mulf %82, %83 : vector<8x256xf32>
    %cst_23 = arith.constant 2.000000e+00 : f32
    %85 = vector.broadcast %cst_23 : f32 to vector<8x256xf32>
    %86 = arith.subf %85, %84 : vector<8x256xf32>
    %87 = arith.mulf %83, %86 : vector<8x256xf32>
    %88 = arith.mulf %77, %77 : vector<8x256xf32>
    %89 = arith.mulf %80, %88 : vector<8x256xf32>
    %90 = arith.mulf %89, %87 : vector<8x256xf32>
    %91 = arith.select %2, %78, %90 : vector<8x256xi1>, vector<8x256xf32>
    %cst_24 = arith.constant 2.000000e+00 : f32
    %92 = vector.broadcast %cst_24 : f32 to vector<8x256xf32>
    %93 = arith.mulf %92, %57 : vector<8x256xf32>
    %94 = arith.addf %40, %93 : vector<8x256xf32>
    %cst_25 = arith.constant 2.000000e+00 : f32
    %95 = vector.broadcast %cst_25 : f32 to vector<8x256xf32>
    %96 = arith.mulf %95, %74 : vector<8x256xf32>
    %97 = arith.addf %94, %96 : vector<8x256xf32>
    %98 = arith.addf %97, %91 : vector<8x256xf32>
    %cst_26 = arith.constant 0.010416667 : f32
    %99 = vector.broadcast %cst_26 : f32 to vector<8x256xf32>
    %100 = arith.mulf %99, %98 : vector<8x256xf32>
    %101 = arith.addf %19, %100 : vector<8x256xf32>
    %c1_i32_27 = arith.constant 1 : i32
    %c4_i32_28 = arith.constant 4 : i32
    %102 = tpu.dynamic_rotate %101 by %c4_i32_28 dim 0 : vector<8x256xf32>, i32 -> vector<8x256xf32>
    %cst_29 = arith.constant -1.000000e-01 : f32
    %103 = vector.broadcast %cst_29 : f32 to vector<8x256xf32>
    %104 = arith.mulf %103, %102 : vector<8x256xf32>
    %105 = arith.mulf %104, %102 : vector<8x256xf32>
    %106 = arith.subf %7, %105 : vector<8x256xf32>
    %107 = tpu.reciprocal %106 {approx = true} : vector<8x256xf32> -> vector<8x256xf32>
    %108 = arith.mulf %106, %107 : vector<8x256xf32>
    %cst_30 = arith.constant 2.000000e+00 : f32
    %109 = vector.broadcast %cst_30 : f32 to vector<8x256xf32>
    %110 = arith.subf %109, %108 : vector<8x256xf32>
    %111 = arith.mulf %107, %110 : vector<8x256xf32>
    %112 = arith.mulf %101, %101 : vector<8x256xf32>
    %113 = arith.mulf %104, %112 : vector<8x256xf32>
    %114 = arith.mulf %113, %111 : vector<8x256xf32>
    %115 = arith.select %2, %102, %114 : vector<8x256xi1>, vector<8x256xf32>
    %cst_31 = arith.constant 3.125000e-02 : f32
    %116 = vector.broadcast %cst_31 : f32 to vector<8x256xf32>
    %117 = arith.mulf %116, %115 : vector<8x256xf32>
    %118 = arith.addf %101, %117 : vector<8x256xf32>
    %c4_i32_32 = arith.constant 4 : i32
    %119 = tpu.dynamic_rotate %118 by %c4_i32_32 dim 0 : vector<8x256xf32>, i32 -> vector<8x256xf32>
    %cst_33 = arith.constant -1.000000e-01 : f32
    %120 = vector.broadcast %cst_33 : f32 to vector<8x256xf32>
    %121 = arith.mulf %120, %119 : vector<8x256xf32>
    %122 = arith.mulf %121, %119 : vector<8x256xf32>
    %123 = arith.subf %7, %122 : vector<8x256xf32>
    %124 = tpu.reciprocal %123 {approx = true} : vector<8x256xf32> -> vector<8x256xf32>
    %125 = arith.mulf %123, %124 : vector<8x256xf32>
    %cst_34 = arith.constant 2.000000e+00 : f32
    %126 = vector.broadcast %cst_34 : f32 to vector<8x256xf32>
    %127 = arith.subf %126, %125 : vector<8x256xf32>
    %128 = arith.mulf %124, %127 : vector<8x256xf32>
    %129 = arith.mulf %118, %118 : vector<8x256xf32>
    %130 = arith.mulf %121, %129 : vector<8x256xf32>
    %131 = arith.mulf %130, %128 : vector<8x256xf32>
    %132 = arith.select %2, %119, %131 : vector<8x256xi1>, vector<8x256xf32>
    %cst_35 = arith.constant 3.125000e-02 : f32
    %133 = vector.broadcast %cst_35 : f32 to vector<8x256xf32>
    %134 = arith.mulf %133, %132 : vector<8x256xf32>
    %135 = arith.addf %101, %134 : vector<8x256xf32>
    %c4_i32_36 = arith.constant 4 : i32
    %136 = tpu.dynamic_rotate %135 by %c4_i32_36 dim 0 : vector<8x256xf32>, i32 -> vector<8x256xf32>
    %cst_37 = arith.constant -1.000000e-01 : f32
    %137 = vector.broadcast %cst_37 : f32 to vector<8x256xf32>
    %138 = arith.mulf %137, %136 : vector<8x256xf32>
    %139 = arith.mulf %138, %136 : vector<8x256xf32>
    %140 = arith.subf %7, %139 : vector<8x256xf32>
    %141 = tpu.reciprocal %140 {approx = true} : vector<8x256xf32> -> vector<8x256xf32>
    %142 = arith.mulf %140, %141 : vector<8x256xf32>
    %cst_38 = arith.constant 2.000000e+00 : f32
    %143 = vector.broadcast %cst_38 : f32 to vector<8x256xf32>
    %144 = arith.subf %143, %142 : vector<8x256xf32>
    %145 = arith.mulf %141, %144 : vector<8x256xf32>
    %146 = arith.mulf %135, %135 : vector<8x256xf32>
    %147 = arith.mulf %138, %146 : vector<8x256xf32>
    %148 = arith.mulf %147, %145 : vector<8x256xf32>
    %149 = arith.select %2, %136, %148 : vector<8x256xi1>, vector<8x256xf32>
    %cst_39 = arith.constant 6.250000e-02 : f32
    %150 = vector.broadcast %cst_39 : f32 to vector<8x256xf32>
    %151 = arith.mulf %150, %149 : vector<8x256xf32>
    %152 = arith.addf %101, %151 : vector<8x256xf32>
    %c4_i32_40 = arith.constant 4 : i32
    %153 = tpu.dynamic_rotate %152 by %c4_i32_40 dim 0 : vector<8x256xf32>, i32 -> vector<8x256xf32>
    %cst_41 = arith.constant -1.000000e-01 : f32
    %154 = vector.broadcast %cst_41 : f32 to vector<8x256xf32>
    %155 = arith.mulf %154, %153 : vector<8x256xf32>
    %156 = arith.mulf %155, %153 : vector<8x256xf32>
    %157 = arith.subf %7, %156 : vector<8x256xf32>
    %158 = tpu.reciprocal %157 {approx = true} : vector<8x256xf32> -> vector<8x256xf32>
    %159 = arith.mulf %157, %158 : vector<8x256xf32>
    %cst_42 = arith.constant 2.000000e+00 : f32
    %160 = vector.broadcast %cst_42 : f32 to vector<8x256xf32>
    %161 = arith.subf %160, %159 : vector<8x256xf32>
    %162 = arith.mulf %158, %161 : vector<8x256xf32>
    %163 = arith.mulf %152, %152 : vector<8x256xf32>
    %164 = arith.mulf %155, %163 : vector<8x256xf32>
    %165 = arith.mulf %164, %162 : vector<8x256xf32>
    %166 = arith.select %2, %153, %165 : vector<8x256xi1>, vector<8x256xf32>
    %cst_43 = arith.constant 2.000000e+00 : f32
    %167 = vector.broadcast %cst_43 : f32 to vector<8x256xf32>
    %168 = arith.mulf %167, %132 : vector<8x256xf32>
    %169 = arith.addf %115, %168 : vector<8x256xf32>
    %cst_44 = arith.constant 2.000000e+00 : f32
    %170 = vector.broadcast %cst_44 : f32 to vector<8x256xf32>
    %171 = arith.mulf %170, %149 : vector<8x256xf32>
    %172 = arith.addf %169, %171 : vector<8x256xf32>
    %173 = arith.addf %172, %166 : vector<8x256xf32>
    %cst_45 = arith.constant 0.010416667 : f32
    %174 = vector.broadcast %cst_45 : f32 to vector<8x256xf32>
    %175 = arith.mulf %174, %173 : vector<8x256xf32>
    %176 = arith.addf %101, %175 : vector<8x256xf32>
    %c2_i32 = arith.constant 2 : i32
    %c4_i32_46 = arith.constant 4 : i32
    %177 = tpu.dynamic_rotate %176 by %c4_i32_46 dim 0 : vector<8x256xf32>, i32 -> vector<8x256xf32>
    %cst_47 = arith.constant -1.000000e-01 : f32
    %178 = vector.broadcast %cst_47 : f32 to vector<8x256xf32>
    %179 = arith.mulf %178, %177 : vector<8x256xf32>
    %180 = arith.mulf %179, %177 : vector<8x256xf32>
    %181 = arith.subf %7, %180 : vector<8x256xf32>
    %182 = tpu.reciprocal %181 {approx = true} : vector<8x256xf32> -> vector<8x256xf32>
    %183 = arith.mulf %181, %182 : vector<8x256xf32>
    %cst_48 = arith.constant 2.000000e+00 : f32
    %184 = vector.broadcast %cst_48 : f32 to vector<8x256xf32>
    %185 = arith.subf %184, %183 : vector<8x256xf32>
    %186 = arith.mulf %182, %185 : vector<8x256xf32>
    %187 = arith.mulf %176, %176 : vector<8x256xf32>
    %188 = arith.mulf %179, %187 : vector<8x256xf32>
    %189 = arith.mulf %188, %186 : vector<8x256xf32>
    %190 = arith.select %2, %177, %189 : vector<8x256xi1>, vector<8x256xf32>
    %cst_49 = arith.constant 3.125000e-02 : f32
    %191 = vector.broadcast %cst_49 : f32 to vector<8x256xf32>
    %192 = arith.mulf %191, %190 : vector<8x256xf32>
    %193 = arith.addf %176, %192 : vector<8x256xf32>
    %c4_i32_50 = arith.constant 4 : i32
    %194 = tpu.dynamic_rotate %193 by %c4_i32_50 dim 0 : vector<8x256xf32>, i32 -> vector<8x256xf32>
    %cst_51 = arith.constant -1.000000e-01 : f32
    %195 = vector.broadcast %cst_51 : f32 to vector<8x256xf32>
    %196 = arith.mulf %195, %194 : vector<8x256xf32>
    %197 = arith.mulf %196, %194 : vector<8x256xf32>
    %198 = arith.subf %7, %197 : vector<8x256xf32>
    %199 = tpu.reciprocal %198 {approx = true} : vector<8x256xf32> -> vector<8x256xf32>
    %200 = arith.mulf %198, %199 : vector<8x256xf32>
    %cst_52 = arith.constant 2.000000e+00 : f32
    %201 = vector.broadcast %cst_52 : f32 to vector<8x256xf32>
    %202 = arith.subf %201, %200 : vector<8x256xf32>
    %203 = arith.mulf %199, %202 : vector<8x256xf32>
    %204 = arith.mulf %193, %193 : vector<8x256xf32>
    %205 = arith.mulf %196, %204 : vector<8x256xf32>
    %206 = arith.mulf %205, %203 : vector<8x256xf32>
    %207 = arith.select %2, %194, %206 : vector<8x256xi1>, vector<8x256xf32>
    %cst_53 = arith.constant 3.125000e-02 : f32
    %208 = vector.broadcast %cst_53 : f32 to vector<8x256xf32>
    %209 = arith.mulf %208, %207 : vector<8x256xf32>
    %210 = arith.addf %176, %209 : vector<8x256xf32>
    %c4_i32_54 = arith.constant 4 : i32
    %211 = tpu.dynamic_rotate %210 by %c4_i32_54 dim 0 : vector<8x256xf32>, i32 -> vector<8x256xf32>
    %cst_55 = arith.constant -1.000000e-01 : f32
    %212 = vector.broadcast %cst_55 : f32 to vector<8x256xf32>
    %213 = arith.mulf %212, %211 : vector<8x256xf32>
    %214 = arith.mulf %213, %211 : vector<8x256xf32>
    %215 = arith.subf %7, %214 : vector<8x256xf32>
    %216 = tpu.reciprocal %215 {approx = true} : vector<8x256xf32> -> vector<8x256xf32>
    %217 = arith.mulf %215, %216 : vector<8x256xf32>
    %cst_56 = arith.constant 2.000000e+00 : f32
    %218 = vector.broadcast %cst_56 : f32 to vector<8x256xf32>
    %219 = arith.subf %218, %217 : vector<8x256xf32>
    %220 = arith.mulf %216, %219 : vector<8x256xf32>
    %221 = arith.mulf %210, %210 : vector<8x256xf32>
    %222 = arith.mulf %213, %221 : vector<8x256xf32>
    %223 = arith.mulf %222, %220 : vector<8x256xf32>
    %224 = arith.select %2, %211, %223 : vector<8x256xi1>, vector<8x256xf32>
    %cst_57 = arith.constant 6.250000e-02 : f32
    %225 = vector.broadcast %cst_57 : f32 to vector<8x256xf32>
    %226 = arith.mulf %225, %224 : vector<8x256xf32>
    %227 = arith.addf %176, %226 : vector<8x256xf32>
    %c4_i32_58 = arith.constant 4 : i32
    %228 = tpu.dynamic_rotate %227 by %c4_i32_58 dim 0 : vector<8x256xf32>, i32 -> vector<8x256xf32>
    %cst_59 = arith.constant -1.000000e-01 : f32
    %229 = vector.broadcast %cst_59 : f32 to vector<8x256xf32>
    %230 = arith.mulf %229, %228 : vector<8x256xf32>
    %231 = arith.mulf %230, %228 : vector<8x256xf32>
    %232 = arith.subf %7, %231 : vector<8x256xf32>
    %233 = tpu.reciprocal %232 {approx = true} : vector<8x256xf32> -> vector<8x256xf32>
    %234 = arith.mulf %232, %233 : vector<8x256xf32>
    %cst_60 = arith.constant 2.000000e+00 : f32
    %235 = vector.broadcast %cst_60 : f32 to vector<8x256xf32>
    %236 = arith.subf %235, %234 : vector<8x256xf32>
    %237 = arith.mulf %233, %236 : vector<8x256xf32>
    %238 = arith.mulf %227, %227 : vector<8x256xf32>
    %239 = arith.mulf %230, %238 : vector<8x256xf32>
    %240 = arith.mulf %239, %237 : vector<8x256xf32>
    %241 = arith.select %2, %228, %240 : vector<8x256xi1>, vector<8x256xf32>
    %cst_61 = arith.constant 2.000000e+00 : f32
    %242 = vector.broadcast %cst_61 : f32 to vector<8x256xf32>
    %243 = arith.mulf %242, %207 : vector<8x256xf32>
    %244 = arith.addf %190, %243 : vector<8x256xf32>
    %cst_62 = arith.constant 2.000000e+00 : f32
    %245 = vector.broadcast %cst_62 : f32 to vector<8x256xf32>
    %246 = arith.mulf %245, %224 : vector<8x256xf32>
    %247 = arith.addf %244, %246 : vector<8x256xf32>
    %248 = arith.addf %247, %241 : vector<8x256xf32>
    %cst_63 = arith.constant 0.010416667 : f32
    %249 = vector.broadcast %cst_63 : f32 to vector<8x256xf32>
    %250 = arith.mulf %249, %248 : vector<8x256xf32>
    %251 = arith.addf %176, %250 : vector<8x256xf32>
    %c3_i32 = arith.constant 3 : i32
    %c4_i32_64 = arith.constant 4 : i32
    %252 = tpu.dynamic_rotate %251 by %c4_i32_64 dim 0 : vector<8x256xf32>, i32 -> vector<8x256xf32>
    %cst_65 = arith.constant -1.000000e-01 : f32
    %253 = vector.broadcast %cst_65 : f32 to vector<8x256xf32>
    %254 = arith.mulf %253, %252 : vector<8x256xf32>
    %255 = arith.mulf %254, %252 : vector<8x256xf32>
    %256 = arith.subf %7, %255 : vector<8x256xf32>
    %257 = tpu.reciprocal %256 {approx = true} : vector<8x256xf32> -> vector<8x256xf32>
    %258 = arith.mulf %256, %257 : vector<8x256xf32>
    %cst_66 = arith.constant 2.000000e+00 : f32
    %259 = vector.broadcast %cst_66 : f32 to vector<8x256xf32>
    %260 = arith.subf %259, %258 : vector<8x256xf32>
    %261 = arith.mulf %257, %260 : vector<8x256xf32>
    %262 = arith.mulf %251, %251 : vector<8x256xf32>
    %263 = arith.mulf %254, %262 : vector<8x256xf32>
    %264 = arith.mulf %263, %261 : vector<8x256xf32>
    %265 = arith.select %2, %252, %264 : vector<8x256xi1>, vector<8x256xf32>
    %cst_67 = arith.constant 3.125000e-02 : f32
    %266 = vector.broadcast %cst_67 : f32 to vector<8x256xf32>
    %267 = arith.mulf %266, %265 : vector<8x256xf32>
    %268 = arith.addf %251, %267 : vector<8x256xf32>
    %c4_i32_68 = arith.constant 4 : i32
    %269 = tpu.dynamic_rotate %268 by %c4_i32_68 dim 0 : vector<8x256xf32>, i32 -> vector<8x256xf32>
    %cst_69 = arith.constant -1.000000e-01 : f32
    %270 = vector.broadcast %cst_69 : f32 to vector<8x256xf32>
    %271 = arith.mulf %270, %269 : vector<8x256xf32>
    %272 = arith.mulf %271, %269 : vector<8x256xf32>
    %273 = arith.subf %7, %272 : vector<8x256xf32>
    %274 = tpu.reciprocal %273 {approx = true} : vector<8x256xf32> -> vector<8x256xf32>
    %275 = arith.mulf %273, %274 : vector<8x256xf32>
    %cst_70 = arith.constant 2.000000e+00 : f32
    %276 = vector.broadcast %cst_70 : f32 to vector<8x256xf32>
    %277 = arith.subf %276, %275 : vector<8x256xf32>
    %278 = arith.mulf %274, %277 : vector<8x256xf32>
    %279 = arith.mulf %268, %268 : vector<8x256xf32>
    %280 = arith.mulf %271, %279 : vector<8x256xf32>
    %281 = arith.mulf %280, %278 : vector<8x256xf32>
    %282 = arith.select %2, %269, %281 : vector<8x256xi1>, vector<8x256xf32>
    %cst_71 = arith.constant 3.125000e-02 : f32
    %283 = vector.broadcast %cst_71 : f32 to vector<8x256xf32>
    %284 = arith.mulf %283, %282 : vector<8x256xf32>
    %285 = arith.addf %251, %284 : vector<8x256xf32>
    %c4_i32_72 = arith.constant 4 : i32
    %286 = tpu.dynamic_rotate %285 by %c4_i32_72 dim 0 : vector<8x256xf32>, i32 -> vector<8x256xf32>
    %cst_73 = arith.constant -1.000000e-01 : f32
    %287 = vector.broadcast %cst_73 : f32 to vector<8x256xf32>
    %288 = arith.mulf %287, %286 : vector<8x256xf32>
    %289 = arith.mulf %288, %286 : vector<8x256xf32>
    %290 = arith.subf %7, %289 : vector<8x256xf32>
    %291 = tpu.reciprocal %290 {approx = true} : vector<8x256xf32> -> vector<8x256xf32>
    %292 = arith.mulf %290, %291 : vector<8x256xf32>
    %cst_74 = arith.constant 2.000000e+00 : f32
    %293 = vector.broadcast %cst_74 : f32 to vector<8x256xf32>
    %294 = arith.subf %293, %292 : vector<8x256xf32>
    %295 = arith.mulf %291, %294 : vector<8x256xf32>
    %296 = arith.mulf %285, %285 : vector<8x256xf32>
    %297 = arith.mulf %288, %296 : vector<8x256xf32>
    %298 = arith.mulf %297, %295 : vector<8x256xf32>
    %299 = arith.select %2, %286, %298 : vector<8x256xi1>, vector<8x256xf32>
    %cst_75 = arith.constant 6.250000e-02 : f32
    %300 = vector.broadcast %cst_75 : f32 to vector<8x256xf32>
    %301 = arith.mulf %300, %299 : vector<8x256xf32>
    %302 = arith.addf %251, %301 : vector<8x256xf32>
    %c4_i32_76 = arith.constant 4 : i32
    %303 = tpu.dynamic_rotate %302 by %c4_i32_76 dim 0 : vector<8x256xf32>, i32 -> vector<8x256xf32>
    %cst_77 = arith.constant -1.000000e-01 : f32
    %304 = vector.broadcast %cst_77 : f32 to vector<8x256xf32>
    %305 = arith.mulf %304, %303 : vector<8x256xf32>
    %306 = arith.mulf %305, %303 : vector<8x256xf32>
    %307 = arith.subf %7, %306 : vector<8x256xf32>
    %308 = tpu.reciprocal %307 {approx = true} : vector<8x256xf32> -> vector<8x256xf32>
    %309 = arith.mulf %307, %308 : vector<8x256xf32>
    %cst_78 = arith.constant 2.000000e+00 : f32
    %310 = vector.broadcast %cst_78 : f32 to vector<8x256xf32>
    %311 = arith.subf %310, %309 : vector<8x256xf32>
    %312 = arith.mulf %308, %311 : vector<8x256xf32>
    %313 = arith.mulf %302, %302 : vector<8x256xf32>
    %314 = arith.mulf %305, %313 : vector<8x256xf32>
    %315 = arith.mulf %314, %312 : vector<8x256xf32>
    %316 = arith.select %2, %303, %315 : vector<8x256xi1>, vector<8x256xf32>
    %cst_79 = arith.constant 2.000000e+00 : f32
    %317 = vector.broadcast %cst_79 : f32 to vector<8x256xf32>
    %318 = arith.mulf %317, %282 : vector<8x256xf32>
    %319 = arith.addf %265, %318 : vector<8x256xf32>
    %cst_80 = arith.constant 2.000000e+00 : f32
    %320 = vector.broadcast %cst_80 : f32 to vector<8x256xf32>
    %321 = arith.mulf %320, %299 : vector<8x256xf32>
    %322 = arith.addf %319, %321 : vector<8x256xf32>
    %323 = arith.addf %322, %316 : vector<8x256xf32>
    %cst_81 = arith.constant 0.010416667 : f32
    %324 = vector.broadcast %cst_81 : f32 to vector<8x256xf32>
    %325 = arith.mulf %324, %323 : vector<8x256xf32>
    %326 = arith.addf %251, %325 : vector<8x256xf32>
    %c4_i32_82 = arith.constant 4 : i32
    %c4_i32_83 = arith.constant 4 : i32
    %327 = tpu.dynamic_rotate %326 by %c4_i32_83 dim 0 : vector<8x256xf32>, i32 -> vector<8x256xf32>
    %cst_84 = arith.constant -1.000000e-01 : f32
    %328 = vector.broadcast %cst_84 : f32 to vector<8x256xf32>
    %329 = arith.mulf %328, %327 : vector<8x256xf32>
    %330 = arith.mulf %329, %327 : vector<8x256xf32>
    %331 = arith.subf %7, %330 : vector<8x256xf32>
    %332 = tpu.reciprocal %331 {approx = true} : vector<8x256xf32> -> vector<8x256xf32>
    %333 = arith.mulf %331, %332 : vector<8x256xf32>
    %cst_85 = arith.constant 2.000000e+00 : f32
    %334 = vector.broadcast %cst_85 : f32 to vector<8x256xf32>
    %335 = arith.subf %334, %333 : vector<8x256xf32>
    %336 = arith.mulf %332, %335 : vector<8x256xf32>
    %337 = arith.mulf %326, %326 : vector<8x256xf32>
    %338 = arith.mulf %329, %337 : vector<8x256xf32>
    %339 = arith.mulf %338, %336 : vector<8x256xf32>
    %340 = arith.select %2, %327, %339 : vector<8x256xi1>, vector<8x256xf32>
    %cst_86 = arith.constant 3.125000e-02 : f32
    %341 = vector.broadcast %cst_86 : f32 to vector<8x256xf32>
    %342 = arith.mulf %341, %340 : vector<8x256xf32>
    %343 = arith.addf %326, %342 : vector<8x256xf32>
    %c4_i32_87 = arith.constant 4 : i32
    %344 = tpu.dynamic_rotate %343 by %c4_i32_87 dim 0 : vector<8x256xf32>, i32 -> vector<8x256xf32>
    %cst_88 = arith.constant -1.000000e-01 : f32
    %345 = vector.broadcast %cst_88 : f32 to vector<8x256xf32>
    %346 = arith.mulf %345, %344 : vector<8x256xf32>
    %347 = arith.mulf %346, %344 : vector<8x256xf32>
    %348 = arith.subf %7, %347 : vector<8x256xf32>
    %349 = tpu.reciprocal %348 {approx = true} : vector<8x256xf32> -> vector<8x256xf32>
    %350 = arith.mulf %348, %349 : vector<8x256xf32>
    %cst_89 = arith.constant 2.000000e+00 : f32
    %351 = vector.broadcast %cst_89 : f32 to vector<8x256xf32>
    %352 = arith.subf %351, %350 : vector<8x256xf32>
    %353 = arith.mulf %349, %352 : vector<8x256xf32>
    %354 = arith.mulf %343, %343 : vector<8x256xf32>
    %355 = arith.mulf %346, %354 : vector<8x256xf32>
    %356 = arith.mulf %355, %353 : vector<8x256xf32>
    %357 = arith.select %2, %344, %356 : vector<8x256xi1>, vector<8x256xf32>
    %cst_90 = arith.constant 3.125000e-02 : f32
    %358 = vector.broadcast %cst_90 : f32 to vector<8x256xf32>
    %359 = arith.mulf %358, %357 : vector<8x256xf32>
    %360 = arith.addf %326, %359 : vector<8x256xf32>
    %c4_i32_91 = arith.constant 4 : i32
    %361 = tpu.dynamic_rotate %360 by %c4_i32_91 dim 0 : vector<8x256xf32>, i32 -> vector<8x256xf32>
    %cst_92 = arith.constant -1.000000e-01 : f32
    %362 = vector.broadcast %cst_92 : f32 to vector<8x256xf32>
    %363 = arith.mulf %362, %361 : vector<8x256xf32>
    %364 = arith.mulf %363, %361 : vector<8x256xf32>
    %365 = arith.subf %7, %364 : vector<8x256xf32>
    %366 = tpu.reciprocal %365 {approx = true} : vector<8x256xf32> -> vector<8x256xf32>
    %367 = arith.mulf %365, %366 : vector<8x256xf32>
    %cst_93 = arith.constant 2.000000e+00 : f32
    %368 = vector.broadcast %cst_93 : f32 to vector<8x256xf32>
    %369 = arith.subf %368, %367 : vector<8x256xf32>
    %370 = arith.mulf %366, %369 : vector<8x256xf32>
    %371 = arith.mulf %360, %360 : vector<8x256xf32>
    %372 = arith.mulf %363, %371 : vector<8x256xf32>
    %373 = arith.mulf %372, %370 : vector<8x256xf32>
    %374 = arith.select %2, %361, %373 : vector<8x256xi1>, vector<8x256xf32>
    %cst_94 = arith.constant 6.250000e-02 : f32
    %375 = vector.broadcast %cst_94 : f32 to vector<8x256xf32>
    %376 = arith.mulf %375, %374 : vector<8x256xf32>
    %377 = arith.addf %326, %376 : vector<8x256xf32>
    %c4_i32_95 = arith.constant 4 : i32
    %378 = tpu.dynamic_rotate %377 by %c4_i32_95 dim 0 : vector<8x256xf32>, i32 -> vector<8x256xf32>
    %cst_96 = arith.constant -1.000000e-01 : f32
    %379 = vector.broadcast %cst_96 : f32 to vector<8x256xf32>
    %380 = arith.mulf %379, %378 : vector<8x256xf32>
    %381 = arith.mulf %380, %378 : vector<8x256xf32>
    %382 = arith.subf %7, %381 : vector<8x256xf32>
    %383 = tpu.reciprocal %382 {approx = true} : vector<8x256xf32> -> vector<8x256xf32>
    %384 = arith.mulf %382, %383 : vector<8x256xf32>
    %cst_97 = arith.constant 2.000000e+00 : f32
    %385 = vector.broadcast %cst_97 : f32 to vector<8x256xf32>
    %386 = arith.subf %385, %384 : vector<8x256xf32>
    %387 = arith.mulf %383, %386 : vector<8x256xf32>
    %388 = arith.mulf %377, %377 : vector<8x256xf32>
    %389 = arith.mulf %380, %388 : vector<8x256xf32>
    %390 = arith.mulf %389, %387 : vector<8x256xf32>
    %391 = arith.select %2, %378, %390 : vector<8x256xi1>, vector<8x256xf32>
    %cst_98 = arith.constant 2.000000e+00 : f32
    %392 = vector.broadcast %cst_98 : f32 to vector<8x256xf32>
    %393 = arith.mulf %392, %357 : vector<8x256xf32>
    %394 = arith.addf %340, %393 : vector<8x256xf32>
    %cst_99 = arith.constant 2.000000e+00 : f32
    %395 = vector.broadcast %cst_99 : f32 to vector<8x256xf32>
    %396 = arith.mulf %395, %374 : vector<8x256xf32>
    %397 = arith.addf %394, %396 : vector<8x256xf32>
    %398 = arith.addf %397, %391 : vector<8x256xf32>
    %cst_100 = arith.constant 0.010416667 : f32
    %399 = vector.broadcast %cst_100 : f32 to vector<8x256xf32>
    %400 = arith.mulf %399, %398 : vector<8x256xf32>
    %401 = arith.addf %326, %400 : vector<8x256xf32>
    %c5_i32 = arith.constant 5 : i32
    %c4_i32_101 = arith.constant 4 : i32
    %402 = tpu.dynamic_rotate %401 by %c4_i32_101 dim 0 : vector<8x256xf32>, i32 -> vector<8x256xf32>
    %cst_102 = arith.constant -1.000000e-01 : f32
    %403 = vector.broadcast %cst_102 : f32 to vector<8x256xf32>
    %404 = arith.mulf %403, %402 : vector<8x256xf32>
    %405 = arith.mulf %404, %402 : vector<8x256xf32>
    %406 = arith.subf %7, %405 : vector<8x256xf32>
    %407 = tpu.reciprocal %406 {approx = true} : vector<8x256xf32> -> vector<8x256xf32>
    %408 = arith.mulf %406, %407 : vector<8x256xf32>
    %cst_103 = arith.constant 2.000000e+00 : f32
    %409 = vector.broadcast %cst_103 : f32 to vector<8x256xf32>
    %410 = arith.subf %409, %408 : vector<8x256xf32>
    %411 = arith.mulf %407, %410 : vector<8x256xf32>
    %412 = arith.mulf %401, %401 : vector<8x256xf32>
    %413 = arith.mulf %404, %412 : vector<8x256xf32>
    %414 = arith.mulf %413, %411 : vector<8x256xf32>
    %415 = arith.select %2, %402, %414 : vector<8x256xi1>, vector<8x256xf32>
    %cst_104 = arith.constant 3.125000e-02 : f32
    %416 = vector.broadcast %cst_104 : f32 to vector<8x256xf32>
    %417 = arith.mulf %416, %415 : vector<8x256xf32>
    %418 = arith.addf %401, %417 : vector<8x256xf32>
    %c4_i32_105 = arith.constant 4 : i32
    %419 = tpu.dynamic_rotate %418 by %c4_i32_105 dim 0 : vector<8x256xf32>, i32 -> vector<8x256xf32>
    %cst_106 = arith.constant -1.000000e-01 : f32
    %420 = vector.broadcast %cst_106 : f32 to vector<8x256xf32>
    %421 = arith.mulf %420, %419 : vector<8x256xf32>
    %422 = arith.mulf %421, %419 : vector<8x256xf32>
    %423 = arith.subf %7, %422 : vector<8x256xf32>
    %424 = tpu.reciprocal %423 {approx = true} : vector<8x256xf32> -> vector<8x256xf32>
    %425 = arith.mulf %423, %424 : vector<8x256xf32>
    %cst_107 = arith.constant 2.000000e+00 : f32
    %426 = vector.broadcast %cst_107 : f32 to vector<8x256xf32>
    %427 = arith.subf %426, %425 : vector<8x256xf32>
    %428 = arith.mulf %424, %427 : vector<8x256xf32>
    %429 = arith.mulf %418, %418 : vector<8x256xf32>
    %430 = arith.mulf %421, %429 : vector<8x256xf32>
    %431 = arith.mulf %430, %428 : vector<8x256xf32>
    %432 = arith.select %2, %419, %431 : vector<8x256xi1>, vector<8x256xf32>
    %cst_108 = arith.constant 3.125000e-02 : f32
    %433 = vector.broadcast %cst_108 : f32 to vector<8x256xf32>
    %434 = arith.mulf %433, %432 : vector<8x256xf32>
    %435 = arith.addf %401, %434 : vector<8x256xf32>
    %c4_i32_109 = arith.constant 4 : i32
    %436 = tpu.dynamic_rotate %435 by %c4_i32_109 dim 0 : vector<8x256xf32>, i32 -> vector<8x256xf32>
    %cst_110 = arith.constant -1.000000e-01 : f32
    %437 = vector.broadcast %cst_110 : f32 to vector<8x256xf32>
    %438 = arith.mulf %437, %436 : vector<8x256xf32>
    %439 = arith.mulf %438, %436 : vector<8x256xf32>
    %440 = arith.subf %7, %439 : vector<8x256xf32>
    %441 = tpu.reciprocal %440 {approx = true} : vector<8x256xf32> -> vector<8x256xf32>
    %442 = arith.mulf %440, %441 : vector<8x256xf32>
    %cst_111 = arith.constant 2.000000e+00 : f32
    %443 = vector.broadcast %cst_111 : f32 to vector<8x256xf32>
    %444 = arith.subf %443, %442 : vector<8x256xf32>
    %445 = arith.mulf %441, %444 : vector<8x256xf32>
    %446 = arith.mulf %435, %435 : vector<8x256xf32>
    %447 = arith.mulf %438, %446 : vector<8x256xf32>
    %448 = arith.mulf %447, %445 : vector<8x256xf32>
    %449 = arith.select %2, %436, %448 : vector<8x256xi1>, vector<8x256xf32>
    %cst_112 = arith.constant 6.250000e-02 : f32
    %450 = vector.broadcast %cst_112 : f32 to vector<8x256xf32>
    %451 = arith.mulf %450, %449 : vector<8x256xf32>
    %452 = arith.addf %401, %451 : vector<8x256xf32>
    %c4_i32_113 = arith.constant 4 : i32
    %453 = tpu.dynamic_rotate %452 by %c4_i32_113 dim 0 : vector<8x256xf32>, i32 -> vector<8x256xf32>
    %cst_114 = arith.constant -1.000000e-01 : f32
    %454 = vector.broadcast %cst_114 : f32 to vector<8x256xf32>
    %455 = arith.mulf %454, %453 : vector<8x256xf32>
    %456 = arith.mulf %455, %453 : vector<8x256xf32>
    %457 = arith.subf %7, %456 : vector<8x256xf32>
    %458 = tpu.reciprocal %457 {approx = true} : vector<8x256xf32> -> vector<8x256xf32>
    %459 = arith.mulf %457, %458 : vector<8x256xf32>
    %cst_115 = arith.constant 2.000000e+00 : f32
    %460 = vector.broadcast %cst_115 : f32 to vector<8x256xf32>
    %461 = arith.subf %460, %459 : vector<8x256xf32>
    %462 = arith.mulf %458, %461 : vector<8x256xf32>
    %463 = arith.mulf %452, %452 : vector<8x256xf32>
    %464 = arith.mulf %455, %463 : vector<8x256xf32>
    %465 = arith.mulf %464, %462 : vector<8x256xf32>
    %466 = arith.select %2, %453, %465 : vector<8x256xi1>, vector<8x256xf32>
    %cst_116 = arith.constant 2.000000e+00 : f32
    %467 = vector.broadcast %cst_116 : f32 to vector<8x256xf32>
    %468 = arith.mulf %467, %432 : vector<8x256xf32>
    %469 = arith.addf %415, %468 : vector<8x256xf32>
    %cst_117 = arith.constant 2.000000e+00 : f32
    %470 = vector.broadcast %cst_117 : f32 to vector<8x256xf32>
    %471 = arith.mulf %470, %449 : vector<8x256xf32>
    %472 = arith.addf %469, %471 : vector<8x256xf32>
    %473 = arith.addf %472, %466 : vector<8x256xf32>
    %cst_118 = arith.constant 0.010416667 : f32
    %474 = vector.broadcast %cst_118 : f32 to vector<8x256xf32>
    %475 = arith.mulf %474, %473 : vector<8x256xf32>
    %476 = arith.addf %401, %475 : vector<8x256xf32>
    %c6_i32 = arith.constant 6 : i32
    %c4_i32_119 = arith.constant 4 : i32
    %477 = tpu.dynamic_rotate %476 by %c4_i32_119 dim 0 : vector<8x256xf32>, i32 -> vector<8x256xf32>
    %cst_120 = arith.constant -1.000000e-01 : f32
    %478 = vector.broadcast %cst_120 : f32 to vector<8x256xf32>
    %479 = arith.mulf %478, %477 : vector<8x256xf32>
    %480 = arith.mulf %479, %477 : vector<8x256xf32>
    %481 = arith.subf %7, %480 : vector<8x256xf32>
    %482 = tpu.reciprocal %481 {approx = true} : vector<8x256xf32> -> vector<8x256xf32>
    %483 = arith.mulf %481, %482 : vector<8x256xf32>
    %cst_121 = arith.constant 2.000000e+00 : f32
    %484 = vector.broadcast %cst_121 : f32 to vector<8x256xf32>
    %485 = arith.subf %484, %483 : vector<8x256xf32>
    %486 = arith.mulf %482, %485 : vector<8x256xf32>
    %487 = arith.mulf %476, %476 : vector<8x256xf32>
    %488 = arith.mulf %479, %487 : vector<8x256xf32>
    %489 = arith.mulf %488, %486 : vector<8x256xf32>
    %490 = arith.select %2, %477, %489 : vector<8x256xi1>, vector<8x256xf32>
    %cst_122 = arith.constant 3.125000e-02 : f32
    %491 = vector.broadcast %cst_122 : f32 to vector<8x256xf32>
    %492 = arith.mulf %491, %490 : vector<8x256xf32>
    %493 = arith.addf %476, %492 : vector<8x256xf32>
    %c4_i32_123 = arith.constant 4 : i32
    %494 = tpu.dynamic_rotate %493 by %c4_i32_123 dim 0 : vector<8x256xf32>, i32 -> vector<8x256xf32>
    %cst_124 = arith.constant -1.000000e-01 : f32
    %495 = vector.broadcast %cst_124 : f32 to vector<8x256xf32>
    %496 = arith.mulf %495, %494 : vector<8x256xf32>
    %497 = arith.mulf %496, %494 : vector<8x256xf32>
    %498 = arith.subf %7, %497 : vector<8x256xf32>
    %499 = tpu.reciprocal %498 {approx = true} : vector<8x256xf32> -> vector<8x256xf32>
    %500 = arith.mulf %498, %499 : vector<8x256xf32>
    %cst_125 = arith.constant 2.000000e+00 : f32
    %501 = vector.broadcast %cst_125 : f32 to vector<8x256xf32>
    %502 = arith.subf %501, %500 : vector<8x256xf32>
    %503 = arith.mulf %499, %502 : vector<8x256xf32>
    %504 = arith.mulf %493, %493 : vector<8x256xf32>
    %505 = arith.mulf %496, %504 : vector<8x256xf32>
    %506 = arith.mulf %505, %503 : vector<8x256xf32>
    %507 = arith.select %2, %494, %506 : vector<8x256xi1>, vector<8x256xf32>
    %cst_126 = arith.constant 3.125000e-02 : f32
    %508 = vector.broadcast %cst_126 : f32 to vector<8x256xf32>
    %509 = arith.mulf %508, %507 : vector<8x256xf32>
    %510 = arith.addf %476, %509 : vector<8x256xf32>
    %c4_i32_127 = arith.constant 4 : i32
    %511 = tpu.dynamic_rotate %510 by %c4_i32_127 dim 0 : vector<8x256xf32>, i32 -> vector<8x256xf32>
    %cst_128 = arith.constant -1.000000e-01 : f32
    %512 = vector.broadcast %cst_128 : f32 to vector<8x256xf32>
    %513 = arith.mulf %512, %511 : vector<8x256xf32>
    %514 = arith.mulf %513, %511 : vector<8x256xf32>
    %515 = arith.subf %7, %514 : vector<8x256xf32>
    %516 = tpu.reciprocal %515 {approx = true} : vector<8x256xf32> -> vector<8x256xf32>
    %517 = arith.mulf %515, %516 : vector<8x256xf32>
    %cst_129 = arith.constant 2.000000e+00 : f32
    %518 = vector.broadcast %cst_129 : f32 to vector<8x256xf32>
    %519 = arith.subf %518, %517 : vector<8x256xf32>
    %520 = arith.mulf %516, %519 : vector<8x256xf32>
    %521 = arith.mulf %510, %510 : vector<8x256xf32>
    %522 = arith.mulf %513, %521 : vector<8x256xf32>
    %523 = arith.mulf %522, %520 : vector<8x256xf32>
    %524 = arith.select %2, %511, %523 : vector<8x256xi1>, vector<8x256xf32>
    %cst_130 = arith.constant 6.250000e-02 : f32
    %525 = vector.broadcast %cst_130 : f32 to vector<8x256xf32>
    %526 = arith.mulf %525, %524 : vector<8x256xf32>
    %527 = arith.addf %476, %526 : vector<8x256xf32>
    %c4_i32_131 = arith.constant 4 : i32
    %528 = tpu.dynamic_rotate %527 by %c4_i32_131 dim 0 : vector<8x256xf32>, i32 -> vector<8x256xf32>
    %cst_132 = arith.constant -1.000000e-01 : f32
    %529 = vector.broadcast %cst_132 : f32 to vector<8x256xf32>
    %530 = arith.mulf %529, %528 : vector<8x256xf32>
    %531 = arith.mulf %530, %528 : vector<8x256xf32>
    %532 = arith.subf %7, %531 : vector<8x256xf32>
    %533 = tpu.reciprocal %532 {approx = true} : vector<8x256xf32> -> vector<8x256xf32>
    %534 = arith.mulf %532, %533 : vector<8x256xf32>
    %cst_133 = arith.constant 2.000000e+00 : f32
    %535 = vector.broadcast %cst_133 : f32 to vector<8x256xf32>
    %536 = arith.subf %535, %534 : vector<8x256xf32>
    %537 = arith.mulf %533, %536 : vector<8x256xf32>
    %538 = arith.mulf %527, %527 : vector<8x256xf32>
    %539 = arith.mulf %530, %538 : vector<8x256xf32>
    %540 = arith.mulf %539, %537 : vector<8x256xf32>
    %541 = arith.select %2, %528, %540 : vector<8x256xi1>, vector<8x256xf32>
    %cst_134 = arith.constant 2.000000e+00 : f32
    %542 = vector.broadcast %cst_134 : f32 to vector<8x256xf32>
    %543 = arith.mulf %542, %507 : vector<8x256xf32>
    %544 = arith.addf %490, %543 : vector<8x256xf32>
    %cst_135 = arith.constant 2.000000e+00 : f32
    %545 = vector.broadcast %cst_135 : f32 to vector<8x256xf32>
    %546 = arith.mulf %545, %524 : vector<8x256xf32>
    %547 = arith.addf %544, %546 : vector<8x256xf32>
    %548 = arith.addf %547, %541 : vector<8x256xf32>
    %cst_136 = arith.constant 0.010416667 : f32
    %549 = vector.broadcast %cst_136 : f32 to vector<8x256xf32>
    %550 = arith.mulf %549, %548 : vector<8x256xf32>
    %551 = arith.addf %476, %550 : vector<8x256xf32>
    %c7_i32 = arith.constant 7 : i32
    %c4_i32_137 = arith.constant 4 : i32
    %552 = tpu.dynamic_rotate %551 by %c4_i32_137 dim 0 : vector<8x256xf32>, i32 -> vector<8x256xf32>
    %cst_138 = arith.constant -1.000000e-01 : f32
    %553 = vector.broadcast %cst_138 : f32 to vector<8x256xf32>
    %554 = arith.mulf %553, %552 : vector<8x256xf32>
    %555 = arith.mulf %554, %552 : vector<8x256xf32>
    %556 = arith.subf %7, %555 : vector<8x256xf32>
    %557 = tpu.reciprocal %556 {approx = true} : vector<8x256xf32> -> vector<8x256xf32>
    %558 = arith.mulf %556, %557 : vector<8x256xf32>
    %cst_139 = arith.constant 2.000000e+00 : f32
    %559 = vector.broadcast %cst_139 : f32 to vector<8x256xf32>
    %560 = arith.subf %559, %558 : vector<8x256xf32>
    %561 = arith.mulf %557, %560 : vector<8x256xf32>
    %562 = arith.mulf %551, %551 : vector<8x256xf32>
    %563 = arith.mulf %554, %562 : vector<8x256xf32>
    %564 = arith.mulf %563, %561 : vector<8x256xf32>
    %565 = arith.select %2, %552, %564 : vector<8x256xi1>, vector<8x256xf32>
    %cst_140 = arith.constant 3.125000e-02 : f32
    %566 = vector.broadcast %cst_140 : f32 to vector<8x256xf32>
    %567 = arith.mulf %566, %565 : vector<8x256xf32>
    %568 = arith.addf %551, %567 : vector<8x256xf32>
    %c4_i32_141 = arith.constant 4 : i32
    %569 = tpu.dynamic_rotate %568 by %c4_i32_141 dim 0 : vector<8x256xf32>, i32 -> vector<8x256xf32>
    %cst_142 = arith.constant -1.000000e-01 : f32
    %570 = vector.broadcast %cst_142 : f32 to vector<8x256xf32>
    %571 = arith.mulf %570, %569 : vector<8x256xf32>
    %572 = arith.mulf %571, %569 : vector<8x256xf32>
    %573 = arith.subf %7, %572 : vector<8x256xf32>
    %574 = tpu.reciprocal %573 {approx = true} : vector<8x256xf32> -> vector<8x256xf32>
    %575 = arith.mulf %573, %574 : vector<8x256xf32>
    %cst_143 = arith.constant 2.000000e+00 : f32
    %576 = vector.broadcast %cst_143 : f32 to vector<8x256xf32>
    %577 = arith.subf %576, %575 : vector<8x256xf32>
    %578 = arith.mulf %574, %577 : vector<8x256xf32>
    %579 = arith.mulf %568, %568 : vector<8x256xf32>
    %580 = arith.mulf %571, %579 : vector<8x256xf32>
    %581 = arith.mulf %580, %578 : vector<8x256xf32>
    %582 = arith.select %2, %569, %581 : vector<8x256xi1>, vector<8x256xf32>
    %cst_144 = arith.constant 3.125000e-02 : f32
    %583 = vector.broadcast %cst_144 : f32 to vector<8x256xf32>
    %584 = arith.mulf %583, %582 : vector<8x256xf32>
    %585 = arith.addf %551, %584 : vector<8x256xf32>
    %c4_i32_145 = arith.constant 4 : i32
    %586 = tpu.dynamic_rotate %585 by %c4_i32_145 dim 0 : vector<8x256xf32>, i32 -> vector<8x256xf32>
    %cst_146 = arith.constant -1.000000e-01 : f32
    %587 = vector.broadcast %cst_146 : f32 to vector<8x256xf32>
    %588 = arith.mulf %587, %586 : vector<8x256xf32>
    %589 = arith.mulf %588, %586 : vector<8x256xf32>
    %590 = arith.subf %7, %589 : vector<8x256xf32>
    %591 = tpu.reciprocal %590 {approx = true} : vector<8x256xf32> -> vector<8x256xf32>
    %592 = arith.mulf %590, %591 : vector<8x256xf32>
    %cst_147 = arith.constant 2.000000e+00 : f32
    %593 = vector.broadcast %cst_147 : f32 to vector<8x256xf32>
    %594 = arith.subf %593, %592 : vector<8x256xf32>
    %595 = arith.mulf %591, %594 : vector<8x256xf32>
    %596 = arith.mulf %585, %585 : vector<8x256xf32>
    %597 = arith.mulf %588, %596 : vector<8x256xf32>
    %598 = arith.mulf %597, %595 : vector<8x256xf32>
    %599 = arith.select %2, %586, %598 : vector<8x256xi1>, vector<8x256xf32>
    %cst_148 = arith.constant 6.250000e-02 : f32
    %600 = vector.broadcast %cst_148 : f32 to vector<8x256xf32>
    %601 = arith.mulf %600, %599 : vector<8x256xf32>
    %602 = arith.addf %551, %601 : vector<8x256xf32>
    %c4_i32_149 = arith.constant 4 : i32
    %603 = tpu.dynamic_rotate %602 by %c4_i32_149 dim 0 : vector<8x256xf32>, i32 -> vector<8x256xf32>
    %cst_150 = arith.constant -1.000000e-01 : f32
    %604 = vector.broadcast %cst_150 : f32 to vector<8x256xf32>
    %605 = arith.mulf %604, %603 : vector<8x256xf32>
    %606 = arith.mulf %605, %603 : vector<8x256xf32>
    %607 = arith.subf %7, %606 : vector<8x256xf32>
    %608 = tpu.reciprocal %607 {approx = true} : vector<8x256xf32> -> vector<8x256xf32>
    %609 = arith.mulf %607, %608 : vector<8x256xf32>
    %cst_151 = arith.constant 2.000000e+00 : f32
    %610 = vector.broadcast %cst_151 : f32 to vector<8x256xf32>
    %611 = arith.subf %610, %609 : vector<8x256xf32>
    %612 = arith.mulf %608, %611 : vector<8x256xf32>
    %613 = arith.mulf %602, %602 : vector<8x256xf32>
    %614 = arith.mulf %605, %613 : vector<8x256xf32>
    %615 = arith.mulf %614, %612 : vector<8x256xf32>
    %616 = arith.select %2, %603, %615 : vector<8x256xi1>, vector<8x256xf32>
    %cst_152 = arith.constant 2.000000e+00 : f32
    %617 = vector.broadcast %cst_152 : f32 to vector<8x256xf32>
    %618 = arith.mulf %617, %582 : vector<8x256xf32>
    %619 = arith.addf %565, %618 : vector<8x256xf32>
    %cst_153 = arith.constant 2.000000e+00 : f32
    %620 = vector.broadcast %cst_153 : f32 to vector<8x256xf32>
    %621 = arith.mulf %620, %599 : vector<8x256xf32>
    %622 = arith.addf %619, %621 : vector<8x256xf32>
    %623 = arith.addf %622, %616 : vector<8x256xf32>
    %cst_154 = arith.constant 0.010416667 : f32
    %624 = vector.broadcast %cst_154 : f32 to vector<8x256xf32>
    %625 = arith.mulf %624, %623 : vector<8x256xf32>
    %626 = arith.addf %551, %625 : vector<8x256xf32>
    %c8_i32 = arith.constant 8 : i32
    %c4_i32_155 = arith.constant 4 : i32
    %627 = tpu.dynamic_rotate %626 by %c4_i32_155 dim 0 : vector<8x256xf32>, i32 -> vector<8x256xf32>
    %cst_156 = arith.constant -1.000000e-01 : f32
    %628 = vector.broadcast %cst_156 : f32 to vector<8x256xf32>
    %629 = arith.mulf %628, %627 : vector<8x256xf32>
    %630 = arith.mulf %629, %627 : vector<8x256xf32>
    %631 = arith.subf %7, %630 : vector<8x256xf32>
    %632 = tpu.reciprocal %631 {approx = true} : vector<8x256xf32> -> vector<8x256xf32>
    %633 = arith.mulf %631, %632 : vector<8x256xf32>
    %cst_157 = arith.constant 2.000000e+00 : f32
    %634 = vector.broadcast %cst_157 : f32 to vector<8x256xf32>
    %635 = arith.subf %634, %633 : vector<8x256xf32>
    %636 = arith.mulf %632, %635 : vector<8x256xf32>
    %637 = arith.mulf %626, %626 : vector<8x256xf32>
    %638 = arith.mulf %629, %637 : vector<8x256xf32>
    %639 = arith.mulf %638, %636 : vector<8x256xf32>
    %640 = arith.select %2, %627, %639 : vector<8x256xi1>, vector<8x256xf32>
    %cst_158 = arith.constant 3.125000e-02 : f32
    %641 = vector.broadcast %cst_158 : f32 to vector<8x256xf32>
    %642 = arith.mulf %641, %640 : vector<8x256xf32>
    %643 = arith.addf %626, %642 : vector<8x256xf32>
    %c4_i32_159 = arith.constant 4 : i32
    %644 = tpu.dynamic_rotate %643 by %c4_i32_159 dim 0 : vector<8x256xf32>, i32 -> vector<8x256xf32>
    %cst_160 = arith.constant -1.000000e-01 : f32
    %645 = vector.broadcast %cst_160 : f32 to vector<8x256xf32>
    %646 = arith.mulf %645, %644 : vector<8x256xf32>
    %647 = arith.mulf %646, %644 : vector<8x256xf32>
    %648 = arith.subf %7, %647 : vector<8x256xf32>
    %649 = tpu.reciprocal %648 {approx = true} : vector<8x256xf32> -> vector<8x256xf32>
    %650 = arith.mulf %648, %649 : vector<8x256xf32>
    %cst_161 = arith.constant 2.000000e+00 : f32
    %651 = vector.broadcast %cst_161 : f32 to vector<8x256xf32>
    %652 = arith.subf %651, %650 : vector<8x256xf32>
    %653 = arith.mulf %649, %652 : vector<8x256xf32>
    %654 = arith.mulf %643, %643 : vector<8x256xf32>
    %655 = arith.mulf %646, %654 : vector<8x256xf32>
    %656 = arith.mulf %655, %653 : vector<8x256xf32>
    %657 = arith.select %2, %644, %656 : vector<8x256xi1>, vector<8x256xf32>
    %cst_162 = arith.constant 3.125000e-02 : f32
    %658 = vector.broadcast %cst_162 : f32 to vector<8x256xf32>
    %659 = arith.mulf %658, %657 : vector<8x256xf32>
    %660 = arith.addf %626, %659 : vector<8x256xf32>
    %c4_i32_163 = arith.constant 4 : i32
    %661 = tpu.dynamic_rotate %660 by %c4_i32_163 dim 0 : vector<8x256xf32>, i32 -> vector<8x256xf32>
    %cst_164 = arith.constant -1.000000e-01 : f32
    %662 = vector.broadcast %cst_164 : f32 to vector<8x256xf32>
    %663 = arith.mulf %662, %661 : vector<8x256xf32>
    %664 = arith.mulf %663, %661 : vector<8x256xf32>
    %665 = arith.subf %7, %664 : vector<8x256xf32>
    %666 = tpu.reciprocal %665 {approx = true} : vector<8x256xf32> -> vector<8x256xf32>
    %667 = arith.mulf %665, %666 : vector<8x256xf32>
    %cst_165 = arith.constant 2.000000e+00 : f32
    %668 = vector.broadcast %cst_165 : f32 to vector<8x256xf32>
    %669 = arith.subf %668, %667 : vector<8x256xf32>
    %670 = arith.mulf %666, %669 : vector<8x256xf32>
    %671 = arith.mulf %660, %660 : vector<8x256xf32>
    %672 = arith.mulf %663, %671 : vector<8x256xf32>
    %673 = arith.mulf %672, %670 : vector<8x256xf32>
    %674 = arith.select %2, %661, %673 : vector<8x256xi1>, vector<8x256xf32>
    %cst_166 = arith.constant 6.250000e-02 : f32
    %675 = vector.broadcast %cst_166 : f32 to vector<8x256xf32>
    %676 = arith.mulf %675, %674 : vector<8x256xf32>
    %677 = arith.addf %626, %676 : vector<8x256xf32>
    %c4_i32_167 = arith.constant 4 : i32
    %678 = tpu.dynamic_rotate %677 by %c4_i32_167 dim 0 : vector<8x256xf32>, i32 -> vector<8x256xf32>
    %cst_168 = arith.constant -1.000000e-01 : f32
    %679 = vector.broadcast %cst_168 : f32 to vector<8x256xf32>
    %680 = arith.mulf %679, %678 : vector<8x256xf32>
    %681 = arith.mulf %680, %678 : vector<8x256xf32>
    %682 = arith.subf %7, %681 : vector<8x256xf32>
    %683 = tpu.reciprocal %682 {approx = true} : vector<8x256xf32> -> vector<8x256xf32>
    %684 = arith.mulf %682, %683 : vector<8x256xf32>
    %cst_169 = arith.constant 2.000000e+00 : f32
    %685 = vector.broadcast %cst_169 : f32 to vector<8x256xf32>
    %686 = arith.subf %685, %684 : vector<8x256xf32>
    %687 = arith.mulf %683, %686 : vector<8x256xf32>
    %688 = arith.mulf %677, %677 : vector<8x256xf32>
    %689 = arith.mulf %680, %688 : vector<8x256xf32>
    %690 = arith.mulf %689, %687 : vector<8x256xf32>
    %691 = arith.select %2, %678, %690 : vector<8x256xi1>, vector<8x256xf32>
    %cst_170 = arith.constant 2.000000e+00 : f32
    %692 = vector.broadcast %cst_170 : f32 to vector<8x256xf32>
    %693 = arith.mulf %692, %657 : vector<8x256xf32>
    %694 = arith.addf %640, %693 : vector<8x256xf32>
    %cst_171 = arith.constant 2.000000e+00 : f32
    %695 = vector.broadcast %cst_171 : f32 to vector<8x256xf32>
    %696 = arith.mulf %695, %674 : vector<8x256xf32>
    %697 = arith.addf %694, %696 : vector<8x256xf32>
    %698 = arith.addf %697, %691 : vector<8x256xf32>
    %cst_172 = arith.constant 0.010416667 : f32
    %699 = vector.broadcast %cst_172 : f32 to vector<8x256xf32>
    %700 = arith.mulf %699, %698 : vector<8x256xf32>
    %701 = arith.addf %626, %700 : vector<8x256xf32>
    %c9_i32 = arith.constant 9 : i32
    %c4_i32_173 = arith.constant 4 : i32
    %702 = tpu.dynamic_rotate %701 by %c4_i32_173 dim 0 : vector<8x256xf32>, i32 -> vector<8x256xf32>
    %cst_174 = arith.constant -1.000000e-01 : f32
    %703 = vector.broadcast %cst_174 : f32 to vector<8x256xf32>
    %704 = arith.mulf %703, %702 : vector<8x256xf32>
    %705 = arith.mulf %704, %702 : vector<8x256xf32>
    %706 = arith.subf %7, %705 : vector<8x256xf32>
    %707 = tpu.reciprocal %706 {approx = true} : vector<8x256xf32> -> vector<8x256xf32>
    %708 = arith.mulf %706, %707 : vector<8x256xf32>
    %cst_175 = arith.constant 2.000000e+00 : f32
    %709 = vector.broadcast %cst_175 : f32 to vector<8x256xf32>
    %710 = arith.subf %709, %708 : vector<8x256xf32>
    %711 = arith.mulf %707, %710 : vector<8x256xf32>
    %712 = arith.mulf %701, %701 : vector<8x256xf32>
    %713 = arith.mulf %704, %712 : vector<8x256xf32>
    %714 = arith.mulf %713, %711 : vector<8x256xf32>
    %715 = arith.select %2, %702, %714 : vector<8x256xi1>, vector<8x256xf32>
    %cst_176 = arith.constant 3.125000e-02 : f32
    %716 = vector.broadcast %cst_176 : f32 to vector<8x256xf32>
    %717 = arith.mulf %716, %715 : vector<8x256xf32>
    %718 = arith.addf %701, %717 : vector<8x256xf32>
    %c4_i32_177 = arith.constant 4 : i32
    %719 = tpu.dynamic_rotate %718 by %c4_i32_177 dim 0 : vector<8x256xf32>, i32 -> vector<8x256xf32>
    %cst_178 = arith.constant -1.000000e-01 : f32
    %720 = vector.broadcast %cst_178 : f32 to vector<8x256xf32>
    %721 = arith.mulf %720, %719 : vector<8x256xf32>
    %722 = arith.mulf %721, %719 : vector<8x256xf32>
    %723 = arith.subf %7, %722 : vector<8x256xf32>
    %724 = tpu.reciprocal %723 {approx = true} : vector<8x256xf32> -> vector<8x256xf32>
    %725 = arith.mulf %723, %724 : vector<8x256xf32>
    %cst_179 = arith.constant 2.000000e+00 : f32
    %726 = vector.broadcast %cst_179 : f32 to vector<8x256xf32>
    %727 = arith.subf %726, %725 : vector<8x256xf32>
    %728 = arith.mulf %724, %727 : vector<8x256xf32>
    %729 = arith.mulf %718, %718 : vector<8x256xf32>
    %730 = arith.mulf %721, %729 : vector<8x256xf32>
    %731 = arith.mulf %730, %728 : vector<8x256xf32>
    %732 = arith.select %2, %719, %731 : vector<8x256xi1>, vector<8x256xf32>
    %cst_180 = arith.constant 3.125000e-02 : f32
    %733 = vector.broadcast %cst_180 : f32 to vector<8x256xf32>
    %734 = arith.mulf %733, %732 : vector<8x256xf32>
    %735 = arith.addf %701, %734 : vector<8x256xf32>
    %c4_i32_181 = arith.constant 4 : i32
    %736 = tpu.dynamic_rotate %735 by %c4_i32_181 dim 0 : vector<8x256xf32>, i32 -> vector<8x256xf32>
    %cst_182 = arith.constant -1.000000e-01 : f32
    %737 = vector.broadcast %cst_182 : f32 to vector<8x256xf32>
    %738 = arith.mulf %737, %736 : vector<8x256xf32>
    %739 = arith.mulf %738, %736 : vector<8x256xf32>
    %740 = arith.subf %7, %739 : vector<8x256xf32>
    %741 = tpu.reciprocal %740 {approx = true} : vector<8x256xf32> -> vector<8x256xf32>
    %742 = arith.mulf %740, %741 : vector<8x256xf32>
    %cst_183 = arith.constant 2.000000e+00 : f32
    %743 = vector.broadcast %cst_183 : f32 to vector<8x256xf32>
    %744 = arith.subf %743, %742 : vector<8x256xf32>
    %745 = arith.mulf %741, %744 : vector<8x256xf32>
    %746 = arith.mulf %735, %735 : vector<8x256xf32>
    %747 = arith.mulf %738, %746 : vector<8x256xf32>
    %748 = arith.mulf %747, %745 : vector<8x256xf32>
    %749 = arith.select %2, %736, %748 : vector<8x256xi1>, vector<8x256xf32>
    %cst_184 = arith.constant 6.250000e-02 : f32
    %750 = vector.broadcast %cst_184 : f32 to vector<8x256xf32>
    %751 = arith.mulf %750, %749 : vector<8x256xf32>
    %752 = arith.addf %701, %751 : vector<8x256xf32>
    %c4_i32_185 = arith.constant 4 : i32
    %753 = tpu.dynamic_rotate %752 by %c4_i32_185 dim 0 : vector<8x256xf32>, i32 -> vector<8x256xf32>
    %cst_186 = arith.constant -1.000000e-01 : f32
    %754 = vector.broadcast %cst_186 : f32 to vector<8x256xf32>
    %755 = arith.mulf %754, %753 : vector<8x256xf32>
    %756 = arith.mulf %755, %753 : vector<8x256xf32>
    %757 = arith.subf %7, %756 : vector<8x256xf32>
    %758 = tpu.reciprocal %757 {approx = true} : vector<8x256xf32> -> vector<8x256xf32>
    %759 = arith.mulf %757, %758 : vector<8x256xf32>
    %cst_187 = arith.constant 2.000000e+00 : f32
    %760 = vector.broadcast %cst_187 : f32 to vector<8x256xf32>
    %761 = arith.subf %760, %759 : vector<8x256xf32>
    %762 = arith.mulf %758, %761 : vector<8x256xf32>
    %763 = arith.mulf %752, %752 : vector<8x256xf32>
    %764 = arith.mulf %755, %763 : vector<8x256xf32>
    %765 = arith.mulf %764, %762 : vector<8x256xf32>
    %766 = arith.select %2, %753, %765 : vector<8x256xi1>, vector<8x256xf32>
    %cst_188 = arith.constant 2.000000e+00 : f32
    %767 = vector.broadcast %cst_188 : f32 to vector<8x256xf32>
    %768 = arith.mulf %767, %732 : vector<8x256xf32>
    %769 = arith.addf %715, %768 : vector<8x256xf32>
    %cst_189 = arith.constant 2.000000e+00 : f32
    %770 = vector.broadcast %cst_189 : f32 to vector<8x256xf32>
    %771 = arith.mulf %770, %749 : vector<8x256xf32>
    %772 = arith.addf %769, %771 : vector<8x256xf32>
    %773 = arith.addf %772, %766 : vector<8x256xf32>
    %cst_190 = arith.constant 0.010416667 : f32
    %774 = vector.broadcast %cst_190 : f32 to vector<8x256xf32>
    %775 = arith.mulf %774, %773 : vector<8x256xf32>
    %776 = arith.addf %701, %775 : vector<8x256xf32>
    %c10_i32 = arith.constant 10 : i32
    %c4_i32_191 = arith.constant 4 : i32
    %777 = tpu.dynamic_rotate %776 by %c4_i32_191 dim 0 : vector<8x256xf32>, i32 -> vector<8x256xf32>
    %cst_192 = arith.constant -1.000000e-01 : f32
    %778 = vector.broadcast %cst_192 : f32 to vector<8x256xf32>
    %779 = arith.mulf %778, %777 : vector<8x256xf32>
    %780 = arith.mulf %779, %777 : vector<8x256xf32>
    %781 = arith.subf %7, %780 : vector<8x256xf32>
    %782 = tpu.reciprocal %781 {approx = true} : vector<8x256xf32> -> vector<8x256xf32>
    %783 = arith.mulf %781, %782 : vector<8x256xf32>
    %cst_193 = arith.constant 2.000000e+00 : f32
    %784 = vector.broadcast %cst_193 : f32 to vector<8x256xf32>
    %785 = arith.subf %784, %783 : vector<8x256xf32>
    %786 = arith.mulf %782, %785 : vector<8x256xf32>
    %787 = arith.mulf %776, %776 : vector<8x256xf32>
    %788 = arith.mulf %779, %787 : vector<8x256xf32>
    %789 = arith.mulf %788, %786 : vector<8x256xf32>
    %790 = arith.select %2, %777, %789 : vector<8x256xi1>, vector<8x256xf32>
    %cst_194 = arith.constant 3.125000e-02 : f32
    %791 = vector.broadcast %cst_194 : f32 to vector<8x256xf32>
    %792 = arith.mulf %791, %790 : vector<8x256xf32>
    %793 = arith.addf %776, %792 : vector<8x256xf32>
    %c4_i32_195 = arith.constant 4 : i32
    %794 = tpu.dynamic_rotate %793 by %c4_i32_195 dim 0 : vector<8x256xf32>, i32 -> vector<8x256xf32>
    %cst_196 = arith.constant -1.000000e-01 : f32
    %795 = vector.broadcast %cst_196 : f32 to vector<8x256xf32>
    %796 = arith.mulf %795, %794 : vector<8x256xf32>
    %797 = arith.mulf %796, %794 : vector<8x256xf32>
    %798 = arith.subf %7, %797 : vector<8x256xf32>
    %799 = tpu.reciprocal %798 {approx = true} : vector<8x256xf32> -> vector<8x256xf32>
    %800 = arith.mulf %798, %799 : vector<8x256xf32>
    %cst_197 = arith.constant 2.000000e+00 : f32
    %801 = vector.broadcast %cst_197 : f32 to vector<8x256xf32>
    %802 = arith.subf %801, %800 : vector<8x256xf32>
    %803 = arith.mulf %799, %802 : vector<8x256xf32>
    %804 = arith.mulf %793, %793 : vector<8x256xf32>
    %805 = arith.mulf %796, %804 : vector<8x256xf32>
    %806 = arith.mulf %805, %803 : vector<8x256xf32>
    %807 = arith.select %2, %794, %806 : vector<8x256xi1>, vector<8x256xf32>
    %cst_198 = arith.constant 3.125000e-02 : f32
    %808 = vector.broadcast %cst_198 : f32 to vector<8x256xf32>
    %809 = arith.mulf %808, %807 : vector<8x256xf32>
    %810 = arith.addf %776, %809 : vector<8x256xf32>
    %c4_i32_199 = arith.constant 4 : i32
    %811 = tpu.dynamic_rotate %810 by %c4_i32_199 dim 0 : vector<8x256xf32>, i32 -> vector<8x256xf32>
    %cst_200 = arith.constant -1.000000e-01 : f32
    %812 = vector.broadcast %cst_200 : f32 to vector<8x256xf32>
    %813 = arith.mulf %812, %811 : vector<8x256xf32>
    %814 = arith.mulf %813, %811 : vector<8x256xf32>
    %815 = arith.subf %7, %814 : vector<8x256xf32>
    %816 = tpu.reciprocal %815 {approx = true} : vector<8x256xf32> -> vector<8x256xf32>
    %817 = arith.mulf %815, %816 : vector<8x256xf32>
    %cst_201 = arith.constant 2.000000e+00 : f32
    %818 = vector.broadcast %cst_201 : f32 to vector<8x256xf32>
    %819 = arith.subf %818, %817 : vector<8x256xf32>
    %820 = arith.mulf %816, %819 : vector<8x256xf32>
    %821 = arith.mulf %810, %810 : vector<8x256xf32>
    %822 = arith.mulf %813, %821 : vector<8x256xf32>
    %823 = arith.mulf %822, %820 : vector<8x256xf32>
    %824 = arith.select %2, %811, %823 : vector<8x256xi1>, vector<8x256xf32>
    %cst_202 = arith.constant 6.250000e-02 : f32
    %825 = vector.broadcast %cst_202 : f32 to vector<8x256xf32>
    %826 = arith.mulf %825, %824 : vector<8x256xf32>
    %827 = arith.addf %776, %826 : vector<8x256xf32>
    %c4_i32_203 = arith.constant 4 : i32
    %828 = tpu.dynamic_rotate %827 by %c4_i32_203 dim 0 : vector<8x256xf32>, i32 -> vector<8x256xf32>
    %cst_204 = arith.constant -1.000000e-01 : f32
    %829 = vector.broadcast %cst_204 : f32 to vector<8x256xf32>
    %830 = arith.mulf %829, %828 : vector<8x256xf32>
    %831 = arith.mulf %830, %828 : vector<8x256xf32>
    %832 = arith.subf %7, %831 : vector<8x256xf32>
    %833 = tpu.reciprocal %832 {approx = true} : vector<8x256xf32> -> vector<8x256xf32>
    %834 = arith.mulf %832, %833 : vector<8x256xf32>
    %cst_205 = arith.constant 2.000000e+00 : f32
    %835 = vector.broadcast %cst_205 : f32 to vector<8x256xf32>
    %836 = arith.subf %835, %834 : vector<8x256xf32>
    %837 = arith.mulf %833, %836 : vector<8x256xf32>
    %838 = arith.mulf %827, %827 : vector<8x256xf32>
    %839 = arith.mulf %830, %838 : vector<8x256xf32>
    %840 = arith.mulf %839, %837 : vector<8x256xf32>
    %841 = arith.select %2, %828, %840 : vector<8x256xi1>, vector<8x256xf32>
    %cst_206 = arith.constant 2.000000e+00 : f32
    %842 = vector.broadcast %cst_206 : f32 to vector<8x256xf32>
    %843 = arith.mulf %842, %807 : vector<8x256xf32>
    %844 = arith.addf %790, %843 : vector<8x256xf32>
    %cst_207 = arith.constant 2.000000e+00 : f32
    %845 = vector.broadcast %cst_207 : f32 to vector<8x256xf32>
    %846 = arith.mulf %845, %824 : vector<8x256xf32>
    %847 = arith.addf %844, %846 : vector<8x256xf32>
    %848 = arith.addf %847, %841 : vector<8x256xf32>
    %cst_208 = arith.constant 0.010416667 : f32
    %849 = vector.broadcast %cst_208 : f32 to vector<8x256xf32>
    %850 = arith.mulf %849, %848 : vector<8x256xf32>
    %851 = arith.addf %776, %850 : vector<8x256xf32>
    %c11_i32 = arith.constant 11 : i32
    %c4_i32_209 = arith.constant 4 : i32
    %852 = tpu.dynamic_rotate %851 by %c4_i32_209 dim 0 : vector<8x256xf32>, i32 -> vector<8x256xf32>
    %cst_210 = arith.constant -1.000000e-01 : f32
    %853 = vector.broadcast %cst_210 : f32 to vector<8x256xf32>
    %854 = arith.mulf %853, %852 : vector<8x256xf32>
    %855 = arith.mulf %854, %852 : vector<8x256xf32>
    %856 = arith.subf %7, %855 : vector<8x256xf32>
    %857 = tpu.reciprocal %856 {approx = true} : vector<8x256xf32> -> vector<8x256xf32>
    %858 = arith.mulf %856, %857 : vector<8x256xf32>
    %cst_211 = arith.constant 2.000000e+00 : f32
    %859 = vector.broadcast %cst_211 : f32 to vector<8x256xf32>
    %860 = arith.subf %859, %858 : vector<8x256xf32>
    %861 = arith.mulf %857, %860 : vector<8x256xf32>
    %862 = arith.mulf %851, %851 : vector<8x256xf32>
    %863 = arith.mulf %854, %862 : vector<8x256xf32>
    %864 = arith.mulf %863, %861 : vector<8x256xf32>
    %865 = arith.select %2, %852, %864 : vector<8x256xi1>, vector<8x256xf32>
    %cst_212 = arith.constant 3.125000e-02 : f32
    %866 = vector.broadcast %cst_212 : f32 to vector<8x256xf32>
    %867 = arith.mulf %866, %865 : vector<8x256xf32>
    %868 = arith.addf %851, %867 : vector<8x256xf32>
    %c4_i32_213 = arith.constant 4 : i32
    %869 = tpu.dynamic_rotate %868 by %c4_i32_213 dim 0 : vector<8x256xf32>, i32 -> vector<8x256xf32>
    %cst_214 = arith.constant -1.000000e-01 : f32
    %870 = vector.broadcast %cst_214 : f32 to vector<8x256xf32>
    %871 = arith.mulf %870, %869 : vector<8x256xf32>
    %872 = arith.mulf %871, %869 : vector<8x256xf32>
    %873 = arith.subf %7, %872 : vector<8x256xf32>
    %874 = tpu.reciprocal %873 {approx = true} : vector<8x256xf32> -> vector<8x256xf32>
    %875 = arith.mulf %873, %874 : vector<8x256xf32>
    %cst_215 = arith.constant 2.000000e+00 : f32
    %876 = vector.broadcast %cst_215 : f32 to vector<8x256xf32>
    %877 = arith.subf %876, %875 : vector<8x256xf32>
    %878 = arith.mulf %874, %877 : vector<8x256xf32>
    %879 = arith.mulf %868, %868 : vector<8x256xf32>
    %880 = arith.mulf %871, %879 : vector<8x256xf32>
    %881 = arith.mulf %880, %878 : vector<8x256xf32>
    %882 = arith.select %2, %869, %881 : vector<8x256xi1>, vector<8x256xf32>
    %cst_216 = arith.constant 3.125000e-02 : f32
    %883 = vector.broadcast %cst_216 : f32 to vector<8x256xf32>
    %884 = arith.mulf %883, %882 : vector<8x256xf32>
    %885 = arith.addf %851, %884 : vector<8x256xf32>
    %c4_i32_217 = arith.constant 4 : i32
    %886 = tpu.dynamic_rotate %885 by %c4_i32_217 dim 0 : vector<8x256xf32>, i32 -> vector<8x256xf32>
    %cst_218 = arith.constant -1.000000e-01 : f32
    %887 = vector.broadcast %cst_218 : f32 to vector<8x256xf32>
    %888 = arith.mulf %887, %886 : vector<8x256xf32>
    %889 = arith.mulf %888, %886 : vector<8x256xf32>
    %890 = arith.subf %7, %889 : vector<8x256xf32>
    %891 = tpu.reciprocal %890 {approx = true} : vector<8x256xf32> -> vector<8x256xf32>
    %892 = arith.mulf %890, %891 : vector<8x256xf32>
    %cst_219 = arith.constant 2.000000e+00 : f32
    %893 = vector.broadcast %cst_219 : f32 to vector<8x256xf32>
    %894 = arith.subf %893, %892 : vector<8x256xf32>
    %895 = arith.mulf %891, %894 : vector<8x256xf32>
    %896 = arith.mulf %885, %885 : vector<8x256xf32>
    %897 = arith.mulf %888, %896 : vector<8x256xf32>
    %898 = arith.mulf %897, %895 : vector<8x256xf32>
    %899 = arith.select %2, %886, %898 : vector<8x256xi1>, vector<8x256xf32>
    %cst_220 = arith.constant 6.250000e-02 : f32
    %900 = vector.broadcast %cst_220 : f32 to vector<8x256xf32>
    %901 = arith.mulf %900, %899 : vector<8x256xf32>
    %902 = arith.addf %851, %901 : vector<8x256xf32>
    %c4_i32_221 = arith.constant 4 : i32
    %903 = tpu.dynamic_rotate %902 by %c4_i32_221 dim 0 : vector<8x256xf32>, i32 -> vector<8x256xf32>
    %cst_222 = arith.constant -1.000000e-01 : f32
    %904 = vector.broadcast %cst_222 : f32 to vector<8x256xf32>
    %905 = arith.mulf %904, %903 : vector<8x256xf32>
    %906 = arith.mulf %905, %903 : vector<8x256xf32>
    %907 = arith.subf %7, %906 : vector<8x256xf32>
    %908 = tpu.reciprocal %907 {approx = true} : vector<8x256xf32> -> vector<8x256xf32>
    %909 = arith.mulf %907, %908 : vector<8x256xf32>
    %cst_223 = arith.constant 2.000000e+00 : f32
    %910 = vector.broadcast %cst_223 : f32 to vector<8x256xf32>
    %911 = arith.subf %910, %909 : vector<8x256xf32>
    %912 = arith.mulf %908, %911 : vector<8x256xf32>
    %913 = arith.mulf %902, %902 : vector<8x256xf32>
    %914 = arith.mulf %905, %913 : vector<8x256xf32>
    %915 = arith.mulf %914, %912 : vector<8x256xf32>
    %916 = arith.select %2, %903, %915 : vector<8x256xi1>, vector<8x256xf32>
    %cst_224 = arith.constant 2.000000e+00 : f32
    %917 = vector.broadcast %cst_224 : f32 to vector<8x256xf32>
    %918 = arith.mulf %917, %882 : vector<8x256xf32>
    %919 = arith.addf %865, %918 : vector<8x256xf32>
    %cst_225 = arith.constant 2.000000e+00 : f32
    %920 = vector.broadcast %cst_225 : f32 to vector<8x256xf32>
    %921 = arith.mulf %920, %899 : vector<8x256xf32>
    %922 = arith.addf %919, %921 : vector<8x256xf32>
    %923 = arith.addf %922, %916 : vector<8x256xf32>
    %cst_226 = arith.constant 0.010416667 : f32
    %924 = vector.broadcast %cst_226 : f32 to vector<8x256xf32>
    %925 = arith.mulf %924, %923 : vector<8x256xf32>
    %926 = arith.addf %851, %925 : vector<8x256xf32>
    %c12_i32 = arith.constant 12 : i32
    %c4_i32_227 = arith.constant 4 : i32
    %927 = tpu.dynamic_rotate %926 by %c4_i32_227 dim 0 : vector<8x256xf32>, i32 -> vector<8x256xf32>
    %cst_228 = arith.constant -1.000000e-01 : f32
    %928 = vector.broadcast %cst_228 : f32 to vector<8x256xf32>
    %929 = arith.mulf %928, %927 : vector<8x256xf32>
    %930 = arith.mulf %929, %927 : vector<8x256xf32>
    %931 = arith.subf %7, %930 : vector<8x256xf32>
    %932 = tpu.reciprocal %931 {approx = true} : vector<8x256xf32> -> vector<8x256xf32>
    %933 = arith.mulf %931, %932 : vector<8x256xf32>
    %cst_229 = arith.constant 2.000000e+00 : f32
    %934 = vector.broadcast %cst_229 : f32 to vector<8x256xf32>
    %935 = arith.subf %934, %933 : vector<8x256xf32>
    %936 = arith.mulf %932, %935 : vector<8x256xf32>
    %937 = arith.mulf %926, %926 : vector<8x256xf32>
    %938 = arith.mulf %929, %937 : vector<8x256xf32>
    %939 = arith.mulf %938, %936 : vector<8x256xf32>
    %940 = arith.select %2, %927, %939 : vector<8x256xi1>, vector<8x256xf32>
    %cst_230 = arith.constant 3.125000e-02 : f32
    %941 = vector.broadcast %cst_230 : f32 to vector<8x256xf32>
    %942 = arith.mulf %941, %940 : vector<8x256xf32>
    %943 = arith.addf %926, %942 : vector<8x256xf32>
    %c4_i32_231 = arith.constant 4 : i32
    %944 = tpu.dynamic_rotate %943 by %c4_i32_231 dim 0 : vector<8x256xf32>, i32 -> vector<8x256xf32>
    %cst_232 = arith.constant -1.000000e-01 : f32
    %945 = vector.broadcast %cst_232 : f32 to vector<8x256xf32>
    %946 = arith.mulf %945, %944 : vector<8x256xf32>
    %947 = arith.mulf %946, %944 : vector<8x256xf32>
    %948 = arith.subf %7, %947 : vector<8x256xf32>
    %949 = tpu.reciprocal %948 {approx = true} : vector<8x256xf32> -> vector<8x256xf32>
    %950 = arith.mulf %948, %949 : vector<8x256xf32>
    %cst_233 = arith.constant 2.000000e+00 : f32
    %951 = vector.broadcast %cst_233 : f32 to vector<8x256xf32>
    %952 = arith.subf %951, %950 : vector<8x256xf32>
    %953 = arith.mulf %949, %952 : vector<8x256xf32>
    %954 = arith.mulf %943, %943 : vector<8x256xf32>
    %955 = arith.mulf %946, %954 : vector<8x256xf32>
    %956 = arith.mulf %955, %953 : vector<8x256xf32>
    %957 = arith.select %2, %944, %956 : vector<8x256xi1>, vector<8x256xf32>
    %cst_234 = arith.constant 3.125000e-02 : f32
    %958 = vector.broadcast %cst_234 : f32 to vector<8x256xf32>
    %959 = arith.mulf %958, %957 : vector<8x256xf32>
    %960 = arith.addf %926, %959 : vector<8x256xf32>
    %c4_i32_235 = arith.constant 4 : i32
    %961 = tpu.dynamic_rotate %960 by %c4_i32_235 dim 0 : vector<8x256xf32>, i32 -> vector<8x256xf32>
    %cst_236 = arith.constant -1.000000e-01 : f32
    %962 = vector.broadcast %cst_236 : f32 to vector<8x256xf32>
    %963 = arith.mulf %962, %961 : vector<8x256xf32>
    %964 = arith.mulf %963, %961 : vector<8x256xf32>
    %965 = arith.subf %7, %964 : vector<8x256xf32>
    %966 = tpu.reciprocal %965 {approx = true} : vector<8x256xf32> -> vector<8x256xf32>
    %967 = arith.mulf %965, %966 : vector<8x256xf32>
    %cst_237 = arith.constant 2.000000e+00 : f32
    %968 = vector.broadcast %cst_237 : f32 to vector<8x256xf32>
    %969 = arith.subf %968, %967 : vector<8x256xf32>
    %970 = arith.mulf %966, %969 : vector<8x256xf32>
    %971 = arith.mulf %960, %960 : vector<8x256xf32>
    %972 = arith.mulf %963, %971 : vector<8x256xf32>
    %973 = arith.mulf %972, %970 : vector<8x256xf32>
    %974 = arith.select %2, %961, %973 : vector<8x256xi1>, vector<8x256xf32>
    %cst_238 = arith.constant 6.250000e-02 : f32
    %975 = vector.broadcast %cst_238 : f32 to vector<8x256xf32>
    %976 = arith.mulf %975, %974 : vector<8x256xf32>
    %977 = arith.addf %926, %976 : vector<8x256xf32>
    %c4_i32_239 = arith.constant 4 : i32
    %978 = tpu.dynamic_rotate %977 by %c4_i32_239 dim 0 : vector<8x256xf32>, i32 -> vector<8x256xf32>
    %cst_240 = arith.constant -1.000000e-01 : f32
    %979 = vector.broadcast %cst_240 : f32 to vector<8x256xf32>
    %980 = arith.mulf %979, %978 : vector<8x256xf32>
    %981 = arith.mulf %980, %978 : vector<8x256xf32>
    %982 = arith.subf %7, %981 : vector<8x256xf32>
    %983 = tpu.reciprocal %982 {approx = true} : vector<8x256xf32> -> vector<8x256xf32>
    %984 = arith.mulf %982, %983 : vector<8x256xf32>
    %cst_241 = arith.constant 2.000000e+00 : f32
    %985 = vector.broadcast %cst_241 : f32 to vector<8x256xf32>
    %986 = arith.subf %985, %984 : vector<8x256xf32>
    %987 = arith.mulf %983, %986 : vector<8x256xf32>
    %988 = arith.mulf %977, %977 : vector<8x256xf32>
    %989 = arith.mulf %980, %988 : vector<8x256xf32>
    %990 = arith.mulf %989, %987 : vector<8x256xf32>
    %991 = arith.select %2, %978, %990 : vector<8x256xi1>, vector<8x256xf32>
    %cst_242 = arith.constant 2.000000e+00 : f32
    %992 = vector.broadcast %cst_242 : f32 to vector<8x256xf32>
    %993 = arith.mulf %992, %957 : vector<8x256xf32>
    %994 = arith.addf %940, %993 : vector<8x256xf32>
    %cst_243 = arith.constant 2.000000e+00 : f32
    %995 = vector.broadcast %cst_243 : f32 to vector<8x256xf32>
    %996 = arith.mulf %995, %974 : vector<8x256xf32>
    %997 = arith.addf %994, %996 : vector<8x256xf32>
    %998 = arith.addf %997, %991 : vector<8x256xf32>
    %cst_244 = arith.constant 0.010416667 : f32
    %999 = vector.broadcast %cst_244 : f32 to vector<8x256xf32>
    %1000 = arith.mulf %999, %998 : vector<8x256xf32>
    %1001 = arith.addf %926, %1000 : vector<8x256xf32>
    %c13_i32 = arith.constant 13 : i32
    %c4_i32_245 = arith.constant 4 : i32
    %1002 = tpu.dynamic_rotate %1001 by %c4_i32_245 dim 0 : vector<8x256xf32>, i32 -> vector<8x256xf32>
    %cst_246 = arith.constant -1.000000e-01 : f32
    %1003 = vector.broadcast %cst_246 : f32 to vector<8x256xf32>
    %1004 = arith.mulf %1003, %1002 : vector<8x256xf32>
    %1005 = arith.mulf %1004, %1002 : vector<8x256xf32>
    %1006 = arith.subf %7, %1005 : vector<8x256xf32>
    %1007 = tpu.reciprocal %1006 {approx = true} : vector<8x256xf32> -> vector<8x256xf32>
    %1008 = arith.mulf %1006, %1007 : vector<8x256xf32>
    %cst_247 = arith.constant 2.000000e+00 : f32
    %1009 = vector.broadcast %cst_247 : f32 to vector<8x256xf32>
    %1010 = arith.subf %1009, %1008 : vector<8x256xf32>
    %1011 = arith.mulf %1007, %1010 : vector<8x256xf32>
    %1012 = arith.mulf %1001, %1001 : vector<8x256xf32>
    %1013 = arith.mulf %1004, %1012 : vector<8x256xf32>
    %1014 = arith.mulf %1013, %1011 : vector<8x256xf32>
    %1015 = arith.select %2, %1002, %1014 : vector<8x256xi1>, vector<8x256xf32>
    %cst_248 = arith.constant 3.125000e-02 : f32
    %1016 = vector.broadcast %cst_248 : f32 to vector<8x256xf32>
    %1017 = arith.mulf %1016, %1015 : vector<8x256xf32>
    %1018 = arith.addf %1001, %1017 : vector<8x256xf32>
    %c4_i32_249 = arith.constant 4 : i32
    %1019 = tpu.dynamic_rotate %1018 by %c4_i32_249 dim 0 : vector<8x256xf32>, i32 -> vector<8x256xf32>
    %cst_250 = arith.constant -1.000000e-01 : f32
    %1020 = vector.broadcast %cst_250 : f32 to vector<8x256xf32>
    %1021 = arith.mulf %1020, %1019 : vector<8x256xf32>
    %1022 = arith.mulf %1021, %1019 : vector<8x256xf32>
    %1023 = arith.subf %7, %1022 : vector<8x256xf32>
    %1024 = tpu.reciprocal %1023 {approx = true} : vector<8x256xf32> -> vector<8x256xf32>
    %1025 = arith.mulf %1023, %1024 : vector<8x256xf32>
    %cst_251 = arith.constant 2.000000e+00 : f32
    %1026 = vector.broadcast %cst_251 : f32 to vector<8x256xf32>
    %1027 = arith.subf %1026, %1025 : vector<8x256xf32>
    %1028 = arith.mulf %1024, %1027 : vector<8x256xf32>
    %1029 = arith.mulf %1018, %1018 : vector<8x256xf32>
    %1030 = arith.mulf %1021, %1029 : vector<8x256xf32>
    %1031 = arith.mulf %1030, %1028 : vector<8x256xf32>
    %1032 = arith.select %2, %1019, %1031 : vector<8x256xi1>, vector<8x256xf32>
    %cst_252 = arith.constant 3.125000e-02 : f32
    %1033 = vector.broadcast %cst_252 : f32 to vector<8x256xf32>
    %1034 = arith.mulf %1033, %1032 : vector<8x256xf32>
    %1035 = arith.addf %1001, %1034 : vector<8x256xf32>
    %c4_i32_253 = arith.constant 4 : i32
    %1036 = tpu.dynamic_rotate %1035 by %c4_i32_253 dim 0 : vector<8x256xf32>, i32 -> vector<8x256xf32>
    %cst_254 = arith.constant -1.000000e-01 : f32
    %1037 = vector.broadcast %cst_254 : f32 to vector<8x256xf32>
    %1038 = arith.mulf %1037, %1036 : vector<8x256xf32>
    %1039 = arith.mulf %1038, %1036 : vector<8x256xf32>
    %1040 = arith.subf %7, %1039 : vector<8x256xf32>
    %1041 = tpu.reciprocal %1040 {approx = true} : vector<8x256xf32> -> vector<8x256xf32>
    %1042 = arith.mulf %1040, %1041 : vector<8x256xf32>
    %cst_255 = arith.constant 2.000000e+00 : f32
    %1043 = vector.broadcast %cst_255 : f32 to vector<8x256xf32>
    %1044 = arith.subf %1043, %1042 : vector<8x256xf32>
    %1045 = arith.mulf %1041, %1044 : vector<8x256xf32>
    %1046 = arith.mulf %1035, %1035 : vector<8x256xf32>
    %1047 = arith.mulf %1038, %1046 : vector<8x256xf32>
    %1048 = arith.mulf %1047, %1045 : vector<8x256xf32>
    %1049 = arith.select %2, %1036, %1048 : vector<8x256xi1>, vector<8x256xf32>
    %cst_256 = arith.constant 6.250000e-02 : f32
    %1050 = vector.broadcast %cst_256 : f32 to vector<8x256xf32>
    %1051 = arith.mulf %1050, %1049 : vector<8x256xf32>
    %1052 = arith.addf %1001, %1051 : vector<8x256xf32>
    %c4_i32_257 = arith.constant 4 : i32
    %1053 = tpu.dynamic_rotate %1052 by %c4_i32_257 dim 0 : vector<8x256xf32>, i32 -> vector<8x256xf32>
    %cst_258 = arith.constant -1.000000e-01 : f32
    %1054 = vector.broadcast %cst_258 : f32 to vector<8x256xf32>
    %1055 = arith.mulf %1054, %1053 : vector<8x256xf32>
    %1056 = arith.mulf %1055, %1053 : vector<8x256xf32>
    %1057 = arith.subf %7, %1056 : vector<8x256xf32>
    %1058 = tpu.reciprocal %1057 {approx = true} : vector<8x256xf32> -> vector<8x256xf32>
    %1059 = arith.mulf %1057, %1058 : vector<8x256xf32>
    %cst_259 = arith.constant 2.000000e+00 : f32
    %1060 = vector.broadcast %cst_259 : f32 to vector<8x256xf32>
    %1061 = arith.subf %1060, %1059 : vector<8x256xf32>
    %1062 = arith.mulf %1058, %1061 : vector<8x256xf32>
    %1063 = arith.mulf %1052, %1052 : vector<8x256xf32>
    %1064 = arith.mulf %1055, %1063 : vector<8x256xf32>
    %1065 = arith.mulf %1064, %1062 : vector<8x256xf32>
    %1066 = arith.select %2, %1053, %1065 : vector<8x256xi1>, vector<8x256xf32>
    %cst_260 = arith.constant 2.000000e+00 : f32
    %1067 = vector.broadcast %cst_260 : f32 to vector<8x256xf32>
    %1068 = arith.mulf %1067, %1032 : vector<8x256xf32>
    %1069 = arith.addf %1015, %1068 : vector<8x256xf32>
    %cst_261 = arith.constant 2.000000e+00 : f32
    %1070 = vector.broadcast %cst_261 : f32 to vector<8x256xf32>
    %1071 = arith.mulf %1070, %1049 : vector<8x256xf32>
    %1072 = arith.addf %1069, %1071 : vector<8x256xf32>
    %1073 = arith.addf %1072, %1066 : vector<8x256xf32>
    %cst_262 = arith.constant 0.010416667 : f32
    %1074 = vector.broadcast %cst_262 : f32 to vector<8x256xf32>
    %1075 = arith.mulf %1074, %1073 : vector<8x256xf32>
    %1076 = arith.addf %1001, %1075 : vector<8x256xf32>
    %c14_i32 = arith.constant 14 : i32
    %c4_i32_263 = arith.constant 4 : i32
    %1077 = tpu.dynamic_rotate %1076 by %c4_i32_263 dim 0 : vector<8x256xf32>, i32 -> vector<8x256xf32>
    %cst_264 = arith.constant -1.000000e-01 : f32
    %1078 = vector.broadcast %cst_264 : f32 to vector<8x256xf32>
    %1079 = arith.mulf %1078, %1077 : vector<8x256xf32>
    %1080 = arith.mulf %1079, %1077 : vector<8x256xf32>
    %1081 = arith.subf %7, %1080 : vector<8x256xf32>
    %1082 = tpu.reciprocal %1081 {approx = true} : vector<8x256xf32> -> vector<8x256xf32>
    %1083 = arith.mulf %1081, %1082 : vector<8x256xf32>
    %cst_265 = arith.constant 2.000000e+00 : f32
    %1084 = vector.broadcast %cst_265 : f32 to vector<8x256xf32>
    %1085 = arith.subf %1084, %1083 : vector<8x256xf32>
    %1086 = arith.mulf %1082, %1085 : vector<8x256xf32>
    %1087 = arith.mulf %1076, %1076 : vector<8x256xf32>
    %1088 = arith.mulf %1079, %1087 : vector<8x256xf32>
    %1089 = arith.mulf %1088, %1086 : vector<8x256xf32>
    %1090 = arith.select %2, %1077, %1089 : vector<8x256xi1>, vector<8x256xf32>
    %cst_266 = arith.constant 3.125000e-02 : f32
    %1091 = vector.broadcast %cst_266 : f32 to vector<8x256xf32>
    %1092 = arith.mulf %1091, %1090 : vector<8x256xf32>
    %1093 = arith.addf %1076, %1092 : vector<8x256xf32>
    %c4_i32_267 = arith.constant 4 : i32
    %1094 = tpu.dynamic_rotate %1093 by %c4_i32_267 dim 0 : vector<8x256xf32>, i32 -> vector<8x256xf32>
    %cst_268 = arith.constant -1.000000e-01 : f32
    %1095 = vector.broadcast %cst_268 : f32 to vector<8x256xf32>
    %1096 = arith.mulf %1095, %1094 : vector<8x256xf32>
    %1097 = arith.mulf %1096, %1094 : vector<8x256xf32>
    %1098 = arith.subf %7, %1097 : vector<8x256xf32>
    %1099 = tpu.reciprocal %1098 {approx = true} : vector<8x256xf32> -> vector<8x256xf32>
    %1100 = arith.mulf %1098, %1099 : vector<8x256xf32>
    %cst_269 = arith.constant 2.000000e+00 : f32
    %1101 = vector.broadcast %cst_269 : f32 to vector<8x256xf32>
    %1102 = arith.subf %1101, %1100 : vector<8x256xf32>
    %1103 = arith.mulf %1099, %1102 : vector<8x256xf32>
    %1104 = arith.mulf %1093, %1093 : vector<8x256xf32>
    %1105 = arith.mulf %1096, %1104 : vector<8x256xf32>
    %1106 = arith.mulf %1105, %1103 : vector<8x256xf32>
    %1107 = arith.select %2, %1094, %1106 : vector<8x256xi1>, vector<8x256xf32>
    %cst_270 = arith.constant 3.125000e-02 : f32
    %1108 = vector.broadcast %cst_270 : f32 to vector<8x256xf32>
    %1109 = arith.mulf %1108, %1107 : vector<8x256xf32>
    %1110 = arith.addf %1076, %1109 : vector<8x256xf32>
    %c4_i32_271 = arith.constant 4 : i32
    %1111 = tpu.dynamic_rotate %1110 by %c4_i32_271 dim 0 : vector<8x256xf32>, i32 -> vector<8x256xf32>
    %cst_272 = arith.constant -1.000000e-01 : f32
    %1112 = vector.broadcast %cst_272 : f32 to vector<8x256xf32>
    %1113 = arith.mulf %1112, %1111 : vector<8x256xf32>
    %1114 = arith.mulf %1113, %1111 : vector<8x256xf32>
    %1115 = arith.subf %7, %1114 : vector<8x256xf32>
    %1116 = tpu.reciprocal %1115 {approx = true} : vector<8x256xf32> -> vector<8x256xf32>
    %1117 = arith.mulf %1115, %1116 : vector<8x256xf32>
    %cst_273 = arith.constant 2.000000e+00 : f32
    %1118 = vector.broadcast %cst_273 : f32 to vector<8x256xf32>
    %1119 = arith.subf %1118, %1117 : vector<8x256xf32>
    %1120 = arith.mulf %1116, %1119 : vector<8x256xf32>
    %1121 = arith.mulf %1110, %1110 : vector<8x256xf32>
    %1122 = arith.mulf %1113, %1121 : vector<8x256xf32>
    %1123 = arith.mulf %1122, %1120 : vector<8x256xf32>
    %1124 = arith.select %2, %1111, %1123 : vector<8x256xi1>, vector<8x256xf32>
    %cst_274 = arith.constant 6.250000e-02 : f32
    %1125 = vector.broadcast %cst_274 : f32 to vector<8x256xf32>
    %1126 = arith.mulf %1125, %1124 : vector<8x256xf32>
    %1127 = arith.addf %1076, %1126 : vector<8x256xf32>
    %c4_i32_275 = arith.constant 4 : i32
    %1128 = tpu.dynamic_rotate %1127 by %c4_i32_275 dim 0 : vector<8x256xf32>, i32 -> vector<8x256xf32>
    %cst_276 = arith.constant -1.000000e-01 : f32
    %1129 = vector.broadcast %cst_276 : f32 to vector<8x256xf32>
    %1130 = arith.mulf %1129, %1128 : vector<8x256xf32>
    %1131 = arith.mulf %1130, %1128 : vector<8x256xf32>
    %1132 = arith.subf %7, %1131 : vector<8x256xf32>
    %1133 = tpu.reciprocal %1132 {approx = true} : vector<8x256xf32> -> vector<8x256xf32>
    %1134 = arith.mulf %1132, %1133 : vector<8x256xf32>
    %cst_277 = arith.constant 2.000000e+00 : f32
    %1135 = vector.broadcast %cst_277 : f32 to vector<8x256xf32>
    %1136 = arith.subf %1135, %1134 : vector<8x256xf32>
    %1137 = arith.mulf %1133, %1136 : vector<8x256xf32>
    %1138 = arith.mulf %1127, %1127 : vector<8x256xf32>
    %1139 = arith.mulf %1130, %1138 : vector<8x256xf32>
    %1140 = arith.mulf %1139, %1137 : vector<8x256xf32>
    %1141 = arith.select %2, %1128, %1140 : vector<8x256xi1>, vector<8x256xf32>
    %cst_278 = arith.constant 2.000000e+00 : f32
    %1142 = vector.broadcast %cst_278 : f32 to vector<8x256xf32>
    %1143 = arith.mulf %1142, %1107 : vector<8x256xf32>
    %1144 = arith.addf %1090, %1143 : vector<8x256xf32>
    %cst_279 = arith.constant 2.000000e+00 : f32
    %1145 = vector.broadcast %cst_279 : f32 to vector<8x256xf32>
    %1146 = arith.mulf %1145, %1124 : vector<8x256xf32>
    %1147 = arith.addf %1144, %1146 : vector<8x256xf32>
    %1148 = arith.addf %1147, %1141 : vector<8x256xf32>
    %cst_280 = arith.constant 0.010416667 : f32
    %1149 = vector.broadcast %cst_280 : f32 to vector<8x256xf32>
    %1150 = arith.mulf %1149, %1148 : vector<8x256xf32>
    %1151 = arith.addf %1076, %1150 : vector<8x256xf32>
    %c15_i32 = arith.constant 15 : i32
    %c4_i32_281 = arith.constant 4 : i32
    %1152 = tpu.dynamic_rotate %1151 by %c4_i32_281 dim 0 : vector<8x256xf32>, i32 -> vector<8x256xf32>
    %cst_282 = arith.constant -1.000000e-01 : f32
    %1153 = vector.broadcast %cst_282 : f32 to vector<8x256xf32>
    %1154 = arith.mulf %1153, %1152 : vector<8x256xf32>
    %1155 = arith.mulf %1154, %1152 : vector<8x256xf32>
    %1156 = arith.subf %7, %1155 : vector<8x256xf32>
    %1157 = tpu.reciprocal %1156 {approx = true} : vector<8x256xf32> -> vector<8x256xf32>
    %1158 = arith.mulf %1156, %1157 : vector<8x256xf32>
    %cst_283 = arith.constant 2.000000e+00 : f32
    %1159 = vector.broadcast %cst_283 : f32 to vector<8x256xf32>
    %1160 = arith.subf %1159, %1158 : vector<8x256xf32>
    %1161 = arith.mulf %1157, %1160 : vector<8x256xf32>
    %1162 = arith.mulf %1151, %1151 : vector<8x256xf32>
    %1163 = arith.mulf %1154, %1162 : vector<8x256xf32>
    %1164 = arith.mulf %1163, %1161 : vector<8x256xf32>
    %1165 = arith.select %2, %1152, %1164 : vector<8x256xi1>, vector<8x256xf32>
    %cst_284 = arith.constant 3.125000e-02 : f32
    %1166 = vector.broadcast %cst_284 : f32 to vector<8x256xf32>
    %1167 = arith.mulf %1166, %1165 : vector<8x256xf32>
    %1168 = arith.addf %1151, %1167 : vector<8x256xf32>
    %c4_i32_285 = arith.constant 4 : i32
    %1169 = tpu.dynamic_rotate %1168 by %c4_i32_285 dim 0 : vector<8x256xf32>, i32 -> vector<8x256xf32>
    %cst_286 = arith.constant -1.000000e-01 : f32
    %1170 = vector.broadcast %cst_286 : f32 to vector<8x256xf32>
    %1171 = arith.mulf %1170, %1169 : vector<8x256xf32>
    %1172 = arith.mulf %1171, %1169 : vector<8x256xf32>
    %1173 = arith.subf %7, %1172 : vector<8x256xf32>
    %1174 = tpu.reciprocal %1173 {approx = true} : vector<8x256xf32> -> vector<8x256xf32>
    %1175 = arith.mulf %1173, %1174 : vector<8x256xf32>
    %cst_287 = arith.constant 2.000000e+00 : f32
    %1176 = vector.broadcast %cst_287 : f32 to vector<8x256xf32>
    %1177 = arith.subf %1176, %1175 : vector<8x256xf32>
    %1178 = arith.mulf %1174, %1177 : vector<8x256xf32>
    %1179 = arith.mulf %1168, %1168 : vector<8x256xf32>
    %1180 = arith.mulf %1171, %1179 : vector<8x256xf32>
    %1181 = arith.mulf %1180, %1178 : vector<8x256xf32>
    %1182 = arith.select %2, %1169, %1181 : vector<8x256xi1>, vector<8x256xf32>
    %cst_288 = arith.constant 3.125000e-02 : f32
    %1183 = vector.broadcast %cst_288 : f32 to vector<8x256xf32>
    %1184 = arith.mulf %1183, %1182 : vector<8x256xf32>
    %1185 = arith.addf %1151, %1184 : vector<8x256xf32>
    %c4_i32_289 = arith.constant 4 : i32
    %1186 = tpu.dynamic_rotate %1185 by %c4_i32_289 dim 0 : vector<8x256xf32>, i32 -> vector<8x256xf32>
    %cst_290 = arith.constant -1.000000e-01 : f32
    %1187 = vector.broadcast %cst_290 : f32 to vector<8x256xf32>
    %1188 = arith.mulf %1187, %1186 : vector<8x256xf32>
    %1189 = arith.mulf %1188, %1186 : vector<8x256xf32>
    %1190 = arith.subf %7, %1189 : vector<8x256xf32>
    %1191 = tpu.reciprocal %1190 {approx = true} : vector<8x256xf32> -> vector<8x256xf32>
    %1192 = arith.mulf %1190, %1191 : vector<8x256xf32>
    %cst_291 = arith.constant 2.000000e+00 : f32
    %1193 = vector.broadcast %cst_291 : f32 to vector<8x256xf32>
    %1194 = arith.subf %1193, %1192 : vector<8x256xf32>
    %1195 = arith.mulf %1191, %1194 : vector<8x256xf32>
    %1196 = arith.mulf %1185, %1185 : vector<8x256xf32>
    %1197 = arith.mulf %1188, %1196 : vector<8x256xf32>
    %1198 = arith.mulf %1197, %1195 : vector<8x256xf32>
    %1199 = arith.select %2, %1186, %1198 : vector<8x256xi1>, vector<8x256xf32>
    %cst_292 = arith.constant 6.250000e-02 : f32
    %1200 = vector.broadcast %cst_292 : f32 to vector<8x256xf32>
    %1201 = arith.mulf %1200, %1199 : vector<8x256xf32>
    %1202 = arith.addf %1151, %1201 : vector<8x256xf32>
    %c4_i32_293 = arith.constant 4 : i32
    %1203 = tpu.dynamic_rotate %1202 by %c4_i32_293 dim 0 : vector<8x256xf32>, i32 -> vector<8x256xf32>
    %cst_294 = arith.constant -1.000000e-01 : f32
    %1204 = vector.broadcast %cst_294 : f32 to vector<8x256xf32>
    %1205 = arith.mulf %1204, %1203 : vector<8x256xf32>
    %1206 = arith.mulf %1205, %1203 : vector<8x256xf32>
    %1207 = arith.subf %7, %1206 : vector<8x256xf32>
    %1208 = tpu.reciprocal %1207 {approx = true} : vector<8x256xf32> -> vector<8x256xf32>
    %1209 = arith.mulf %1207, %1208 : vector<8x256xf32>
    %cst_295 = arith.constant 2.000000e+00 : f32
    %1210 = vector.broadcast %cst_295 : f32 to vector<8x256xf32>
    %1211 = arith.subf %1210, %1209 : vector<8x256xf32>
    %1212 = arith.mulf %1208, %1211 : vector<8x256xf32>
    %1213 = arith.mulf %1202, %1202 : vector<8x256xf32>
    %1214 = arith.mulf %1205, %1213 : vector<8x256xf32>
    %1215 = arith.mulf %1214, %1212 : vector<8x256xf32>
    %1216 = arith.select %2, %1203, %1215 : vector<8x256xi1>, vector<8x256xf32>
    %cst_296 = arith.constant 2.000000e+00 : f32
    %1217 = vector.broadcast %cst_296 : f32 to vector<8x256xf32>
    %1218 = arith.mulf %1217, %1182 : vector<8x256xf32>
    %1219 = arith.addf %1165, %1218 : vector<8x256xf32>
    %cst_297 = arith.constant 2.000000e+00 : f32
    %1220 = vector.broadcast %cst_297 : f32 to vector<8x256xf32>
    %1221 = arith.mulf %1220, %1199 : vector<8x256xf32>
    %1222 = arith.addf %1219, %1221 : vector<8x256xf32>
    %1223 = arith.addf %1222, %1216 : vector<8x256xf32>
    %cst_298 = arith.constant 0.010416667 : f32
    %1224 = vector.broadcast %cst_298 : f32 to vector<8x256xf32>
    %1225 = arith.mulf %1224, %1223 : vector<8x256xf32>
    %1226 = arith.addf %1151, %1225 : vector<8x256xf32>
    %c0_299 = arith.constant 0 : index
    %1227 = arith.index_cast %17 : i32 to index
    %1228 = vector.load %arg3[%c0_299, %1227] : memref<8x256xf32, #tpu.memory_space<vmem>>, vector<8x256xf32>
    tpu.vector_store %arg3[%c0_299, %1227], %1226 {strides = array<i32>} : memref<8x256xf32, #tpu.memory_space<vmem>>, vector<8x256xf32>,
    %c1_i32_300 = arith.constant 1 : i32
    return
  }
  func.func @transform_0(%arg0: i32) -> (i32, i32) {
    %c0_i32 = arith.constant 0 : i32
    %c0_i32_0 = arith.constant 0 : i32
    return %c0_i32, %arg0 : i32, i32
  }
  func.func @transform_1(%arg0: i32) -> (i32, i32) {
    %c0_i32 = arith.constant 0 : i32
    %c0_i32_0 = arith.constant 0 : i32
    return %c0_i32, %arg0 : i32, i32
  }
  func.func @transform_2(%arg0: i32) -> (i32, i32) {
    %c0_i32 = arith.constant 0 : i32
    %c0_i32_0 = arith.constant 0 : i32
    return %c0_i32, %arg0 : i32, i32
  }
}

</mosaic_0001>

<llo_original>
// kernel: tpu_custom_call.1
$region0: #{tpu_custom_call.1}
  #allocation0 [shape = 'u32[]', space=smem, size = 0x4, offset = 0x4, fixed_abs, tag = 'smem constant byte address 0x4 - core index']
  #allocation1 [shape = 'u32[144,128]{1,0:T(1,128)}', space=vmem, size = 0x12000, scoped, tag = 'internal scratch']
  %s0 = inlined_call_operand.hbm [shape: f32[8,256], index: 0, kind: input, shape index: {}]
  %s1 = inlined_call_operand.hbm [shape: f32[4,256], index: 1, kind: output, shape index: {0}]
  %s2 = inlined_call_operand.hbm [shape: f32[8,256], index: 2, kind: output, shape index: {1}]
  %3 = xla_tuple %s1, %s2
  %s4 = sld [smem:[#allocation0]]
  $region26: #{tpu_custom_call.1} parent=0
    _
  %s6 = ssub.s32 1, %s4
  %s7 = scalar_select 0, %s6, %s4
  $region1: #{tpu_custom_call.1} parent=0
    #allocation2 [shape = 'u8[8192]{0}', space=vmem, size = 0x2000, scoped, tag = 'input window, operand 0, single buffered']
    #allocation3 [shape = 's32[1]{0}', space=sflag, size = 0x4, scoped, tag = 'scoped memory for tpu_custom_call.1']
    #allocation4 [shape = 's32[1]{0}', space=sflag, size = 0x4, scoped, tag = 'scoped memory for tpu_custom_call.1']
    #allocation5 [shape = 'u8[4096]{0}', space=vmem, size = 0x1000, scoped, tag = 'output window, operand 0, single buffered']
    #allocation6 [shape = 'u8[8192]{0}', space=vmem, size = 0x2000, scoped, tag = 'output window, operand 1, single buffered']
    #allocation7 [shape = 's32[1]{0}', space=sflag, size = 0x4, scoped, tag = 'scoped memory for tpu_custom_call.1']
    %8 = vsyncpa [#allocation3], 0
    %9 = vsyncpa [#allocation4], 0
    %10 = vsyncpa [#allocation7], 0
    // Predicated region
    $region2: #{tpu_custom_call.1} parent=1 // pred_check
      _
    $region3: #{tpu_custom_call.1} parent=1 // pred_check_branch
      %12 = sbr.rel (0) target = $region5
    $region4: #{tpu_custom_call.1} parent=1 // pred_region
      %s14 = ssub.s32 256, 256
      %15 = vsyncadd [#allocation3], %s14
      %s17 = sshll.u32 [#allocation2], 4
      %s18 = int_to_ptr.vmem [resolvable:$true] %s17
      %20 = dma.hbm_to_vmem [thread:$0]  %s0, 256, %s18, [#allocation3]
    $region5: #{tpu_custom_call.1} parent=1 // pred_fallthru
      _
    // Predicated region
    $region6: #{tpu_custom_call.1} parent=1 // pred_check
      _
    $region7: #{tpu_custom_call.1} parent=1 // pred_check_branch
      %22 = sbr.rel (0) target = $region9
    $region8: #{tpu_custom_call.1} parent=1 // pred_region
      %23 = dma.done [#allocation3], 256
    $region9: #{tpu_custom_call.1} parent=1 // pred_fallthru
      _
    %v24 = vlaneseq
    %v25 = vshrl.u32 %v24, 7
    %vm26 = vcmp.lt.s32.totalorder %v25, 4
    %vm27 = vcmp.eq.s32.totalorder %v25, 4
    %v28 = vsel %vm27, -1.0, 1.0
    %vm29 = vcmp.eq.s32.totalorder %v25, 0
    %v30 = vsel %vm29, -1.0, 1.0
    %v31 = vld [vmem:[#allocation2] sm:$0xff]
    %v32 = vld [vmem:[#allocation2 + $0x8] sm:$0xff]
    %v33 = vmul.f32 %v31, 0.1
    %v34 = vmul.f32 %v32, 0.1
    %v35 = vmul.f32 %v33, %v31
    %v36 = vmul.f32 %v34, %v32
    %v37 = vadd.f32 %v30, %v35
    %v38 = vadd.f32 %v30, %v36
    %v41 = vcombine.low %v37, %v38
    %43 = vst [vmem:[#allocation5] sm:$0xff] %v41
    %v44 = vrot.slane %v31, 4
    %v45 = vrot.slane %v32, 4
    %v46 = vmul.f32 %v44, -0.1
    %v47 = vmul.f32 %v45, -0.1
    %v48 = vmul.f32 %v46, %v44
    %v49 = vmul.f32 %v47, %v45
    %v50 = vsub.f32 %v28, %v48
    %v51 = vsub.f32 %v28, %v49
    %v52 = vrcp.pop %v50
    %v53 = vrcp.pop %v51
    %v54 = vmul.f32 %v50, %v52
    %v55 = vmul.f32 %v51, %v53
    %v56 = vsub.f32 2.0, %v54
    %v57 = vsub.f32 2.0, %v55
    %v58 = vmul.f32 %v52, %v56
    %v59 = vmul.f32 %v53, %v57
    %v60 = vmul.f32 %v31, %v31
    %v61 = vmul.f32 %v32, %v32
    %v62 = vmul.f32 %v46, %v60
    %v63 = vmul.f32 %v47, %v61
    %v64 = vmul.f32 %v62, %v58
    %v65 = vmul.f32 %v63, %v59
    %v66 = vsel %vm26, %v44, %v64
    %v67 = vsel %vm26, %v45, %v65
    %v68 = vmul.f32 %v66, 0.03125
    %v69 = vmul.f32 %v67, 0.03125
    %v70 = vadd.f32 %v31, %v68
    %v71 = vadd.f32 %v32, %v69
    %v72 = vrot.slane %v70, 4
    %v73 = vrot.slane %v71, 4
    %v74 = vmul.f32 %v72, -0.1
    %v75 = vmul.f32 %v73, -0.1
    %v76 = vmul.f32 %v74, %v72
    %v77 = vmul.f32 %v75, %v73
    %v78 = vsub.f32 %v28, %v76
    %v79 = vsub.f32 %v28, %v77
    %v80 = vrcp.pop %v78
    %v81 = vrcp.pop %v79
    %v82 = vmul.f32 %v78, %v80
    %v83 = vmul.f32 %v79, %v81
    %v84 = vsub.f32 2.0, %v82
    %v85 = vsub.f32 2.0, %v83
    %v86 = vmul.f32 %v80, %v84
    %v87 = vmul.f32 %v81, %v85
    %v88 = vmul.f32 %v70, %v70
    %v89 = vmul.f32 %v71, %v71
    %v90 = vmul.f32 %v74, %v88
    %v91 = vmul.f32 %v75, %v89
    %v92 = vmul.f32 %v90, %v86
    %v93 = vmul.f32 %v91, %v87
    %v94 = vsel %vm26, %v72, %v92
    %v95 = vsel %vm26, %v73, %v93
    %v96 = vmul.f32 %v94, 0.03125
    %v97 = vmul.f32 %v95, 0.03125
    %v98 = vadd.f32 %v31, %v96
    %v99 = vadd.f32 %v32, %v97
    %v100 = vrot.slane %v98, 4
    %v101 = vrot.slane %v99, 4
    %v102 = vmul.f32 %v100, -0.1
    %v103 = vmul.f32 %v101, -0.1
    %v104 = vmul.f32 %v102, %v100
    %v105 = vmul.f32 %v103, %v101
    %v106 = vsub.f32 %v28, %v104
    %v107 = vsub.f32 %v28, %v105
    %v108 = vrcp.pop %v106
    %v109 = vrcp.pop %v107
    %v110 = vmul.f32 %v106, %v108
    %v111 = vmul.f32 %v107, %v109
    %v112 = vsub.f32 2.0, %v110
    %v113 = vsub.f32 2.0, %v111
    %v114 = vmul.f32 %v108, %v112
    %v115 = vmul.f32 %v109, %v113
    %v116 = vmul.f32 %v98, %v98
    %v117 = vmul.f32 %v99, %v99
    %v118 = vmul.f32 %v102, %v116
    %v119 = vmul.f32 %v103, %v117
    %v120 = vmul.f32 %v118, %v114
    %v121 = vmul.f32 %v119, %v115
    %v122 = vsel %vm26, %v100, %v120
    %v123 = vsel %vm26, %v101, %v121
    %v124 = vmul.f32 %v122, 0.0625
    %v125 = vmul.f32 %v123, 0.0625
    %v126 = vadd.f32 %v31, %v124
    %v127 = vadd.f32 %v32, %v125
    %v128 = vrot.slane %v126, 4
    %v129 = vrot.slane %v127, 4
    %v130 = vmul.f32 %v128, -0.1
    %v131 = vmul.f32 %v129, -0.1
    %v132 = vmul.f32 %v130, %v128
    %v133 = vmul.f32 %v131, %v129
    %v134 = vsub.f32 %v28, %v132
    %v135 = vsub.f32 %v28, %v133
    %v136 = vrcp.pop %v134
    %v137 = vrcp.pop %v135
    %v138 = vmul.f32 %v134, %v136
    %v139 = vmul.f32 %v135, %v137
    %v140 = vsub.f32 2.0, %v138
    %v141 = vsub.f32 2.0, %v139
    %v142 = vmul.f32 %v136, %v140
    %v143 = vmul.f32 %v137, %v141
    %v144 = vmul.f32 %v126, %v126
    %v145 = vmul.f32 %v127, %v127
    %v146 = vmul.f32 %v130, %v144
    %v147 = vmul.f32 %v131, %v145
    %v148 = vmul.f32 %v146, %v142
    %v149 = vmul.f32 %v147, %v143
    %v150 = vsel %vm26, %v128, %v148
    %v151 = vsel %vm26, %v129, %v149
    %v152 = vmul.f32 %v94, 2.0
    %v153 = vmul.f32 %v95, 2.0
    %v154 = vadd.f32 %v66, %v152
    %v155 = vadd.f32 %v67, %v153
    %v156 = vmul.f32 %v122, 2.0
    %v157 = vmul.f32 %v123, 2.0
    %v158 = vadd.f32 %v154, %v156
    %v159 = vadd.f32 %v155, %v157
    %v160 = vadd.f32 %v158, %v150
    %v161 = vadd.f32 %v159, %v151
    %v162 = vmul.f32 %v160, 0.010416667
    %v163 = vmul.f32 %v161, 0.010416667
    %v164 = vadd.f32 %v31, %v162
    %v165 = vadd.f32 %v32, %v163
    %v166 = vrot.slane %v164, 4
    %v167 = vrot.slane %v165, 4
    %v168 = vmul.f32 %v166, -0.1
    %v169 = vmul.f32 %v167, -0.1
    %v170 = vmul.f32 %v168, %v166
    %v171 = vmul.f32 %v169, %v167
    %v172 = vsub.f32 %v28, %v170
    %v173 = vsub.f32 %v28, %v171
    %v174 = vrcp.pop %v172
    %v175 = vrcp.pop %v173
    %v176 = vmul.f32 %v172, %v174
    %v177 = vmul.f32 %v173, %v175
    %v178 = vsub.f32 2.0, %v176
    %v179 = vsub.f32 2.0, %v177
    %v180 = vmul.f32 %v174, %v178
    %v181 = vmul.f32 %v175, %v179
    %v182 = vmul.f32 %v164, %v164
    %v183 = vmul.f32 %v165, %v165
    %v184 = vmul.f32 %v168, %v182
    %v185 = vmul.f32 %v169, %v183
    %v186 = vmul.f32 %v184, %v180
    %v187 = vmul.f32 %v185, %v181
    %v188 = vsel %vm26, %v166, %v186
    %v189 = vsel %vm26, %v167, %v187
    %v190 = vmul.f32 %v188, 0.03125
    %v191 = vmul.f32 %v189, 0.03125
    %v192 = vadd.f32 %v164, %v190
    %v193 = vadd.f32 %v165, %v191
    %v194 = vrot.slane %v192, 4
    %v195 = vrot.slane %v193, 4
    %v196 = vmul.f32 %v194, -0.1
    %v197 = vmul.f32 %v195, -0.1
    %v198 = vmul.f32 %v196, %v194
    %v199 = vmul.f32 %v197, %v195
    %v200 = vsub.f32 %v28, %v198
    %v201 = vsub.f32 %v28, %v199
    %v202 = vrcp.pop %v200
    %v203 = vrcp.pop %v201
    %v204 = vmul.f32 %v200, %v202
    %v205 = vmul.f32 %v201, %v203
    %v206 = vsub.f32 2.0, %v204
    %v207 = vsub.f32 2.0, %v205
    %v208 = vmul.f32 %v202, %v206
    %v209 = vmul.f32 %v203, %v207
    %v210 = vmul.f32 %v192, %v192
    %v211 = vmul.f32 %v193, %v193
    %v212 = vmul.f32 %v196, %v210
    %v213 = vmul.f32 %v197, %v211
    %v214 = vmul.f32 %v212, %v208
    %v215 = vmul.f32 %v213, %v209
    %v216 = vsel %vm26, %v194, %v214
    %v217 = vsel %vm26, %v195, %v215
    %v218 = vmul.f32 %v216, 0.03125
    %v219 = vmul.f32 %v217, 0.03125
    %v220 = vadd.f32 %v164, %v218
    %v221 = vadd.f32 %v165, %v219
    %v222 = vrot.slane %v220, 4
    %v223 = vrot.slane %v221, 4
    %v224 = vmul.f32 %v222, -0.1
    %v225 = vmul.f32 %v223, -0.1
    %v226 = vmul.f32 %v224, %v222
    %v227 = vmul.f32 %v225, %v223
    %v228 = vsub.f32 %v28, %v226
    %v229 = vsub.f32 %v28, %v227
    %v230 = vrcp.pop %v228
    %v231 = vrcp.pop %v229
    %v232 = vmul.f32 %v228, %v230
    %v233 = vmul.f32 %v229, %v231
    %v234 = vsub.f32 2.0, %v232
    %v235 = vsub.f32 2.0, %v233
    %v236 = vmul.f32 %v230, %v234
    %v237 = vmul.f32 %v231, %v235
    %v238 = vmul.f32 %v220, %v220
    %v239 = vmul.f32 %v221, %v221
    %v240 = vmul.f32 %v224, %v238
    %v241 = vmul.f32 %v225, %v239
    %v242 = vmul.f32 %v240, %v236
    %v243 = vmul.f32 %v241, %v237
    %v244 = vsel %vm26, %v222, %v242
    %v245 = vsel %vm26, %v223, %v243
    %v246 = vmul.f32 %v244, 0.0625
    %v247 = vmul.f32 %v245, 0.0625
    %v248 = vadd.f32 %v164, %v246
    %v249 = vadd.f32 %v165, %v247
    %v250 = vrot.slane %v248, 4
    %v251 = vrot.slane %v249, 4
    %v252 = vmul.f32 %v250, -0.1
    %v253 = vmul.f32 %v251, -0.1
    %v254 = vmul.f32 %v252, %v250
    %v255 = vmul.f32 %v253, %v251
    %v256 = vsub.f32 %v28, %v254
    %v257 = vsub.f32 %v28, %v255
    %v258 = vrcp.pop %v256
    %v259 = vrcp.pop %v257
    %v260 = vmul.f32 %v256, %v258
    %v261 = vmul.f32 %v257, %v259
    %v262 = vsub.f32 2.0, %v260
    %v263 = vsub.f32 2.0, %v261
    %v264 = vmul.f32 %v258, %v262
    %v265 = vmul.f32 %v259, %v263
    %v266 = vmul.f32 %v248, %v248
    %v267 = vmul.f32 %v249, %v249
    %v268 = vmul.f32 %v252, %v266
    %v269 = vmul.f32 %v253, %v267
    %v270 = vmul.f32 %v268, %v264
    %v271 = vmul.f32 %v269, %v265
    %v272 = vsel %vm26, %v250, %v270
    %v273 = vsel %vm26, %v251, %v271
    %v274 = vmul.f32 %v216, 2.0
    %v275 = vmul.f32 %v217, 2.0
    %v276 = vadd.f32 %v188, %v274
    %v277 = vadd.f32 %v189, %v275
    %v278 = vmul.f32 %v244, 2.0
    %v279 = vmul.f32 %v245, 2.0
    %v280 = vadd.f32 %v276, %v278
    %v281 = vadd.f32 %v277, %v279
    %v282 = vadd.f32 %v280, %v272
    %v283 = vadd.f32 %v281, %v273
    %v284 = vmul.f32 %v282, 0.010416667
    %v285 = vmul.f32 %v283, 0.010416667
    %v286 = vadd.f32 %v164, %v284
    %v287 = vadd.f32 %v165, %v285
    %v288 = vrot.slane %v286, 4
    %v289 = vrot.slane %v287, 4
    %v290 = vmul.f32 %v288, -0.1
    %v291 = vmul.f32 %v289, -0.1
    %v292 = vmul.f32 %v290, %v288
    %v293 = vmul.f32 %v291, %v289
    %v294 = vsub.f32 %v28, %v292
    %v295 = vsub.f32 %v28, %v293
    %v296 = vrcp.pop %v294
    %v297 = vrcp.pop %v295
    %v298 = vmul.f32 %v294, %v296
    %v299 = vmul.f32 %v295, %v297
    %v300 = vsub.f32 2.0, %v298
    %v301 = vsub.f32 2.0, %v299
    %v302 = vmul.f32 %v296, %v300
    %v303 = vmul.f32 %v297, %v301
    %v304 = vmul.f32 %v286, %v286
    %v305 = vmul.f32 %v287, %v287
    %v306 = vmul.f32 %v290, %v304
    %v307 = vmul.f32 %v291, %v305
    %v308 = vmul.f32 %v306, %v302
    %v309 = vmul.f32 %v307, %v303
    %v310 = vsel %vm26, %v288, %v308
    %v311 = vsel %vm26, %v289, %v309
    %v312 = vmul.f32 %v310, 0.03125
    %v313 = vmul.f32 %v311, 0.03125
    %v314 = vadd.f32 %v286, %v312
    %v315 = vadd.f32 %v287, %v313
    %v316 = vrot.slane %v314, 4
    %v317 = vrot.slane %v315, 4
    %v318 = vmul.f32 %v316, -0.1
    %v319 = vmul.f32 %v317, -0.1
    %v320 = vmul.f32 %v318, %v316
    %v321 = vmul.f32 %v319, %v317
    %v322 = vsub.f32 %v28, %v320
    %v323 = vsub.f32 %v28, %v321
    %v324 = vrcp.pop %v322
    %v325 = vrcp.pop %v323
    %v326 = vmul.f32 %v322, %v324
    %v327 = vmul.f32 %v323, %v325
    %v328 = vsub.f32 2.0, %v326
    %v329 = vsub.f32 2.0, %v327
    %v330 = vmul.f32 %v324, %v328
    %v331 = vmul.f32 %v325, %v329
    %v332 = vmul.f32 %v314, %v314
    %v333 = vmul.f32 %v315, %v315
    %v334 = vmul.f32 %v318, %v332
    %v335 = vmul.f32 %v319, %v333
    %v336 = vmul.f32 %v334, %v330
    %v337 = vmul.f32 %v335, %v331
    %v338 = vsel %vm26, %v316, %v336
    %v339 = vsel %vm26, %v317, %v337
    %v340 = vmul.f32 %v338, 0.03125
    %v341 = vmul.f32 %v339, 0.03125
    %v342 = vadd.f32 %v286, %v340
    %v343 = vadd.f32 %v287, %v341
    %v344 = vrot.slane %v342, 4
    %v345 = vrot.slane %v343, 4
    %v346 = vmul.f32 %v344, -0.1
    %v347 = vmul.f32 %v345, -0.1
    %v348 = vmul.f32 %v346, %v344
    %v349 = vmul.f32 %v347, %v345
    %v350 = vsub.f32 %v28, %v348
    %v351 = vsub.f32 %v28, %v349
    %v352 = vrcp.pop %v350
    %v353 = vrcp.pop %v351
    %v354 = vmul.f32 %v350, %v352
    %v355 = vmul.f32 %v351, %v353
    %v356 = vsub.f32 2.0, %v354
    %v357 = vsub.f32 2.0, %v355
    %v358 = vmul.f32 %v352, %v356
    %v359 = vmul.f32 %v353, %v357
    %v360 = vmul.f32 %v342, %v342
    %v361 = vmul.f32 %v343, %v343
    %v362 = vmul.f32 %v346, %v360
    %v363 = vmul.f32 %v347, %v361
    %v364 = vmul.f32 %v362, %v358
    %v365 = vmul.f32 %v363, %v359
    %v366 = vsel %vm26, %v344, %v364
    %v367 = vsel %vm26, %v345, %v365
    %v368 = vmul.f32 %v366, 0.0625
    %v369 = vmul.f32 %v367, 0.0625
    %v370 = vadd.f32 %v286, %v368
    %v371 = vadd.f32 %v287, %v369
    %v372 = vrot.slane %v370, 4
    %v373 = vrot.slane %v371, 4
    %v374 = vmul.f32 %v372, -0.1
    %v375 = vmul.f32 %v373, -0.1
    %v376 = vmul.f32 %v374, %v372
    %v377 = vmul.f32 %v375, %v373
    %v378 = vsub.f32 %v28, %v376
    %v379 = vsub.f32 %v28, %v377
    %v380 = vrcp.pop %v378
    %v381 = vrcp.pop %v379
    %v382 = vmul.f32 %v378, %v380
    %v383 = vmul.f32 %v379, %v381
    %v384 = vsub.f32 2.0, %v382
    %v385 = vsub.f32 2.0, %v383
    %v386 = vmul.f32 %v380, %v384
    %v387 = vmul.f32 %v381, %v385
    %v388 = vmul.f32 %v370, %v370
    %v389 = vmul.f32 %v371, %v371
    %v390 = vmul.f32 %v374, %v388
    %v391 = vmul.f32 %v375, %v389
    %v392 = vmul.f32 %v390, %v386
    %v393 = vmul.f32 %v391, %v387
    %v394 = vsel %vm26, %v372, %v392
    %v395 = vsel %vm26, %v373, %v393
    %v396 = vmul.f32 %v338, 2.0
    %v397 = vmul.f32 %v339, 2.0
    %v398 = vadd.f32 %v310, %v396
    %v399 = vadd.f32 %v311, %v397
    %v400 = vmul.f32 %v366, 2.0
    %v401 = vmul.f32 %v367, 2.0
    %v402 = vadd.f32 %v398, %v400
    %v403 = vadd.f32 %v399, %v401
    %v404 = vadd.f32 %v402, %v394
    %v405 = vadd.f32 %v403, %v395
    %v406 = vmul.f32 %v404, 0.010416667
    %v407 = vmul.f32 %v405, 0.010416667
    %v408 = vadd.f32 %v286, %v406
    %v409 = vadd.f32 %v287, %v407
    %v410 = vrot.slane %v408, 4
    %v411 = vrot.slane %v409, 4
    %v412 = vmul.f32 %v410, -0.1
    %v413 = vmul.f32 %v411, -0.1
    %v414 = vmul.f32 %v412, %v410
    %v415 = vmul.f32 %v413, %v411
    %v416 = vsub.f32 %v28, %v414
    %v417 = vsub.f32 %v28, %v415
    %v418 = vrcp.pop %v416
    %v419 = vrcp.pop %v417
    %v420 = vmul.f32 %v416, %v418
    %v421 = vmul.f32 %v417, %v419
    %v422 = vsub.f32 2.0, %v420
    %v423 = vsub.f32 2.0, %v421
    %v424 = vmul.f32 %v418, %v422
    %v425 = vmul.f32 %v419, %v423
    %v426 = vmul.f32 %v408, %v408
    %v427 = vmul.f32 %v409, %v409
    %v428 = vmul.f32 %v412, %v426
    %v429 = vmul.f32 %v413, %v427
    %v430 = vmul.f32 %v428, %v424
    %v431 = vmul.f32 %v429, %v425
    %v432 = vsel %vm26, %v410, %v430
    %v433 = vsel %vm26, %v411, %v431
    %v434 = vmul.f32 %v432, 0.03125
    %v435 = vmul.f32 %v433, 0.03125
    %v436 = vadd.f32 %v408, %v434
    %v437 = vadd.f32 %v409, %v435
    %v438 = vrot.slane %v436, 4
    %v439 = vrot.slane %v437, 4
    %v440 = vmul.f32 %v438, -0.1
    %v441 = vmul.f32 %v439, -0.1
    %v442 = vmul.f32 %v440, %v438
    %v443 = vmul.f32 %v441, %v439
    %v444 = vsub.f32 %v28, %v442
    %v445 = vsub.f32 %v28, %v443
    %v446 = vrcp.pop %v444
    %v447 = vrcp.pop %v445
    %v448 = vmul.f32 %v444, %v446
    %v449 = vmul.f32 %v445, %v447
    %v450 = vsub.f32 2.0, %v448
    %v451 = vsub.f32 2.0, %v449
    %v452 = vmul.f32 %v446, %v450
    %v453 = vmul.f32 %v447, %v451
    %v454 = vmul.f32 %v436, %v436
    %v455 = vmul.f32 %v437, %v437
    %v456 = vmul.f32 %v440, %v454
    %v457 = vmul.f32 %v441, %v455
    %v458 = vmul.f32 %v456, %v452
    %v459 = vmul.f32 %v457, %v453
    %v460 = vsel %vm26, %v438, %v458
    %v461 = vsel %vm26, %v439, %v459
    %v462 = vmul.f32 %v460, 0.03125
    %v463 = vmul.f32 %v461, 0.03125
    %v464 = vadd.f32 %v408, %v462
    %v465 = vadd.f32 %v409, %v463
    %v466 = vrot.slane %v464, 4
    %v467 = vrot.slane %v465, 4
    %v468 = vmul.f32 %v466, -0.1
    %v469 = vmul.f32 %v467, -0.1
    %v470 = vmul.f32 %v468, %v466
    %v471 = vmul.f32 %v469, %v467
    %v472 = vsub.f32 %v28, %v470
    %v473 = vsub.f32 %v28, %v471
    %v474 = vrcp.pop %v472
    %v475 = vrcp.pop %v473
    %v476 = vmul.f32 %v472, %v474
    %v477 = vmul.f32 %v473, %v475
    %v478 = vsub.f32 2.0, %v476
    %v479 = vsub.f32 2.0, %v477
    %v480 = vmul.f32 %v474, %v478
    %v481 = vmul.f32 %v475, %v479
    %v482 = vmul.f32 %v464, %v464
    %v483 = vmul.f32 %v465, %v465
    %v484 = vmul.f32 %v468, %v482
    %v485 = vmul.f32 %v469, %v483
    %v486 = vmul.f32 %v484, %v480
    %v487 = vmul.f32 %v485, %v481
    %v488 = vsel %vm26, %v466, %v486
    %v489 = vsel %vm26, %v467, %v487
    %v490 = vmul.f32 %v488, 0.0625
    %v491 = vmul.f32 %v489, 0.0625
    %v492 = vadd.f32 %v408, %v490
    %v493 = vadd.f32 %v409, %v491
    %v494 = vrot.slane %v492, 4
    %v495 = vrot.slane %v493, 4
    %v496 = vmul.f32 %v494, -0.1
    %v497 = vmul.f32 %v495, -0.1
    %v498 = vmul.f32 %v496, %v494
    %v499 = vmul.f32 %v497, %v495
    %v500 = vsub.f32 %v28, %v498
    %v501 = vsub.f32 %v28, %v499
    %v502 = vrcp.pop %v500
    %v503 = vrcp.pop %v501
    %v504 = vmul.f32 %v500, %v502
    %v505 = vmul.f32 %v501, %v503
    %v506 = vsub.f32 2.0, %v504
    %v507 = vsub.f32 2.0, %v505
    %v508 = vmul.f32 %v502, %v506
    %v509 = vmul.f32 %v503, %v507
    %v510 = vmul.f32 %v492, %v492
    %v511 = vmul.f32 %v493, %v493
    %v512 = vmul.f32 %v496, %v510
    %v513 = vmul.f32 %v497, %v511
    %v514 = vmul.f32 %v512, %v508
    %v515 = vmul.f32 %v513, %v509
    %v516 = vsel %vm26, %v494, %v514
    %v517 = vsel %vm26, %v495, %v515
    %v518 = vmul.f32 %v460, 2.0
    %v519 = vmul.f32 %v461, 2.0
    %v520 = vadd.f32 %v432, %v518
    %v521 = vadd.f32 %v433, %v519
    %v522 = vmul.f32 %v488, 2.0
    %v523 = vmul.f32 %v489, 2.0
    %v524 = vadd.f32 %v520, %v522
    %v525 = vadd.f32 %v521, %v523
    %v526 = vadd.f32 %v524, %v516
    %v527 = vadd.f32 %v525, %v517
    %v528 = vmul.f32 %v526, 0.010416667
    %v529 = vmul.f32 %v527, 0.010416667
    %v530 = vadd.f32 %v408, %v528
    %v531 = vadd.f32 %v409, %v529
    %v532 = vrot.slane %v530, 4
    %v533 = vrot.slane %v531, 4
    %v534 = vmul.f32 %v532, -0.1
    %v535 = vmul.f32 %v533, -0.1
    %v536 = vmul.f32 %v534, %v532
    %v537 = vmul.f32 %v535, %v533
    %v538 = vsub.f32 %v28, %v536
    %v539 = vsub.f32 %v28, %v537
    %v540 = vrcp.pop %v538
    %v541 = vrcp.pop %v539
    %v542 = vmul.f32 %v538, %v540
    %v543 = vmul.f32 %v539, %v541
    %v544 = vsub.f32 2.0, %v542
    %v545 = vsub.f32 2.0, %v543
    %v546 = vmul.f32 %v540, %v544
    %v547 = vmul.f32 %v541, %v545
    %v548 = vmul.f32 %v530, %v530
    %v549 = vmul.f32 %v531, %v531
    %v550 = vmul.f32 %v534, %v548
    %v551 = vmul.f32 %v535, %v549
    %v552 = vmul.f32 %v550, %v546
    %v553 = vmul.f32 %v551, %v547
    %v554 = vsel %vm26, %v532, %v552
    %v555 = vsel %vm26, %v533, %v553
    %v556 = vmul.f32 %v554, 0.03125
    %v557 = vmul.f32 %v555, 0.03125
    %v558 = vadd.f32 %v530, %v556
    %v559 = vadd.f32 %v531, %v557
    %v560 = vrot.slane %v558, 4
    %v561 = vrot.slane %v559, 4
    %v562 = vmul.f32 %v560, -0.1
    %v563 = vmul.f32 %v561, -0.1
    %v564 = vmul.f32 %v562, %v560
    %v565 = vmul.f32 %v563, %v561
    %v566 = vsub.f32 %v28, %v564
    %v567 = vsub.f32 %v28, %v565
    %v568 = vrcp.pop %v566
    %v569 = vrcp.pop %v567
    %v570 = vmul.f32 %v566, %v568
    %v571 = vmul.f32 %v567, %v569
    %v572 = vsub.f32 2.0, %v570
    %v573 = vsub.f32 2.0, %v571
    %v574 = vmul.f32 %v568, %v572
    %v575 = vmul.f32 %v569, %v573
    %v576 = vmul.f32 %v558, %v558
    %v577 = vmul.f32 %v559, %v559
    %v578 = vmul.f32 %v562, %v576
    %v579 = vmul.f32 %v563, %v577
    %v580 = vmul.f32 %v578, %v574
    %v581 = vmul.f32 %v579, %v575
    %v582 = vsel %vm26, %v560, %v580
    %v583 = vsel %vm26, %v561, %v581
    %v584 = vmul.f32 %v582, 0.03125
    %v585 = vmul.f32 %v583, 0.03125
    %v586 = vadd.f32 %v530, %v584
    %v587 = vadd.f32 %v531, %v585
    %v588 = vrot.slane %v586, 4
    %v589 = vrot.slane %v587, 4
    %v590 = vmul.f32 %v588, -0.1
    %v591 = vmul.f32 %v589, -0.1
    %v592 = vmul.f32 %v590, %v588
    %v593 = vmul.f32 %v591, %v589
    %v594 = vsub.f32 %v28, %v592
    %v595 = vsub.f32 %v28, %v593
    %v596 = vrcp.pop %v594
    %v597 = vrcp.pop %v595
    %v598 = vmul.f32 %v594, %v596
    %v599 = vmul.f32 %v595, %v597
    %v600 = vsub.f32 2.0, %v598
    %v601 = vsub.f32 2.0, %v599
    %v602 = vmul.f32 %v596, %v600
    %v603 = vmul.f32 %v597, %v601
    %v604 = vmul.f32 %v586, %v586
    %v605 = vmul.f32 %v587, %v587
    %v606 = vmul.f32 %v590, %v604
    %v607 = vmul.f32 %v591, %v605
    %v608 = vmul.f32 %v606, %v602
    %v609 = vmul.f32 %v607, %v603
    %v610 = vsel %vm26, %v588, %v608
    %v611 = vsel %vm26, %v589, %v609
    %v612 = vmul.f32 %v610, 0.0625
    %v613 = vmul.f32 %v611, 0.0625
    %v614 = vadd.f32 %v530, %v612
    %v615 = vadd.f32 %v531, %v613
    %v616 = vrot.slane %v614, 4
    %v617 = vrot.slane %v615, 4
    %v618 = vmul.f32 %v616, -0.1
    %v619 = vmul.f32 %v617, -0.1
    %v620 = vmul.f32 %v618, %v616
    %v621 = vmul.f32 %v619, %v617
    %v622 = vsub.f32 %v28, %v620
    %v623 = vsub.f32 %v28, %v621
    %v624 = vrcp.pop %v622
    %v625 = vrcp.pop %v623
    %v626 = vmul.f32 %v622, %v624
    %v627 = vmul.f32 %v623, %v625
    %v628 = vsub.f32 2.0, %v626
    %v629 = vsub.f32 2.0, %v627
    %v630 = vmul.f32 %v624, %v628
    %v631 = vmul.f32 %v625, %v629
    %v632 = vmul.f32 %v614, %v614
    %v633 = vmul.f32 %v615, %v615
    %v634 = vmul.f32 %v618, %v632
    %v635 = vmul.f32 %v619, %v633
    %v636 = vmul.f32 %v634, %v630
    %v637 = vmul.f32 %v635, %v631
    %v638 = vsel %vm26, %v616, %v636
    %v639 = vsel %vm26, %v617, %v637
    %v640 = vmul.f32 %v582, 2.0
    %v641 = vmul.f32 %v583, 2.0
    %v642 = vadd.f32 %v554, %v640
    %v643 = vadd.f32 %v555, %v641
    %v644 = vmul.f32 %v610, 2.0
    %v645 = vmul.f32 %v611, 2.0
    %v646 = vadd.f32 %v642, %v644
    %v647 = vadd.f32 %v643, %v645
    %v648 = vadd.f32 %v646, %v638
    %v649 = vadd.f32 %v647, %v639
    %v650 = vmul.f32 %v648, 0.010416667
    %v651 = vmul.f32 %v649, 0.010416667
    %v652 = vadd.f32 %v530, %v650
    %v653 = vadd.f32 %v531, %v651
    %v654 = vrot.slane %v652, 4
    %v655 = vrot.slane %v653, 4
    %v656 = vmul.f32 %v654, -0.1
    %v657 = vmul.f32 %v655, -0.1
    %v658 = vmul.f32 %v656, %v654
    %v659 = vmul.f32 %v657, %v655
    %v660 = vsub.f32 %v28, %v658
    %v661 = vsub.f32 %v28, %v659
    %v662 = vrcp.pop %v660
    %v663 = vrcp.pop %v661
    %v664 = vmul.f32 %v660, %v662
    %v665 = vmul.f32 %v661, %v663
    %v666 = vsub.f32 2.0, %v664
    %v667 = vsub.f32 2.0, %v665
    %v668 = vmul.f32 %v662, %v666
    %v669 = vmul.f32 %v663, %v667
    %v670 = vmul.f32 %v652, %v652
    %v671 = vmul.f32 %v653, %v653
    %v672 = vmul.f32 %v656, %v670
    %v673 = vmul.f32 %v657, %v671
    %v674 = vmul.f32 %v672, %v668
    %v675 = vmul.f32 %v673, %v669
    %v676 = vsel %vm26, %v654, %v674
    %v677 = vsel %vm26, %v655, %v675
    %v678 = vmul.f32 %v676, 0.03125
    %v679 = vmul.f32 %v677, 0.03125
    %v680 = vadd.f32 %v652, %v678
    %v681 = vadd.f32 %v653, %v679
    %v682 = vrot.slane %v680, 4
    %v683 = vrot.slane %v681, 4
    %v684 = vmul.f32 %v682, -0.1
    %v685 = vmul.f32 %v683, -0.1
    %v686 = vmul.f32 %v684, %v682
    %v687 = vmul.f32 %v685, %v683
    %v688 = vsub.f32 %v28, %v686
    %v689 = vsub.f32 %v28, %v687
    %v690 = vrcp.pop %v688
    %v691 = vrcp.pop %v689
    %v692 = vmul.f32 %v688, %v690
    %v693 = vmul.f32 %v689, %v691
    %v694 = vsub.f32 2.0, %v692
    %v695 = vsub.f32 2.0, %v693
    %v696 = vmul.f32 %v690, %v694
    %v697 = vmul.f32 %v691, %v695
    %v698 = vmul.f32 %v680, %v680
    %v699 = vmul.f32 %v681, %v681
    %v700 = vmul.f32 %v684, %v698
    %v701 = vmul.f32 %v685, %v699
    %v702 = vmul.f32 %v700, %v696
    %v703 = vmul.f32 %v701, %v697
    %v704 = vsel %vm26, %v682, %v702
    %v705 = vsel %vm26, %v683, %v703
    %v706 = vmul.f32 %v704, 0.03125
    %v707 = vmul.f32 %v705, 0.03125
    %v708 = vadd.f32 %v652, %v706
    %v709 = vadd.f32 %v653, %v707
    %v710 = vrot.slane %v708, 4
    %v711 = vrot.slane %v709, 4
    %v712 = vmul.f32 %v710, -0.1
    %v713 = vmul.f32 %v711, -0.1
    %v714 = vmul.f32 %v712, %v710
    %v715 = vmul.f32 %v713, %v711
    %v716 = vsub.f32 %v28, %v714
    %v717 = vsub.f32 %v28, %v715
    %v718 = vrcp.pop %v716
    %v719 = vrcp.pop %v717
    %v720 = vmul.f32 %v716, %v718
    %v721 = vmul.f32 %v717, %v719
    %v722 = vsub.f32 2.0, %v720
    %v723 = vsub.f32 2.0, %v721
    %v724 = vmul.f32 %v718, %v722
    %v725 = vmul.f32 %v719, %v723
    %v726 = vmul.f32 %v708, %v708
    %v727 = vmul.f32 %v709, %v709
    %v728 = vmul.f32 %v712, %v726
    %v729 = vmul.f32 %v713, %v727
    %v730 = vmul.f32 %v728, %v724
    %v731 = vmul.f32 %v729, %v725
    %v732 = vsel %vm26, %v710, %v730
    %v733 = vsel %vm26, %v711, %v731
    %v734 = vmul.f32 %v732, 0.0625
    %v735 = vmul.f32 %v733, 0.0625
    %v736 = vadd.f32 %v652, %v734
    %v737 = vadd.f32 %v653, %v735
    %v738 = vrot.slane %v736, 4
    %v739 = vrot.slane %v737, 4
    %v740 = vmul.f32 %v738, -0.1
    %v741 = vmul.f32 %v739, -0.1
    %v742 = vmul.f32 %v740, %v738
    %v743 = vmul.f32 %v741, %v739
    %v744 = vsub.f32 %v28, %v742
    %v745 = vsub.f32 %v28, %v743
    %v746 = vrcp.pop %v744
    %v747 = vrcp.pop %v745
    %v748 = vmul.f32 %v744, %v746
    %v749 = vmul.f32 %v745, %v747
    %v750 = vsub.f32 2.0, %v748
    %v751 = vsub.f32 2.0, %v749
    %v752 = vmul.f32 %v746, %v750
    %v753 = vmul.f32 %v747, %v751
    %v754 = vmul.f32 %v736, %v736
    %v755 = vmul.f32 %v737, %v737
    %v756 = vmul.f32 %v740, %v754
    %v757 = vmul.f32 %v741, %v755
    %v758 = vmul.f32 %v756, %v752
    %v759 = vmul.f32 %v757, %v753
    %v760 = vsel %vm26, %v738, %v758
    %v761 = vsel %vm26, %v739, %v759
    %v762 = vmul.f32 %v704, 2.0
    %v763 = vmul.f32 %v705, 2.0
    %v764 = vadd.f32 %v676, %v762
    %v765 = vadd.f32 %v677, %v763
    %v766 = vmul.f32 %v732, 2.0
    %v767 = vmul.f32 %v733, 2.0
    %v768 = vadd.f32 %v764, %v766
    %v769 = vadd.f32 %v765, %v767
    %v770 = vadd.f32 %v768, %v760
    %v771 = vadd.f32 %v769, %v761
    %v772 = vmul.f32 %v770, 0.010416667
    %v773 = vmul.f32 %v771, 0.010416667
    %v774 = vadd.f32 %v652, %v772
    %v775 = vadd.f32 %v653, %v773
    %v776 = vrot.slane %v774, 4
    %v777 = vrot.slane %v775, 4
    %v778 = vmul.f32 %v776, -0.1
    %v779 = vmul.f32 %v777, -0.1
    %v780 = vmul.f32 %v778, %v776
    %v781 = vmul.f32 %v779, %v777
    %v782 = vsub.f32 %v28, %v780
    %v783 = vsub.f32 %v28, %v781
    %v784 = vrcp.pop %v782
    %v785 = vrcp.pop %v783
    %v786 = vmul.f32 %v782, %v784
    %v787 = vmul.f32 %v783, %v785
    %v788 = vsub.f32 2.0, %v786
    %v789 = vsub.f32 2.0, %v787
    %v790 = vmul.f32 %v784, %v788
    %v791 = vmul.f32 %v785, %v789
    %v792 = vmul.f32 %v774, %v774
    %v793 = vmul.f32 %v775, %v775
    %v794 = vmul.f32 %v778, %v792
    %v795 = vmul.f32 %v779, %v793
    %v796 = vmul.f32 %v794, %v790
    %v797 = vmul.f32 %v795, %v791
    %v798 = vsel %vm26, %v776, %v796
    %v799 = vsel %vm26, %v777, %v797
    %v800 = vmul.f32 %v798, 0.03125
    %v801 = vmul.f32 %v799, 0.03125
    %v802 = vadd.f32 %v774, %v800
    %v803 = vadd.f32 %v775, %v801
    %v804 = vrot.slane %v802, 4
    %v805 = vrot.slane %v803, 4
    %v806 = vmul.f32 %v804, -0.1
    %v807 = vmul.f32 %v805, -0.1
    %v808 = vmul.f32 %v806, %v804
    %v809 = vmul.f32 %v807, %v805
    %v810 = vsub.f32 %v28, %v808
    %v811 = vsub.f32 %v28, %v809
    %v812 = vrcp.pop %v810
    %v813 = vrcp.pop %v811
    %v814 = vmul.f32 %v810, %v812
    %v815 = vmul.f32 %v811, %v813
    %v816 = vsub.f32 2.0, %v814
    %v817 = vsub.f32 2.0, %v815
    %v818 = vmul.f32 %v812, %v816
    %v819 = vmul.f32 %v813, %v817
    %v820 = vmul.f32 %v802, %v802
    %v821 = vmul.f32 %v803, %v803
    %v822 = vmul.f32 %v806, %v820
    %v823 = vmul.f32 %v807, %v821
    %v824 = vmul.f32 %v822, %v818
    %v825 = vmul.f32 %v823, %v819
    %v826 = vsel %vm26, %v804, %v824
    %v827 = vsel %vm26, %v805, %v825
    %v828 = vmul.f32 %v826, 0.03125
    %v829 = vmul.f32 %v827, 0.03125
    %v830 = vadd.f32 %v774, %v828
    %v831 = vadd.f32 %v775, %v829
    %v832 = vrot.slane %v830, 4
    %v833 = vrot.slane %v831, 4
    %v834 = vmul.f32 %v832, -0.1
    %v835 = vmul.f32 %v833, -0.1
    %v836 = vmul.f32 %v834, %v832
    %v837 = vmul.f32 %v835, %v833
    %v838 = vsub.f32 %v28, %v836
    %v839 = vsub.f32 %v28, %v837
    %v840 = vrcp.pop %v838
    %v841 = vrcp.pop %v839
    %v842 = vmul.f32 %v838, %v840
    %v843 = vmul.f32 %v839, %v841
    %v844 = vsub.f32 2.0, %v842
    %v845 = vsub.f32 2.0, %v843
    %v846 = vmul.f32 %v840, %v844
    %v847 = vmul.f32 %v841, %v845
    %v848 = vmul.f32 %v830, %v830
    %v849 = vmul.f32 %v831, %v831
    %v850 = vmul.f32 %v834, %v848
    %v851 = vmul.f32 %v835, %v849
    %v852 = vmul.f32 %v850, %v846
    %v853 = vmul.f32 %v851, %v847
    %v854 = vsel %vm26, %v832, %v852
    %v855 = vsel %vm26, %v833, %v853
    %v856 = vmul.f32 %v854, 0.0625
    %v857 = vmul.f32 %v855, 0.0625
    %v858 = vadd.f32 %v774, %v856
    %v859 = vadd.f32 %v775, %v857
    %v860 = vrot.slane %v858, 4
    %v861 = vrot.slane %v859, 4
    %v862 = vmul.f32 %v860, -0.1
    %v863 = vmul.f32 %v861, -0.1
    %v864 = vmul.f32 %v862, %v860
    %v865 = vmul.f32 %v863, %v861
    %v866 = vsub.f32 %v28, %v864
    %v867 = vsub.f32 %v28, %v865
    %v868 = vrcp.pop %v866
    %v869 = vrcp.pop %v867
    %v870 = vmul.f32 %v866, %v868
    %v871 = vmul.f32 %v867, %v869
    %v872 = vsub.f32 2.0, %v870
    %v873 = vsub.f32 2.0, %v871
    %v874 = vmul.f32 %v868, %v872
    %v875 = vmul.f32 %v869, %v873
    %v876 = vmul.f32 %v858, %v858
    %v877 = vmul.f32 %v859, %v859
    %v878 = vmul.f32 %v862, %v876
    %v879 = vmul.f32 %v863, %v877
    %v880 = vmul.f32 %v878, %v874
    %v881 = vmul.f32 %v879, %v875
    %v882 = vsel %vm26, %v860, %v880
    %v883 = vsel %vm26, %v861, %v881
    %v884 = vmul.f32 %v826, 2.0
    %v885 = vmul.f32 %v827, 2.0
    %v886 = vadd.f32 %v798, %v884
    %v887 = vadd.f32 %v799, %v885
    %v888 = vmul.f32 %v854, 2.0
    %v889 = vmul.f32 %v855, 2.0
    %v890 = vadd.f32 %v886, %v888
    %v891 = vadd.f32 %v887, %v889
    %v892 = vadd.f32 %v890, %v882
    %v893 = vadd.f32 %v891, %v883
    %v894 = vmul.f32 %v892, 0.010416667
    %v895 = vmul.f32 %v893, 0.010416667
    %v896 = vadd.f32 %v774, %v894
    %v897 = vadd.f32 %v775, %v895
    %v898 = vrot.slane %v896, 4
    %v899 = vrot.slane %v897, 4
    %v900 = vmul.f32 %v898, -0.1
    %v901 = vmul.f32 %v899, -0.1
    %v902 = vmul.f32 %v900, %v898
    %v903 = vmul.f32 %v901, %v899
    %v904 = vsub.f32 %v28, %v902
    %v905 = vsub.f32 %v28, %v903
    %v906 = vrcp.pop %v904
    %v907 = vrcp.pop %v905
    %v908 = vmul.f32 %v904, %v906
    %v909 = vmul.f32 %v905, %v907
    %v910 = vsub.f32 2.0, %v908
    %v911 = vsub.f32 2.0, %v909
    %v912 = vmul.f32 %v906, %v910
    %v913 = vmul.f32 %v907, %v911
    %v914 = vmul.f32 %v896, %v896
    %v915 = vmul.f32 %v897, %v897
    %v916 = vmul.f32 %v900, %v914
    %v917 = vmul.f32 %v901, %v915
    %v918 = vmul.f32 %v916, %v912
    %v919 = vmul.f32 %v917, %v913
    %v920 = vsel %vm26, %v898, %v918
    %v921 = vsel %vm26, %v899, %v919
    %v922 = vmul.f32 %v920, 0.03125
    %v923 = vmul.f32 %v921, 0.03125
    %v924 = vadd.f32 %v896, %v922
    %v925 = vadd.f32 %v897, %v923
    %v926 = vrot.slane %v924, 4
    %v927 = vrot.slane %v925, 4
    %v928 = vmul.f32 %v926, -0.1
    %v929 = vmul.f32 %v927, -0.1
    %v930 = vmul.f32 %v928, %v926
    %v931 = vmul.f32 %v929, %v927
    %v932 = vsub.f32 %v28, %v930
    %v933 = vsub.f32 %v28, %v931
    %v934 = vrcp.pop %v932
    %v935 = vrcp.pop %v933
    %v936 = vmul.f32 %v932, %v934
    %v937 = vmul.f32 %v933, %v935
    %v938 = vsub.f32 2.0, %v936
    %v939 = vsub.f32 2.0, %v937
    %v940 = vmul.f32 %v934, %v938
    %v941 = vmul.f32 %v935, %v939
    %v942 = vmul.f32 %v924, %v924
    %v943 = vmul.f32 %v925, %v925
    %v944 = vmul.f32 %v928, %v942
    %v945 = vmul.f32 %v929, %v943
    %v946 = vmul.f32 %v944, %v940
    %v947 = vmul.f32 %v945, %v941
    %v948 = vsel %vm26, %v926, %v946
    %v949 = vsel %vm26, %v927, %v947
    %v950 = vmul.f32 %v948, 0.03125
    %v951 = vmul.f32 %v949, 0.03125
    %v952 = vadd.f32 %v896, %v950
    %v953 = vadd.f32 %v897, %v951
    %v954 = vrot.slane %v952, 4
    %v955 = vrot.slane %v953, 4
    %v956 = vmul.f32 %v954, -0.1
    %v957 = vmul.f32 %v955, -0.1
    %v958 = vmul.f32 %v956, %v954
    %v959 = vmul.f32 %v957, %v955
    %v960 = vsub.f32 %v28, %v958
    %v961 = vsub.f32 %v28, %v959
    %v962 = vrcp.pop %v960
    %v963 = vrcp.pop %v961
    %v964 = vmul.f32 %v960, %v962
    %v965 = vmul.f32 %v961, %v963
    %v966 = vsub.f32 2.0, %v964
    %v967 = vsub.f32 2.0, %v965
    %v968 = vmul.f32 %v962, %v966
    %v969 = vmul.f32 %v963, %v967
    %v970 = vmul.f32 %v952, %v952
    %v971 = vmul.f32 %v953, %v953
    %v972 = vmul.f32 %v956, %v970
    %v973 = vmul.f32 %v957, %v971
    %v974 = vmul.f32 %v972, %v968
    %v975 = vmul.f32 %v973, %v969
    %v976 = vsel %vm26, %v954, %v974
    %v977 = vsel %vm26, %v955, %v975
    %v978 = vmul.f32 %v976, 0.0625
    %v979 = vmul.f32 %v977, 0.0625
    %v980 = vadd.f32 %v896, %v978
    %v981 = vadd.f32 %v897, %v979
    %v982 = vrot.slane %v980, 4
    %v983 = vrot.slane %v981, 4
    %v984 = vmul.f32 %v982, -0.1
    %v985 = vmul.f32 %v983, -0.1
    %v986 = vmul.f32 %v984, %v982
    %v987 = vmul.f32 %v985, %v983
    %v988 = vsub.f32 %v28, %v986
    %v989 = vsub.f32 %v28, %v987
    %v990 = vrcp.pop %v988
    %v991 = vrcp.pop %v989
    %v992 = vmul.f32 %v988, %v990
    %v993 = vmul.f32 %v989, %v991
    %v994 = vsub.f32 2.0, %v992
    %v995 = vsub.f32 2.0, %v993
    %v996 = vmul.f32 %v990, %v994
    %v997 = vmul.f32 %v991, %v995
    %v998 = vmul.f32 %v980, %v980
    %v999 = vmul.f32 %v981, %v981
    %v1000 = vmul.f32 %v984, %v998
    %v1001 = vmul.f32 %v985, %v999
    %v1002 = vmul.f32 %v1000, %v996
    %v1003 = vmul.f32 %v1001, %v997
    %v1004 = vsel %vm26, %v982, %v1002
    %v1005 = vsel %vm26, %v983, %v1003
    %v1006 = vmul.f32 %v948, 2.0
    %v1007 = vmul.f32 %v949, 2.0
    %v1008 = vadd.f32 %v920, %v1006
    %v1009 = vadd.f32 %v921, %v1007
    %v1010 = vmul.f32 %v976, 2.0
    %v1011 = vmul.f32 %v977, 2.0
    %v1012 = vadd.f32 %v1008, %v1010
    %v1013 = vadd.f32 %v1009, %v1011
    %v1014 = vadd.f32 %v1012, %v1004
    %v1015 = vadd.f32 %v1013, %v1005
    %v1016 = vmul.f32 %v1014, 0.010416667
    %v1017 = vmul.f32 %v1015, 0.010416667
    %v1018 = vadd.f32 %v896, %v1016
    %v1019 = vadd.f32 %v897, %v1017
    %v1020 = vrot.slane %v1018, 4
    %v1021 = vrot.slane %v1019, 4
    %v1022 = vmul.f32 %v1020, -0.1
    %v1023 = vmul.f32 %v1021, -0.1
    %v1024 = vmul.f32 %v1022, %v1020
    %v1025 = vmul.f32 %v1023, %v1021
    %v1026 = vsub.f32 %v28, %v1024
    %v1027 = vsub.f32 %v28, %v1025
    %v1028 = vrcp.pop %v1026
    %v1029 = vrcp.pop %v1027
    %v1030 = vmul.f32 %v1026, %v1028
    %v1031 = vmul.f32 %v1027, %v1029
    %v1032 = vsub.f32 2.0, %v1030
    %v1033 = vsub.f32 2.0, %v1031
    %v1034 = vmul.f32 %v1028, %v1032
    %v1035 = vmul.f32 %v1029, %v1033
    %v1036 = vmul.f32 %v1018, %v1018
    %v1037 = vmul.f32 %v1019, %v1019
    %v1038 = vmul.f32 %v1022, %v1036
    %v1039 = vmul.f32 %v1023, %v1037
    %v1040 = vmul.f32 %v1038, %v1034
    %v1041 = vmul.f32 %v1039, %v1035
    %v1042 = vsel %vm26, %v1020, %v1040
    %v1043 = vsel %vm26, %v1021, %v1041
    %v1044 = vmul.f32 %v1042, 0.03125
    %v1045 = vmul.f32 %v1043, 0.03125
    %v1046 = vadd.f32 %v1018, %v1044
    %v1047 = vadd.f32 %v1019, %v1045
    %v1048 = vrot.slane %v1046, 4
    %v1049 = vrot.slane %v1047, 4
    %v1050 = vmul.f32 %v1048, -0.1
    %v1051 = vmul.f32 %v1049, -0.1
    %v1052 = vmul.f32 %v1050, %v1048
    %v1053 = vmul.f32 %v1051, %v1049
    %v1054 = vsub.f32 %v28, %v1052
    %v1055 = vsub.f32 %v28, %v1053
    %v1056 = vrcp.pop %v1054
    %v1057 = vrcp.pop %v1055
    %v1058 = vmul.f32 %v1054, %v1056
    %v1059 = vmul.f32 %v1055, %v1057
    %v1060 = vsub.f32 2.0, %v1058
    %v1061 = vsub.f32 2.0, %v1059
    %v1062 = vmul.f32 %v1056, %v1060
    %v1063 = vmul.f32 %v1057, %v1061
    %v1064 = vmul.f32 %v1046, %v1046
    %v1065 = vmul.f32 %v1047, %v1047
    %v1066 = vmul.f32 %v1050, %v1064
    %v1067 = vmul.f32 %v1051, %v1065
    %v1068 = vmul.f32 %v1066, %v1062
    %v1069 = vmul.f32 %v1067, %v1063
    %v1070 = vsel %vm26, %v1048, %v1068
    %v1071 = vsel %vm26, %v1049, %v1069
    %v1072 = vmul.f32 %v1070, 0.03125
    %v1073 = vmul.f32 %v1071, 0.03125
    %v1074 = vadd.f32 %v1018, %v1072
    %v1075 = vadd.f32 %v1019, %v1073
    %v1076 = vrot.slane %v1074, 4
    %v1077 = vrot.slane %v1075, 4
    %v1078 = vmul.f32 %v1076, -0.1
    %v1079 = vmul.f32 %v1077, -0.1
    %v1080 = vmul.f32 %v1078, %v1076
    %v1081 = vmul.f32 %v1079, %v1077
    %v1082 = vsub.f32 %v28, %v1080
    %v1083 = vsub.f32 %v28, %v1081
    %v1084 = vrcp.pop %v1082
    %v1085 = vrcp.pop %v1083
    %v1086 = vmul.f32 %v1082, %v1084
    %v1087 = vmul.f32 %v1083, %v1085
    %v1088 = vsub.f32 2.0, %v1086
    %v1089 = vsub.f32 2.0, %v1087
    %v1090 = vmul.f32 %v1084, %v1088
    %v1091 = vmul.f32 %v1085, %v1089
    %v1092 = vmul.f32 %v1074, %v1074
    %v1093 = vmul.f32 %v1075, %v1075
    %v1094 = vmul.f32 %v1078, %v1092
    %v1095 = vmul.f32 %v1079, %v1093
    %v1096 = vmul.f32 %v1094, %v1090
    %v1097 = vmul.f32 %v1095, %v1091
    %v1098 = vsel %vm26, %v1076, %v1096
    %v1099 = vsel %vm26, %v1077, %v1097
    %v1100 = vmul.f32 %v1098, 0.0625
    %v1101 = vmul.f32 %v1099, 0.0625
    %v1102 = vadd.f32 %v1018, %v1100
    %v1103 = vadd.f32 %v1019, %v1101
    %v1104 = vrot.slane %v1102, 4
    %v1105 = vrot.slane %v1103, 4
    %v1106 = vmul.f32 %v1104, -0.1
    %v1107 = vmul.f32 %v1105, -0.1
    %v1108 = vmul.f32 %v1106, %v1104
    %v1109 = vmul.f32 %v1107, %v1105
    %v1110 = vsub.f32 %v28, %v1108
    %v1111 = vsub.f32 %v28, %v1109
    %v1112 = vrcp.pop %v1110
    %v1113 = vrcp.pop %v1111
    %v1114 = vmul.f32 %v1110, %v1112
    %v1115 = vmul.f32 %v1111, %v1113
    %v1116 = vsub.f32 2.0, %v1114
    %v1117 = vsub.f32 2.0, %v1115
    %v1118 = vmul.f32 %v1112, %v1116
    %v1119 = vmul.f32 %v1113, %v1117
    %v1120 = vmul.f32 %v1102, %v1102
    %v1121 = vmul.f32 %v1103, %v1103
    %v1122 = vmul.f32 %v1106, %v1120
    %v1123 = vmul.f32 %v1107, %v1121
    %v1124 = vmul.f32 %v1122, %v1118
    %v1125 = vmul.f32 %v1123, %v1119
    %v1126 = vsel %vm26, %v1104, %v1124
    %v1127 = vsel %vm26, %v1105, %v1125
    %v1128 = vmul.f32 %v1070, 2.0
    %v1129 = vmul.f32 %v1071, 2.0
    %v1130 = vadd.f32 %v1042, %v1128
    %v1131 = vadd.f32 %v1043, %v1129
    %v1132 = vmul.f32 %v1098, 2.0
    %v1133 = vmul.f32 %v1099, 2.0
    %v1134 = vadd.f32 %v1130, %v1132
    %v1135 = vadd.f32 %v1131, %v1133
    %v1136 = vadd.f32 %v1134, %v1126
    %v1137 = vadd.f32 %v1135, %v1127
    %v1138 = vmul.f32 %v1136, 0.010416667
    %v1139 = vmul.f32 %v1137, 0.010416667
    %v1140 = vadd.f32 %v1018, %v1138
    %v1141 = vadd.f32 %v1019, %v1139
    %v1142 = vrot.slane %v1140, 4
    %v1143 = vrot.slane %v1141, 4
    %v1144 = vmul.f32 %v1142, -0.1
    %v1145 = vmul.f32 %v1143, -0.1
    %v1146 = vmul.f32 %v1144, %v1142
    %v1147 = vmul.f32 %v1145, %v1143
    %v1148 = vsub.f32 %v28, %v1146
    %v1149 = vsub.f32 %v28, %v1147
    %v1150 = vrcp.pop %v1148
    %v1151 = vrcp.pop %v1149
    %v1152 = vmul.f32 %v1148, %v1150
    %v1153 = vmul.f32 %v1149, %v1151
    %v1154 = vsub.f32 2.0, %v1152
    %v1155 = vsub.f32 2.0, %v1153
    %v1156 = vmul.f32 %v1150, %v1154
    %v1157 = vmul.f32 %v1151, %v1155
    %v1158 = vmul.f32 %v1140, %v1140
    %v1159 = vmul.f32 %v1141, %v1141
    %v1160 = vmul.f32 %v1144, %v1158
    %v1161 = vmul.f32 %v1145, %v1159
    %v1162 = vmul.f32 %v1160, %v1156
    %v1163 = vmul.f32 %v1161, %v1157
    %v1164 = vsel %vm26, %v1142, %v1162
    %v1165 = vsel %vm26, %v1143, %v1163
    %v1166 = vmul.f32 %v1164, 0.03125
    %v1167 = vmul.f32 %v1165, 0.03125
    %v1168 = vadd.f32 %v1140, %v1166
    %v1169 = vadd.f32 %v1141, %v1167
    %v1170 = vrot.slane %v1168, 4
    %v1171 = vrot.slane %v1169, 4
    %v1172 = vmul.f32 %v1170, -0.1
    %v1173 = vmul.f32 %v1171, -0.1
    %v1174 = vmul.f32 %v1172, %v1170
    %v1175 = vmul.f32 %v1173, %v1171
    %v1176 = vsub.f32 %v28, %v1174
    %v1177 = vsub.f32 %v28, %v1175
    %v1178 = vrcp.pop %v1176
    %v1179 = vrcp.pop %v1177
    %v1180 = vmul.f32 %v1176, %v1178
    %v1181 = vmul.f32 %v1177, %v1179
    %v1182 = vsub.f32 2.0, %v1180
    %v1183 = vsub.f32 2.0, %v1181
    %v1184 = vmul.f32 %v1178, %v1182
    %v1185 = vmul.f32 %v1179, %v1183
    %v1186 = vmul.f32 %v1168, %v1168
    %v1187 = vmul.f32 %v1169, %v1169
    %v1188 = vmul.f32 %v1172, %v1186
    %v1189 = vmul.f32 %v1173, %v1187
    %v1190 = vmul.f32 %v1188, %v1184
    %v1191 = vmul.f32 %v1189, %v1185
    %v1192 = vsel %vm26, %v1170, %v1190
    %v1193 = vsel %vm26, %v1171, %v1191
    %v1194 = vmul.f32 %v1192, 0.03125
    %v1195 = vmul.f32 %v1193, 0.03125
    %v1196 = vadd.f32 %v1140, %v1194
    %v1197 = vadd.f32 %v1141, %v1195
    %v1198 = vrot.slane %v1196, 4
    %v1199 = vrot.slane %v1197, 4
    %v1200 = vmul.f32 %v1198, -0.1
    %v1201 = vmul.f32 %v1199, -0.1
    %v1202 = vmul.f32 %v1200, %v1198
    %v1203 = vmul.f32 %v1201, %v1199
    %v1204 = vsub.f32 %v28, %v1202
    %v1205 = vsub.f32 %v28, %v1203
    %v1206 = vrcp.pop %v1204
    %v1207 = vrcp.pop %v1205
    %v1208 = vmul.f32 %v1204, %v1206
    %v1209 = vmul.f32 %v1205, %v1207
    %v1210 = vsub.f32 2.0, %v1208
    %v1211 = vsub.f32 2.0, %v1209
    %v1212 = vmul.f32 %v1206, %v1210
    %v1213 = vmul.f32 %v1207, %v1211
    %v1214 = vmul.f32 %v1196, %v1196
    %v1215 = vmul.f32 %v1197, %v1197
    %v1216 = vmul.f32 %v1200, %v1214
    %v1217 = vmul.f32 %v1201, %v1215
    %v1218 = vmul.f32 %v1216, %v1212
    %v1219 = vmul.f32 %v1217, %v1213
    %v1220 = vsel %vm26, %v1198, %v1218
    %v1221 = vsel %vm26, %v1199, %v1219
    %v1222 = vmul.f32 %v1220, 0.0625
    %v1223 = vmul.f32 %v1221, 0.0625
    %v1224 = vadd.f32 %v1140, %v1222
    %v1225 = vadd.f32 %v1141, %v1223
    %v1226 = vrot.slane %v1224, 4
    %v1227 = vrot.slane %v1225, 4
    %v1228 = vmul.f32 %v1226, -0.1
    %v1229 = vmul.f32 %v1227, -0.1
    %v1230 = vmul.f32 %v1228, %v1226
    %v1231 = vmul.f32 %v1229, %v1227
    %v1232 = vsub.f32 %v28, %v1230
    %v1233 = vsub.f32 %v28, %v1231
    %v1234 = vrcp.pop %v1232
    %v1235 = vrcp.pop %v1233
    %v1236 = vmul.f32 %v1232, %v1234
    %v1237 = vmul.f32 %v1233, %v1235
    %v1238 = vsub.f32 2.0, %v1236
    %v1239 = vsub.f32 2.0, %v1237
    %v1240 = vmul.f32 %v1234, %v1238
    %v1241 = vmul.f32 %v1235, %v1239
    %v1242 = vmul.f32 %v1224, %v1224
    %v1243 = vmul.f32 %v1225, %v1225
    %v1244 = vmul.f32 %v1228, %v1242
    %v1245 = vmul.f32 %v1229, %v1243
    %v1246 = vmul.f32 %v1244, %v1240
    %v1247 = vmul.f32 %v1245, %v1241
    %v1248 = vsel %vm26, %v1226, %v1246
    %v1249 = vsel %vm26, %v1227, %v1247
    %v1250 = vmul.f32 %v1192, 2.0
    %v1251 = vmul.f32 %v1193, 2.0
    %v1252 = vadd.f32 %v1164, %v1250
    %v1253 = vadd.f32 %v1165, %v1251
    %v1254 = vmul.f32 %v1220, 2.0
    %v1255 = vmul.f32 %v1221, 2.0
    %v1256 = vadd.f32 %v1252, %v1254
    %v1257 = vadd.f32 %v1253, %v1255
    %v1258 = vadd.f32 %v1256, %v1248
    %v1259 = vadd.f32 %v1257, %v1249
    %v1260 = vmul.f32 %v1258, 0.010416667
    %v1261 = vmul.f32 %v1259, 0.010416667
    %v1262 = vadd.f32 %v1140, %v1260
    %v1263 = vadd.f32 %v1141, %v1261
    %v1264 = vrot.slane %v1262, 4
    %v1265 = vrot.slane %v1263, 4
    %v1266 = vmul.f32 %v1264, -0.1
    %v1267 = vmul.f32 %v1265, -0.1
    %v1268 = vmul.f32 %v1266, %v1264
    %v1269 = vmul.f32 %v1267, %v1265
    %v1270 = vsub.f32 %v28, %v1268
    %v1271 = vsub.f32 %v28, %v1269
    %v1272 = vrcp.pop %v1270
    %v1273 = vrcp.pop %v1271
    %v1274 = vmul.f32 %v1270, %v1272
    %v1275 = vmul.f32 %v1271, %v1273
    %v1276 = vsub.f32 2.0, %v1274
    %v1277 = vsub.f32 2.0, %v1275
    %v1278 = vmul.f32 %v1272, %v1276
    %v1279 = vmul.f32 %v1273, %v1277
    %v1280 = vmul.f32 %v1262, %v1262
    %v1281 = vmul.f32 %v1263, %v1263
    %v1282 = vmul.f32 %v1266, %v1280
    %v1283 = vmul.f32 %v1267, %v1281
    %v1284 = vmul.f32 %v1282, %v1278
    %v1285 = vmul.f32 %v1283, %v1279
    %v1286 = vsel %vm26, %v1264, %v1284
    %v1287 = vsel %vm26, %v1265, %v1285
    %v1288 = vmul.f32 %v1286, 0.03125
    %v1289 = vmul.f32 %v1287, 0.03125
    %v1290 = vadd.f32 %v1262, %v1288
    %v1291 = vadd.f32 %v1263, %v1289
    %v1292 = vrot.slane %v1290, 4
    %v1293 = vrot.slane %v1291, 4
    %v1294 = vmul.f32 %v1292, -0.1
    %v1295 = vmul.f32 %v1293, -0.1
    %v1296 = vmul.f32 %v1294, %v1292
    %v1297 = vmul.f32 %v1295, %v1293
    %v1298 = vsub.f32 %v28, %v1296
    %v1299 = vsub.f32 %v28, %v1297
    %v1300 = vrcp.pop %v1298
    %v1301 = vrcp.pop %v1299
    %v1302 = vmul.f32 %v1298, %v1300
    %v1303 = vmul.f32 %v1299, %v1301
    %v1304 = vsub.f32 2.0, %v1302
    %v1305 = vsub.f32 2.0, %v1303
    %v1306 = vmul.f32 %v1300, %v1304
    %v1307 = vmul.f32 %v1301, %v1305
    %v1308 = vmul.f32 %v1290, %v1290
    %v1309 = vmul.f32 %v1291, %v1291
    %v1310 = vmul.f32 %v1294, %v1308
    %v1311 = vmul.f32 %v1295, %v1309
    %v1312 = vmul.f32 %v1310, %v1306
    %v1313 = vmul.f32 %v1311, %v1307
    %v1314 = vsel %vm26, %v1292, %v1312
    %v1315 = vsel %vm26, %v1293, %v1313
    %v1316 = vmul.f32 %v1314, 0.03125
    %v1317 = vmul.f32 %v1315, 0.03125
    %v1318 = vadd.f32 %v1262, %v1316
    %v1319 = vadd.f32 %v1263, %v1317
    %v1320 = vrot.slane %v1318, 4
    %v1321 = vrot.slane %v1319, 4
    %v1322 = vmul.f32 %v1320, -0.1
    %v1323 = vmul.f32 %v1321, -0.1
    %v1324 = vmul.f32 %v1322, %v1320
    %v1325 = vmul.f32 %v1323, %v1321
    %v1326 = vsub.f32 %v28, %v1324
    %v1327 = vsub.f32 %v28, %v1325
    %v1328 = vrcp.pop %v1326
    %v1329 = vrcp.pop %v1327
    %v1330 = vmul.f32 %v1326, %v1328
    %v1331 = vmul.f32 %v1327, %v1329
    %v1332 = vsub.f32 2.0, %v1330
    %v1333 = vsub.f32 2.0, %v1331
    %v1334 = vmul.f32 %v1328, %v1332
    %v1335 = vmul.f32 %v1329, %v1333
    %v1336 = vmul.f32 %v1318, %v1318
    %v1337 = vmul.f32 %v1319, %v1319
    %v1338 = vmul.f32 %v1322, %v1336
    %v1339 = vmul.f32 %v1323, %v1337
    %v1340 = vmul.f32 %v1338, %v1334
    %v1341 = vmul.f32 %v1339, %v1335
    %v1342 = vsel %vm26, %v1320, %v1340
    %v1343 = vsel %vm26, %v1321, %v1341
    %v1344 = vmul.f32 %v1342, 0.0625
    %v1345 = vmul.f32 %v1343, 0.0625
    %v1346 = vadd.f32 %v1262, %v1344
    %v1347 = vadd.f32 %v1263, %v1345
    %v1348 = vrot.slane %v1346, 4
    %v1349 = vrot.slane %v1347, 4
    %v1350 = vmul.f32 %v1348, -0.1
    %v1351 = vmul.f32 %v1349, -0.1
    %v1352 = vmul.f32 %v1350, %v1348
    %v1353 = vmul.f32 %v1351, %v1349
    %v1354 = vsub.f32 %v28, %v1352
    %v1355 = vsub.f32 %v28, %v1353
    %v1356 = vrcp.pop %v1354
    %v1357 = vrcp.pop %v1355
    %v1358 = vmul.f32 %v1354, %v1356
    %v1359 = vmul.f32 %v1355, %v1357
    %v1360 = vsub.f32 2.0, %v1358
    %v1361 = vsub.f32 2.0, %v1359
    %v1362 = vmul.f32 %v1356, %v1360
    %v1363 = vmul.f32 %v1357, %v1361
    %v1364 = vmul.f32 %v1346, %v1346
    %v1365 = vmul.f32 %v1347, %v1347
    %v1366 = vmul.f32 %v1350, %v1364
    %v1367 = vmul.f32 %v1351, %v1365
    %v1368 = vmul.f32 %v1366, %v1362
    %v1369 = vmul.f32 %v1367, %v1363
    %v1370 = vsel %vm26, %v1348, %v1368
    %v1371 = vsel %vm26, %v1349, %v1369
    %v1372 = vmul.f32 %v1314, 2.0
    %v1373 = vmul.f32 %v1315, 2.0
    %v1374 = vadd.f32 %v1286, %v1372
    %v1375 = vadd.f32 %v1287, %v1373
    %v1376 = vmul.f32 %v1342, 2.0
    %v1377 = vmul.f32 %v1343, 2.0
    %v1378 = vadd.f32 %v1374, %v1376
    %v1379 = vadd.f32 %v1375, %v1377
    %v1380 = vadd.f32 %v1378, %v1370
    %v1381 = vadd.f32 %v1379, %v1371
    %v1382 = vmul.f32 %v1380, 0.010416667
    %v1383 = vmul.f32 %v1381, 0.010416667
    %v1384 = vadd.f32 %v1262, %v1382
    %v1385 = vadd.f32 %v1263, %v1383
    %v1386 = vrot.slane %v1384, 4
    %v1387 = vrot.slane %v1385, 4
    %v1388 = vmul.f32 %v1386, -0.1
    %v1389 = vmul.f32 %v1387, -0.1
    %v1390 = vmul.f32 %v1388, %v1386
    %v1391 = vmul.f32 %v1389, %v1387
    %v1392 = vsub.f32 %v28, %v1390
    %v1393 = vsub.f32 %v28, %v1391
    %v1394 = vrcp.pop %v1392
    %v1395 = vrcp.pop %v1393
    %v1396 = vmul.f32 %v1392, %v1394
    %v1397 = vmul.f32 %v1393, %v1395
    %v1398 = vsub.f32 2.0, %v1396
    %v1399 = vsub.f32 2.0, %v1397
    %v1400 = vmul.f32 %v1394, %v1398
    %v1401 = vmul.f32 %v1395, %v1399
    %v1402 = vmul.f32 %v1384, %v1384
    %v1403 = vmul.f32 %v1385, %v1385
    %v1404 = vmul.f32 %v1388, %v1402
    %v1405 = vmul.f32 %v1389, %v1403
    %v1406 = vmul.f32 %v1404, %v1400
    %v1407 = vmul.f32 %v1405, %v1401
    %v1408 = vsel %vm26, %v1386, %v1406
    %v1409 = vsel %vm26, %v1387, %v1407
    %v1410 = vmul.f32 %v1408, 0.03125
    %v1411 = vmul.f32 %v1409, 0.03125
    %v1412 = vadd.f32 %v1384, %v1410
    %v1413 = vadd.f32 %v1385, %v1411
    %v1414 = vrot.slane %v1412, 4
    %v1415 = vrot.slane %v1413, 4
    %v1416 = vmul.f32 %v1414, -0.1
    %v1417 = vmul.f32 %v1415, -0.1
    %v1418 = vmul.f32 %v1416, %v1414
    %v1419 = vmul.f32 %v1417, %v1415
    %v1420 = vsub.f32 %v28, %v1418
    %v1421 = vsub.f32 %v28, %v1419
    %v1422 = vrcp.pop %v1420
    %v1423 = vrcp.pop %v1421
    %v1424 = vmul.f32 %v1420, %v1422
    %v1425 = vmul.f32 %v1421, %v1423
    %v1426 = vsub.f32 2.0, %v1424
    %v1427 = vsub.f32 2.0, %v1425
    %v1428 = vmul.f32 %v1422, %v1426
    %v1429 = vmul.f32 %v1423, %v1427
    %v1430 = vmul.f32 %v1412, %v1412
    %v1431 = vmul.f32 %v1413, %v1413
    %v1432 = vmul.f32 %v1416, %v1430
    %v1433 = vmul.f32 %v1417, %v1431
    %v1434 = vmul.f32 %v1432, %v1428
    %v1435 = vmul.f32 %v1433, %v1429
    %v1436 = vsel %vm26, %v1414, %v1434
    %v1437 = vsel %vm26, %v1415, %v1435
    %v1438 = vmul.f32 %v1436, 0.03125
    %v1439 = vmul.f32 %v1437, 0.03125
    %v1440 = vadd.f32 %v1384, %v1438
    %v1441 = vadd.f32 %v1385, %v1439
    %v1442 = vrot.slane %v1440, 4
    %v1443 = vrot.slane %v1441, 4
    %v1444 = vmul.f32 %v1442, -0.1
    %v1445 = vmul.f32 %v1443, -0.1
    %v1446 = vmul.f32 %v1444, %v1442
    %v1447 = vmul.f32 %v1445, %v1443
    %v1448 = vsub.f32 %v28, %v1446
    %v1449 = vsub.f32 %v28, %v1447
    %v1450 = vrcp.pop %v1448
    %v1451 = vrcp.pop %v1449
    %v1452 = vmul.f32 %v1448, %v1450
    %v1453 = vmul.f32 %v1449, %v1451
    %v1454 = vsub.f32 2.0, %v1452
    %v1455 = vsub.f32 2.0, %v1453
    %v1456 = vmul.f32 %v1450, %v1454
    %v1457 = vmul.f32 %v1451, %v1455
    %v1458 = vmul.f32 %v1440, %v1440
    %v1459 = vmul.f32 %v1441, %v1441
    %v1460 = vmul.f32 %v1444, %v1458
    %v1461 = vmul.f32 %v1445, %v1459
    %v1462 = vmul.f32 %v1460, %v1456
    %v1463 = vmul.f32 %v1461, %v1457
    %v1464 = vsel %vm26, %v1442, %v1462
    %v1465 = vsel %vm26, %v1443, %v1463
    %v1466 = vmul.f32 %v1464, 0.0625
    %v1467 = vmul.f32 %v1465, 0.0625
    %v1468 = vadd.f32 %v1384, %v1466
    %v1469 = vadd.f32 %v1385, %v1467
    %v1470 = vrot.slane %v1468, 4
    %v1471 = vrot.slane %v1469, 4
    %v1472 = vmul.f32 %v1470, -0.1
    %v1473 = vmul.f32 %v1471, -0.1
    %v1474 = vmul.f32 %v1472, %v1470
    %v1475 = vmul.f32 %v1473, %v1471
    %v1476 = vsub.f32 %v28, %v1474
    %v1477 = vsub.f32 %v28, %v1475
    %v1478 = vrcp.pop %v1476
    %v1479 = vrcp.pop %v1477
    %v1480 = vmul.f32 %v1476, %v1478
    %v1481 = vmul.f32 %v1477, %v1479
    %v1482 = vsub.f32 2.0, %v1480
    %v1483 = vsub.f32 2.0, %v1481
    %v1484 = vmul.f32 %v1478, %v1482
    %v1485 = vmul.f32 %v1479, %v1483
    %v1486 = vmul.f32 %v1468, %v1468
    %v1487 = vmul.f32 %v1469, %v1469
    %v1488 = vmul.f32 %v1472, %v1486
    %v1489 = vmul.f32 %v1473, %v1487
    %v1490 = vmul.f32 %v1488, %v1484
    %v1491 = vmul.f32 %v1489, %v1485
    %v1492 = vsel %vm26, %v1470, %v1490
    %v1493 = vsel %vm26, %v1471, %v1491
    %v1494 = vmul.f32 %v1436, 2.0
    %v1495 = vmul.f32 %v1437, 2.0
    %v1496 = vadd.f32 %v1408, %v1494
    %v1497 = vadd.f32 %v1409, %v1495
    %v1498 = vmul.f32 %v1464, 2.0
    %v1499 = vmul.f32 %v1465, 2.0
    %v1500 = vadd.f32 %v1496, %v1498
    %v1501 = vadd.f32 %v1497, %v1499
    %v1502 = vadd.f32 %v1500, %v1492
    %v1503 = vadd.f32 %v1501, %v1493
    %v1504 = vmul.f32 %v1502, 0.010416667
    %v1505 = vmul.f32 %v1503, 0.010416667
    %v1506 = vadd.f32 %v1384, %v1504
    %v1507 = vadd.f32 %v1385, %v1505
    %v1508 = vrot.slane %v1506, 4
    %v1509 = vrot.slane %v1507, 4
    %v1510 = vmul.f32 %v1508, -0.1
    %v1511 = vmul.f32 %v1509, -0.1
    %v1512 = vmul.f32 %v1510, %v1508
    %v1513 = vmul.f32 %v1511, %v1509
    %v1514 = vsub.f32 %v28, %v1512
    %v1515 = vsub.f32 %v28, %v1513
    %v1516 = vrcp.pop %v1514
    %v1517 = vrcp.pop %v1515
    %v1518 = vmul.f32 %v1514, %v1516
    %v1519 = vmul.f32 %v1515, %v1517
    %v1520 = vsub.f32 2.0, %v1518
    %v1521 = vsub.f32 2.0, %v1519
    %v1522 = vmul.f32 %v1516, %v1520
    %v1523 = vmul.f32 %v1517, %v1521
    %v1524 = vmul.f32 %v1506, %v1506
    %v1525 = vmul.f32 %v1507, %v1507
    %v1526 = vmul.f32 %v1510, %v1524
    %v1527 = vmul.f32 %v1511, %v1525
    %v1528 = vmul.f32 %v1526, %v1522
    %v1529 = vmul.f32 %v1527, %v1523
    %v1530 = vsel %vm26, %v1508, %v1528
    %v1531 = vsel %vm26, %v1509, %v1529
    %v1532 = vmul.f32 %v1530, 0.03125
    %v1533 = vmul.f32 %v1531, 0.03125
    %v1534 = vadd.f32 %v1506, %v1532
    %v1535 = vadd.f32 %v1507, %v1533
    %v1536 = vrot.slane %v1534, 4
    %v1537 = vrot.slane %v1535, 4
    %v1538 = vmul.f32 %v1536, -0.1
    %v1539 = vmul.f32 %v1537, -0.1
    %v1540 = vmul.f32 %v1538, %v1536
    %v1541 = vmul.f32 %v1539, %v1537
    %v1542 = vsub.f32 %v28, %v1540
    %v1543 = vsub.f32 %v28, %v1541
    %v1544 = vrcp.pop %v1542
    %v1545 = vrcp.pop %v1543
    %v1546 = vmul.f32 %v1542, %v1544
    %v1547 = vmul.f32 %v1543, %v1545
    %v1548 = vsub.f32 2.0, %v1546
    %v1549 = vsub.f32 2.0, %v1547
    %v1550 = vmul.f32 %v1544, %v1548
    %v1551 = vmul.f32 %v1545, %v1549
    %v1552 = vmul.f32 %v1534, %v1534
    %v1553 = vmul.f32 %v1535, %v1535
    %v1554 = vmul.f32 %v1538, %v1552
    %v1555 = vmul.f32 %v1539, %v1553
    %v1556 = vmul.f32 %v1554, %v1550
    %v1557 = vmul.f32 %v1555, %v1551
    %v1558 = vsel %vm26, %v1536, %v1556
    %v1559 = vsel %vm26, %v1537, %v1557
    %v1560 = vmul.f32 %v1558, 0.03125
    %v1561 = vmul.f32 %v1559, 0.03125
    %v1562 = vadd.f32 %v1506, %v1560
    %v1563 = vadd.f32 %v1507, %v1561
    %v1564 = vrot.slane %v1562, 4
    %v1565 = vrot.slane %v1563, 4
    %v1566 = vmul.f32 %v1564, -0.1
    %v1567 = vmul.f32 %v1565, -0.1
    %v1568 = vmul.f32 %v1566, %v1564
    %v1569 = vmul.f32 %v1567, %v1565
    %v1570 = vsub.f32 %v28, %v1568
    %v1571 = vsub.f32 %v28, %v1569
    %v1572 = vrcp.pop %v1570
    %v1573 = vrcp.pop %v1571
    %v1574 = vmul.f32 %v1570, %v1572
    %v1575 = vmul.f32 %v1571, %v1573
    %v1576 = vsub.f32 2.0, %v1574
    %v1577 = vsub.f32 2.0, %v1575
    %v1578 = vmul.f32 %v1572, %v1576
    %v1579 = vmul.f32 %v1573, %v1577
    %v1580 = vmul.f32 %v1562, %v1562
    %v1581 = vmul.f32 %v1563, %v1563
    %v1582 = vmul.f32 %v1566, %v1580
    %v1583 = vmul.f32 %v1567, %v1581
    %v1584 = vmul.f32 %v1582, %v1578
    %v1585 = vmul.f32 %v1583, %v1579
    %v1586 = vsel %vm26, %v1564, %v1584
    %v1587 = vsel %vm26, %v1565, %v1585
    %v1588 = vmul.f32 %v1586, 0.0625
    %v1589 = vmul.f32 %v1587, 0.0625
    %v1590 = vadd.f32 %v1506, %v1588
    %v1591 = vadd.f32 %v1507, %v1589
    %v1592 = vrot.slane %v1590, 4
    %v1593 = vrot.slane %v1591, 4
    %v1594 = vmul.f32 %v1592, -0.1
    %v1595 = vmul.f32 %v1593, -0.1
    %v1596 = vmul.f32 %v1594, %v1592
    %v1597 = vmul.f32 %v1595, %v1593
    %v1598 = vsub.f32 %v28, %v1596
    %v1599 = vsub.f32 %v28, %v1597
    %v1600 = vrcp.pop %v1598
    %v1601 = vrcp.pop %v1599
    %v1602 = vmul.f32 %v1598, %v1600
    %v1603 = vmul.f32 %v1599, %v1601
    %v1604 = vsub.f32 2.0, %v1602
    %v1605 = vsub.f32 2.0, %v1603
    %v1606 = vmul.f32 %v1600, %v1604
    %v1607 = vmul.f32 %v1601, %v1605
    %v1608 = vmul.f32 %v1590, %v1590
    %v1609 = vmul.f32 %v1591, %v1591
    %v1610 = vmul.f32 %v1594, %v1608
    %v1611 = vmul.f32 %v1595, %v1609
    %v1612 = vmul.f32 %v1610, %v1606
    %v1613 = vmul.f32 %v1611, %v1607
    %v1614 = vsel %vm26, %v1592, %v1612
    %v1615 = vsel %vm26, %v1593, %v1613
    %v1616 = vmul.f32 %v1558, 2.0
    %v1617 = vmul.f32 %v1559, 2.0
    %v1618 = vadd.f32 %v1530, %v1616
    %v1619 = vadd.f32 %v1531, %v1617
    %v1620 = vmul.f32 %v1586, 2.0
    %v1621 = vmul.f32 %v1587, 2.0
    %v1622 = vadd.f32 %v1618, %v1620
    %v1623 = vadd.f32 %v1619, %v1621
    %v1624 = vadd.f32 %v1622, %v1614
    %v1625 = vadd.f32 %v1623, %v1615
    %v1626 = vmul.f32 %v1624, 0.010416667
    %v1627 = vmul.f32 %v1625, 0.010416667
    %v1628 = vadd.f32 %v1506, %v1626
    %v1629 = vadd.f32 %v1507, %v1627
    %v1630 = vrot.slane %v1628, 4
    %v1631 = vrot.slane %v1629, 4
    %v1632 = vmul.f32 %v1630, -0.1
    %v1633 = vmul.f32 %v1631, -0.1
    %v1634 = vmul.f32 %v1632, %v1630
    %v1635 = vmul.f32 %v1633, %v1631
    %v1636 = vsub.f32 %v28, %v1634
    %v1637 = vsub.f32 %v28, %v1635
    %v1638 = vrcp.pop %v1636
    %v1639 = vrcp.pop %v1637
    %v1640 = vmul.f32 %v1636, %v1638
    %v1641 = vmul.f32 %v1637, %v1639
    %v1642 = vsub.f32 2.0, %v1640
    %v1643 = vsub.f32 2.0, %v1641
    %v1644 = vmul.f32 %v1638, %v1642
    %v1645 = vmul.f32 %v1639, %v1643
    %v1646 = vmul.f32 %v1628, %v1628
    %v1647 = vmul.f32 %v1629, %v1629
    %v1648 = vmul.f32 %v1632, %v1646
    %v1649 = vmul.f32 %v1633, %v1647
    %v1650 = vmul.f32 %v1648, %v1644
    %v1651 = vmul.f32 %v1649, %v1645
    %v1652 = vsel %vm26, %v1630, %v1650
    %v1653 = vsel %vm26, %v1631, %v1651
    %v1654 = vmul.f32 %v1652, 0.03125
    %v1655 = vmul.f32 %v1653, 0.03125
    %v1656 = vadd.f32 %v1628, %v1654
    %v1657 = vadd.f32 %v1629, %v1655
    %v1658 = vrot.slane %v1656, 4
    %v1659 = vrot.slane %v1657, 4
    %v1660 = vmul.f32 %v1658, -0.1
    %v1661 = vmul.f32 %v1659, -0.1
    %v1662 = vmul.f32 %v1660, %v1658
    %v1663 = vmul.f32 %v1661, %v1659
    %v1664 = vsub.f32 %v28, %v1662
    %v1665 = vsub.f32 %v28, %v1663
    %v1666 = vrcp.pop %v1664
    %v1667 = vrcp.pop %v1665
    %v1668 = vmul.f32 %v1664, %v1666
    %v1669 = vmul.f32 %v1665, %v1667
    %v1670 = vsub.f32 2.0, %v1668
    %v1671 = vsub.f32 2.0, %v1669
    %v1672 = vmul.f32 %v1666, %v1670
    %v1673 = vmul.f32 %v1667, %v1671
    %v1674 = vmul.f32 %v1656, %v1656
    %v1675 = vmul.f32 %v1657, %v1657
    %v1676 = vmul.f32 %v1660, %v1674
    %v1677 = vmul.f32 %v1661, %v1675
    %v1678 = vmul.f32 %v1676, %v1672
    %v1679 = vmul.f32 %v1677, %v1673
    %v1680 = vsel %vm26, %v1658, %v1678
    %v1681 = vsel %vm26, %v1659, %v1679
    %v1682 = vmul.f32 %v1680, 0.03125
    %v1683 = vmul.f32 %v1681, 0.03125
    %v1684 = vadd.f32 %v1628, %v1682
    %v1685 = vadd.f32 %v1629, %v1683
    %v1686 = vrot.slane %v1684, 4
    %v1687 = vrot.slane %v1685, 4
    %v1688 = vmul.f32 %v1686, -0.1
    %v1689 = vmul.f32 %v1687, -0.1
    %v1690 = vmul.f32 %v1688, %v1686
    %v1691 = vmul.f32 %v1689, %v1687
    %v1692 = vsub.f32 %v28, %v1690
    %v1693 = vsub.f32 %v28, %v1691
    %v1694 = vrcp.pop %v1692
    %v1695 = vrcp.pop %v1693
    %v1696 = vmul.f32 %v1692, %v1694
    %v1697 = vmul.f32 %v1693, %v1695
    %v1698 = vsub.f32 2.0, %v1696
    %v1699 = vsub.f32 2.0, %v1697
    %v1700 = vmul.f32 %v1694, %v1698
    %v1701 = vmul.f32 %v1695, %v1699
    %v1702 = vmul.f32 %v1684, %v1684
    %v1703 = vmul.f32 %v1685, %v1685
    %v1704 = vmul.f32 %v1688, %v1702
    %v1705 = vmul.f32 %v1689, %v1703
    %v1706 = vmul.f32 %v1704, %v1700
    %v1707 = vmul.f32 %v1705, %v1701
    %v1708 = vsel %vm26, %v1686, %v1706
    %v1709 = vsel %vm26, %v1687, %v1707
    %v1710 = vmul.f32 %v1708, 0.0625
    %v1711 = vmul.f32 %v1709, 0.0625
    %v1712 = vadd.f32 %v1628, %v1710
    %v1713 = vadd.f32 %v1629, %v1711
    %v1714 = vrot.slane %v1712, 4
    %v1715 = vrot.slane %v1713, 4
    %v1716 = vmul.f32 %v1714, -0.1
    %v1717 = vmul.f32 %v1715, -0.1
    %v1718 = vmul.f32 %v1716, %v1714
    %v1719 = vmul.f32 %v1717, %v1715
    %v1720 = vsub.f32 %v28, %v1718
    %v1721 = vsub.f32 %v28, %v1719
    %v1722 = vrcp.pop %v1720
    %v1723 = vrcp.pop %v1721
    %v1724 = vmul.f32 %v1720, %v1722
    %v1725 = vmul.f32 %v1721, %v1723
    %v1726 = vsub.f32 2.0, %v1724
    %v1727 = vsub.f32 2.0, %v1725
    %v1728 = vmul.f32 %v1722, %v1726
    %v1729 = vmul.f32 %v1723, %v1727
    %v1730 = vmul.f32 %v1712, %v1712
    %v1731 = vmul.f32 %v1713, %v1713
    %v1732 = vmul.f32 %v1716, %v1730
    %v1733 = vmul.f32 %v1717, %v1731
    %v1734 = vmul.f32 %v1732, %v1728
    %v1735 = vmul.f32 %v1733, %v1729
    %v1736 = vsel %vm26, %v1714, %v1734
    %v1737 = vsel %vm26, %v1715, %v1735
    %v1738 = vmul.f32 %v1680, 2.0
    %v1739 = vmul.f32 %v1681, 2.0
    %v1740 = vadd.f32 %v1652, %v1738
    %v1741 = vadd.f32 %v1653, %v1739
    %v1742 = vmul.f32 %v1708, 2.0
    %v1743 = vmul.f32 %v1709, 2.0
    %v1744 = vadd.f32 %v1740, %v1742
    %v1745 = vadd.f32 %v1741, %v1743
    %v1746 = vadd.f32 %v1744, %v1736
    %v1747 = vadd.f32 %v1745, %v1737
    %v1748 = vmul.f32 %v1746, 0.010416667
    %v1749 = vmul.f32 %v1747, 0.010416667
    %v1750 = vadd.f32 %v1628, %v1748
    %v1751 = vadd.f32 %v1629, %v1749
    %v1752 = vrot.slane %v1750, 4
    %v1753 = vrot.slane %v1751, 4
    %v1754 = vmul.f32 %v1752, -0.1
    %v1755 = vmul.f32 %v1753, -0.1
    %v1756 = vmul.f32 %v1754, %v1752
    %v1757 = vmul.f32 %v1755, %v1753
    %v1758 = vsub.f32 %v28, %v1756
    %v1759 = vsub.f32 %v28, %v1757
    %v1760 = vrcp.pop %v1758
    %v1761 = vrcp.pop %v1759
    %v1762 = vmul.f32 %v1758, %v1760
    %v1763 = vmul.f32 %v1759, %v1761
    %v1764 = vsub.f32 2.0, %v1762
    %v1765 = vsub.f32 2.0, %v1763
    %v1766 = vmul.f32 %v1760, %v1764
    %v1767 = vmul.f32 %v1761, %v1765
    %v1768 = vmul.f32 %v1750, %v1750
    %v1769 = vmul.f32 %v1751, %v1751
    %v1770 = vmul.f32 %v1754, %v1768
    %v1771 = vmul.f32 %v1755, %v1769
    %v1772 = vmul.f32 %v1770, %v1766
    %v1773 = vmul.f32 %v1771, %v1767
    %v1774 = vsel %vm26, %v1752, %v1772
    %v1775 = vsel %vm26, %v1753, %v1773
    %v1776 = vmul.f32 %v1774, 0.03125
    %v1777 = vmul.f32 %v1775, 0.03125
    %v1778 = vadd.f32 %v1750, %v1776
    %v1779 = vadd.f32 %v1751, %v1777
    %v1780 = vrot.slane %v1778, 4
    %v1781 = vrot.slane %v1779, 4
    %v1782 = vmul.f32 %v1780, -0.1
    %v1783 = vmul.f32 %v1781, -0.1
    %v1784 = vmul.f32 %v1782, %v1780
    %v1785 = vmul.f32 %v1783, %v1781
    %v1786 = vsub.f32 %v28, %v1784
    %v1787 = vsub.f32 %v28, %v1785
    %v1788 = vrcp.pop %v1786
    %v1789 = vrcp.pop %v1787
    %v1790 = vmul.f32 %v1786, %v1788
    %v1791 = vmul.f32 %v1787, %v1789
    %v1792 = vsub.f32 2.0, %v1790
    %v1793 = vsub.f32 2.0, %v1791
    %v1794 = vmul.f32 %v1788, %v1792
    %v1795 = vmul.f32 %v1789, %v1793
    %v1796 = vmul.f32 %v1778, %v1778
    %v1797 = vmul.f32 %v1779, %v1779
    %v1798 = vmul.f32 %v1782, %v1796
    %v1799 = vmul.f32 %v1783, %v1797
    %v1800 = vmul.f32 %v1798, %v1794
    %v1801 = vmul.f32 %v1799, %v1795
    %v1802 = vsel %vm26, %v1780, %v1800
    %v1803 = vsel %vm26, %v1781, %v1801
    %v1804 = vmul.f32 %v1802, 0.03125
    %v1805 = vmul.f32 %v1803, 0.03125
    %v1806 = vadd.f32 %v1750, %v1804
    %v1807 = vadd.f32 %v1751, %v1805
    %v1808 = vrot.slane %v1806, 4
    %v1809 = vrot.slane %v1807, 4
    %v1810 = vmul.f32 %v1808, -0.1
    %v1811 = vmul.f32 %v1809, -0.1
    %v1812 = vmul.f32 %v1810, %v1808
    %v1813 = vmul.f32 %v1811, %v1809
    %v1814 = vsub.f32 %v28, %v1812
    %v1815 = vsub.f32 %v28, %v1813
    %v1816 = vrcp.pop %v1814
    %v1817 = vrcp.pop %v1815
    %v1818 = vmul.f32 %v1814, %v1816
    %v1819 = vmul.f32 %v1815, %v1817
    %v1820 = vsub.f32 2.0, %v1818
    %v1821 = vsub.f32 2.0, %v1819
    %v1822 = vmul.f32 %v1816, %v1820
    %v1823 = vmul.f32 %v1817, %v1821
    %v1824 = vmul.f32 %v1806, %v1806
    %v1825 = vmul.f32 %v1807, %v1807
    %v1826 = vmul.f32 %v1810, %v1824
    %v1827 = vmul.f32 %v1811, %v1825
    %v1828 = vmul.f32 %v1826, %v1822
    %v1829 = vmul.f32 %v1827, %v1823
    %v1830 = vsel %vm26, %v1808, %v1828
    %v1831 = vsel %vm26, %v1809, %v1829
    %v1832 = vmul.f32 %v1830, 0.0625
    %v1833 = vmul.f32 %v1831, 0.0625
    %v1834 = vadd.f32 %v1750, %v1832
    %v1835 = vadd.f32 %v1751, %v1833
    %v1836 = vrot.slane %v1834, 4
    %v1837 = vrot.slane %v1835, 4
    %v1838 = vmul.f32 %v1836, -0.1
    %v1839 = vmul.f32 %v1837, -0.1
    %v1840 = vmul.f32 %v1838, %v1836
    %v1841 = vmul.f32 %v1839, %v1837
    %v1842 = vsub.f32 %v28, %v1840
    %v1843 = vsub.f32 %v28, %v1841
    %v1844 = vrcp.pop %v1842
    %v1845 = vrcp.pop %v1843
    %v1846 = vmul.f32 %v1842, %v1844
    %v1847 = vmul.f32 %v1843, %v1845
    %v1848 = vsub.f32 2.0, %v1846
    %v1849 = vsub.f32 2.0, %v1847
    %v1850 = vmul.f32 %v1844, %v1848
    %v1851 = vmul.f32 %v1845, %v1849
    %v1852 = vmul.f32 %v1834, %v1834
    %v1853 = vmul.f32 %v1835, %v1835
    %v1854 = vmul.f32 %v1838, %v1852
    %v1855 = vmul.f32 %v1839, %v1853
    %v1856 = vmul.f32 %v1854, %v1850
    %v1857 = vmul.f32 %v1855, %v1851
    %v1858 = vsel %vm26, %v1836, %v1856
    %v1859 = vsel %vm26, %v1837, %v1857
    %v1860 = vmul.f32 %v1802, 2.0
    %v1861 = vmul.f32 %v1803, 2.0
    %v1862 = vadd.f32 %v1774, %v1860
    %v1863 = vadd.f32 %v1775, %v1861
    %v1864 = vmul.f32 %v1830, 2.0
    %v1865 = vmul.f32 %v1831, 2.0
    %v1866 = vadd.f32 %v1862, %v1864
    %v1867 = vadd.f32 %v1863, %v1865
    %v1868 = vadd.f32 %v1866, %v1858
    %v1869 = vadd.f32 %v1867, %v1859
    %v1870 = vmul.f32 %v1868, 0.010416667
    %v1871 = vmul.f32 %v1869, 0.010416667
    %v1872 = vadd.f32 %v1750, %v1870
    %v1873 = vadd.f32 %v1751, %v1871
    %v1874 = vrot.slane %v1872, 4
    %v1875 = vrot.slane %v1873, 4
    %v1876 = vmul.f32 %v1874, -0.1
    %v1877 = vmul.f32 %v1875, -0.1
    %v1878 = vmul.f32 %v1876, %v1874
    %v1879 = vmul.f32 %v1877, %v1875
    %v1880 = vsub.f32 %v28, %v1878
    %v1881 = vsub.f32 %v28, %v1879
    %v1882 = vrcp.pop %v1880
    %v1883 = vrcp.pop %v1881
    %v1884 = vmul.f32 %v1880, %v1882
    %v1885 = vmul.f32 %v1881, %v1883
    %v1886 = vsub.f32 2.0, %v1884
    %v1887 = vsub.f32 2.0, %v1885
    %v1888 = vmul.f32 %v1882, %v1886
    %v1889 = vmul.f32 %v1883, %v1887
    %v1890 = vmul.f32 %v1872, %v1872
    %v1891 = vmul.f32 %v1873, %v1873
    %v1892 = vmul.f32 %v1876, %v1890
    %v1893 = vmul.f32 %v1877, %v1891
    %v1894 = vmul.f32 %v1892, %v1888
    %v1895 = vmul.f32 %v1893, %v1889
    %v1896 = vsel %vm26, %v1874, %v1894
    %v1897 = vsel %vm26, %v1875, %v1895
    %v1898 = vmul.f32 %v1896, 0.03125
    %v1899 = vmul.f32 %v1897, 0.03125
    %v1900 = vadd.f32 %v1872, %v1898
    %v1901 = vadd.f32 %v1873, %v1899
    %v1902 = vrot.slane %v1900, 4
    %v1903 = vrot.slane %v1901, 4
    %v1904 = vmul.f32 %v1902, -0.1
    %v1905 = vmul.f32 %v1903, -0.1
    %v1906 = vmul.f32 %v1904, %v1902
    %v1907 = vmul.f32 %v1905, %v1903
    %v1908 = vsub.f32 %v28, %v1906
    %v1909 = vsub.f32 %v28, %v1907
    %v1910 = vrcp.pop %v1908
    %v1911 = vrcp.pop %v1909
    %v1912 = vmul.f32 %v1908, %v1910
    %v1913 = vmul.f32 %v1909, %v1911
    %v1914 = vsub.f32 2.0, %v1912
    %v1915 = vsub.f32 2.0, %v1913
    %v1916 = vmul.f32 %v1910, %v1914
    %v1917 = vmul.f32 %v1911, %v1915
    %v1918 = vmul.f32 %v1900, %v1900
    %v1919 = vmul.f32 %v1901, %v1901
    %v1920 = vmul.f32 %v1904, %v1918
    %v1921 = vmul.f32 %v1905, %v1919
    %v1922 = vmul.f32 %v1920, %v1916
    %v1923 = vmul.f32 %v1921, %v1917
    %v1924 = vsel %vm26, %v1902, %v1922
    %v1925 = vsel %vm26, %v1903, %v1923
    %v1926 = vmul.f32 %v1924, 0.03125
    %v1927 = vmul.f32 %v1925, 0.03125
    %v1928 = vadd.f32 %v1872, %v1926
    %v1929 = vadd.f32 %v1873, %v1927
    %v1930 = vrot.slane %v1928, 4
    %v1931 = vrot.slane %v1929, 4
    %v1932 = vmul.f32 %v1930, -0.1
    %v1933 = vmul.f32 %v1931, -0.1
    %v1934 = vmul.f32 %v1932, %v1930
    %v1935 = vmul.f32 %v1933, %v1931
    %v1936 = vsub.f32 %v28, %v1934
    %v1937 = vsub.f32 %v28, %v1935
    %v1938 = vrcp.pop %v1936
    %v1939 = vrcp.pop %v1937
    %v1940 = vmul.f32 %v1936, %v1938
    %v1941 = vmul.f32 %v1937, %v1939
    %v1942 = vsub.f32 2.0, %v1940
    %v1943 = vsub.f32 2.0, %v1941
    %v1944 = vmul.f32 %v1938, %v1942
    %v1945 = vmul.f32 %v1939, %v1943
    %v1946 = vmul.f32 %v1928, %v1928
    %v1947 = vmul.f32 %v1929, %v1929
    %v1948 = vmul.f32 %v1932, %v1946
    %v1949 = vmul.f32 %v1933, %v1947
    %v1950 = vmul.f32 %v1948, %v1944
    %v1951 = vmul.f32 %v1949, %v1945
    %v1952 = vsel %vm26, %v1930, %v1950
    %v1953 = vsel %vm26, %v1931, %v1951
    %v1954 = vmul.f32 %v1952, 0.0625
    %v1955 = vmul.f32 %v1953, 0.0625
    %v1956 = vadd.f32 %v1872, %v1954
    %v1957 = vadd.f32 %v1873, %v1955
    %v1958 = vrot.slane %v1956, 4
    %v1959 = vrot.slane %v1957, 4
    %v1960 = vmul.f32 %v1958, -0.1
    %v1961 = vmul.f32 %v1959, -0.1
    %v1962 = vmul.f32 %v1960, %v1958
    %v1963 = vmul.f32 %v1961, %v1959
    %v1964 = vsub.f32 %v28, %v1962
    %v1965 = vsub.f32 %v28, %v1963
    %v1966 = vrcp.pop %v1964
    %v1967 = vrcp.pop %v1965
    %v1968 = vmul.f32 %v1964, %v1966
    %v1969 = vmul.f32 %v1965, %v1967
    %v1970 = vsub.f32 2.0, %v1968
    %v1971 = vsub.f32 2.0, %v1969
    %v1972 = vmul.f32 %v1966, %v1970
    %v1973 = vmul.f32 %v1967, %v1971
    %v1974 = vmul.f32 %v1956, %v1956
    %v1975 = vmul.f32 %v1957, %v1957
    %v1976 = vmul.f32 %v1960, %v1974
    %v1977 = vmul.f32 %v1961, %v1975
    %v1978 = vmul.f32 %v1976, %v1972
    %v1979 = vmul.f32 %v1977, %v1973
    %v1980 = vsel %vm26, %v1958, %v1978
    %v1981 = vsel %vm26, %v1959, %v1979
    %v1982 = vmul.f32 %v1924, 2.0
    %v1983 = vmul.f32 %v1925, 2.0
    %v1984 = vadd.f32 %v1896, %v1982
    %v1985 = vadd.f32 %v1897, %v1983
    %v1986 = vmul.f32 %v1952, 2.0
    %v1987 = vmul.f32 %v1953, 2.0
    %v1988 = vadd.f32 %v1984, %v1986
    %v1989 = vadd.f32 %v1985, %v1987
    %v1990 = vadd.f32 %v1988, %v1980
    %v1991 = vadd.f32 %v1989, %v1981
    %v1992 = vmul.f32 %v1990, 0.010416667
    %v1993 = vmul.f32 %v1991, 0.010416667
    %v1994 = vadd.f32 %v1872, %v1992
    %v1995 = vadd.f32 %v1873, %v1993
    %1996 = vst [vmem:[#allocation6] sm:$0xff] %v1994
    %1997 = vst [vmem:[#allocation6 + $0x8] sm:$0xff] %v1995
    // Predicated region
    $region10: #{tpu_custom_call.1} parent=1 // pred_check
      _
    $region11: #{tpu_custom_call.1} parent=1 // pred_check_branch
      %1999 = sbr.rel (0) target = $region13
    $region12: #{tpu_custom_call.1} parent=1 // pred_region
      %s2001 = ssub.s32 128, 128
      %2002 = vsyncadd [#allocation4], %s2001
      %s2004 = sshll.u32 [#allocation5], 4
      %s2005 = int_to_ptr.vmem [resolvable:$true] %s2004
      %2007 = dma.vmem_to_hbm [thread:$0]  %s2005, 128, %s1, [#allocation4]
    $region13: #{tpu_custom_call.1} parent=1 // pred_fallthru
      _
    // Predicated region
    $region14: #{tpu_custom_call.1} parent=1 // pred_check
      _
    $region15: #{tpu_custom_call.1} parent=1 // pred_check_branch
      %2009 = sbr.rel (0) target = $region17
    $region16: #{tpu_custom_call.1} parent=1 // pred_region
      %s2011 = ssub.s32 256, 256
      %2012 = vsyncadd [#allocation7], %s2011
      %s2014 = sshll.u32 [#allocation6], 4
      %s2015 = int_to_ptr.vmem [resolvable:$true] %s2014
      %2017 = dma.vmem_to_hbm [thread:$0]  %s2015, 256, %s2, [#allocation7]
    $region17: #{tpu_custom_call.1} parent=1 // pred_fallthru
      _
    // Predicated region
    $region18: #{tpu_custom_call.1} parent=1 // pred_check
      _
    $region19: #{tpu_custom_call.1} parent=1 // pred_check_branch
      %2019 = sbr.rel (0) target = $region21
    $region20: #{tpu_custom_call.1} parent=1 // pred_region
      %2020 = dma.done [#allocation4], 128
    $region21: #{tpu_custom_call.1} parent=1 // pred_fallthru
      _
    // Predicated region
    $region22: #{tpu_custom_call.1} parent=1 // pred_check
      _
    $region23: #{tpu_custom_call.1} parent=1 // pred_check_branch
      %2022 = sbr.rel (0) target = $region25
    $region24: #{tpu_custom_call.1} parent=1 // pred_region
      %2023 = dma.done [#allocation7], 256
    $region25: #{tpu_custom_call.1} parent=1 // pred_fallthru
      _
    %2024 = vsyncpa [#allocation3], 1
    %2025 = vsyncpa [#allocation4], 1
    %2026 = vsyncpa [#allocation7], 1

</llo_original>
